<compile_context>
chip_gen: v5e
topology: v5e:2x2
jax: 0.10.0
libtpu: 0.0.40
codegen_flags: <defaults>
</compile_context>

<pallas_src>
import functools

import jax
import jax.numpy as jnp
from jax.experimental import pallas as pl
from jax.experimental.pallas import tpu as pltpu

HIDDEN = 4096  # hard-coded in the PyTorch module (MLP width & classifier input)
LANE = 128
# Resident (padded) W2 costs ~S MiB (x2 buffers worst case); keep residency only
# while that stays comfortably inside the 32 MiB scoped-VMEM budget.
_W2_RESIDENT_MAX_SEGMENTS = 8


def _round_up(n, m):
    return ((n + m - 1) // m) * m


def _batch_tile(b, max_tile=256):
    """Batch-tile size (multiple of 8) + padded batch extent (multiple of tile).

    - never falls back to an unbounded full extent (bounded VMEM on every gen)
    - aims for >= 2 tiles once b >= 16 so the megacore 'parallel' axis on v7x
      actually has something to shard.
    """
    b8 = _round_up(max(b, 1), 8)
    if b8 >= 16:
        tb = min(max_tile, _round_up(b8 // 2, 8))
    else:
        tb = b8
    bp = _round_up(b8, tb)
    return tb, bp


# ----------------------------------------------------------------------------
# Fused kernel.  Grid = (B_tiles [parallel], S [arbitrary]).
#   per (bt, s):
#     z       = relu( (x[s, bt] @ W1) * bn_scale + bn_shift )        (f32)
#     curz    = z                      if s == 0
#             = max(curz, z)           otherwise      (f32 VMEM scratch carry)
#     logits  = curz(bf16) @ W2[s] + b2[s]            (f32 accumulation)
# ----------------------------------------------------------------------------
def fused_kernel(x_ref, w1_ref, scale_ref, shift_ref, w2_ref, b2_ref,
                 o_ref, curz_ref, *, w2_has_s_axis):
    s = pl.program_id(1)

    # MLP tile: Linear bias + BatchNorm (eval, running stats) folded into a
    # single per-feature scale/shift; bf16 MXU operands, f32 accumulation.
    y = jnp.dot(x_ref[0], w1_ref[...], preferred_element_type=jnp.float32)
    z = jnp.maximum(y * scale_ref[...] + shift_ref[...], 0.0)

    # Running (cumulative) element-wise max over segments, carried in f32.
    @pl.when(s == 0)
    def _():
        curz_ref[...] = z

    @pl.when(s > 0)
    def _():
        curz_ref[...] = jnp.maximum(curz_ref[...], z)

    # Per-segment classifier.
    if w2_has_s_axis:          # W2/b2 VMEM-resident: dynamic index on leading S axis
        w2_blk = w2_ref[s]
        b2_blk = b2_ref[s]
    else:                      # streamed per-segment block
        w2_blk = w2_ref[0]
        b2_blk = b2_ref[0]

    logits = jnp.dot(curz_ref[...].astype(jnp.bfloat16), w2_blk,
                     preferred_element_type=jnp.float32) + b2_blk
    o_ref[0] = logits.astype(o_ref.dtype)


def pooling_classifier_fused(x_sbd, w1, bn_scale, bn_shift, w2p, b2p, *, tb):
    S, Bp, D = x_sbd.shape
    H = w1.shape[1]
    Cpad = w2p.shape[-1]
    assert Bp % tb == 0 and tb % 8 == 0 or tb == Bp

    w2_resident = S <= _W2_RESIDENT_MAX_SEGMENTS
    if w2_resident:
        # Constant block index -> weights DMA'd into VMEM once, reused per step.
        w2_spec = pl.BlockSpec((S, H, Cpad), lambda bt, s: (0, 0, 0))
        b2_spec = pl.BlockSpec((S, 1, Cpad), lambda bt, s: (0, 0, 0))
    else:
        w2_spec = pl.BlockSpec((1, H, Cpad), lambda bt, s: (s, 0, 0))
        b2_spec = pl.BlockSpec((1, 1, Cpad), lambda bt, s: (s, 0, 0))

    kernel = functools.partial(fused_kernel, w2_has_s_axis=w2_resident)

    return pl.pallas_call(
        kernel,
        out_shape=jax.ShapeDtypeStruct((S, Bp, Cpad), jnp.float32),
        grid_spec=pltpu.PrefetchScalarGridSpec(
            num_scalar_prefetch=0,
            grid=(Bp // tb, S),
            in_specs=[
                pl.BlockSpec((1, tb, D), lambda bt, s: (s, bt, 0)),   # x
                pl.BlockSpec((D, H), lambda bt, s: (0, 0)),           # W1 (resident)
                pl.BlockSpec((1, H), lambda bt, s: (0, 0)),           # bn scale
                pl.BlockSpec((1, H), lambda bt, s: (0, 0)),           # bn shift
                w2_spec,
                b2_spec,
            ],
            out_specs=pl.BlockSpec((1, tb, Cpad), lambda bt, s: (s, bt, 0)),
            scratch_shapes=[pltpu.VMEM((tb, H), jnp.float32)],        # running max
        ),
        compiler_params=pltpu.CompilerParams(
            # S axis MUST stay "arbitrary": the running-max carry is sequential.
            dimension_semantics=("parallel", "arbitrary"),
            vmem_limit_bytes=32 * 1024 * 1024,
        ),
    )(x_sbd, w1, bn_scale, bn_shift, w2p, b2p)


# ----------------------------------------------------------------------------
# Full forward (glue in plain JAX; hot path entirely in the fused kernel)
# ----------------------------------------------------------------------------
def pooling_classifier_forward(x, params):
    """x: (B, num_segments, input_dim) -> (logits (B*S, C), last_out (B, C))."""
    B, S, D = x.shape
    H = params["w1"].shape[1]
    C = params["w2"].shape[-1]

    # TODO(synk): Dropout is a no-op in eval mode; BatchNorm1d uses running
    # stats (eval semantics).  Linear bias + BN folded into scale/shift:
    #   (x@W1 + b1 - mean)/std * gamma + beta = (x@W1)*scale + shift
    eps = 1e-5
    bn_scale = params["bn_gamma"] / jnp.sqrt(params["bn_var"] + eps)
    bn_shift = params["bn_beta"] + (params["b1"] - params["bn_mean"]) * bn_scale

    tb, Bp = _batch_tile(B)

    # Segment-major layout (cheap: D is tiny) + zero-pad batch to the tile grid.
    x_sbd = jnp.transpose(x, (1, 0, 2))
    if Bp != B:
        x_sbd = jnp.pad(x_sbd, ((0, 0), (0, Bp - B), (0, 0)))
    x_sbd = x_sbd.astype(jnp.bfloat16)

    # Pad classifier lane dim to 128 (dense MXU columns, unmasked vst stores).
    Cpad = _round_up(C, LANE)
    w2p = jnp.pad(params["w2"].astype(jnp.bfloat16),
                  ((0, 0), (0, 0), (0, Cpad - C)))
    b2p = jnp.pad(params["b2"].astype(jnp.float32),
                  ((0, 0), (0, 0), (0, Cpad - C)))

    logits_sbc = pooling_classifier_fused(
        x_sbd,
        params["w1"].astype(jnp.bfloat16),
        bn_scale.reshape(1, H).astype(jnp.float32),
        bn_shift.reshape(1, H).astype(jnp.float32),
        w2p, b2p, tb=tb)                                  # (S, Bp, Cpad) f32

    logits_bsc = jnp.transpose(logits_sbc[:, :B, :C], (1, 0, 2))  # small (B,S,C)
    last_out = logits_bsc[:, -1, :].reshape(B, -1)
    logits = logits_bsc.reshape(B * S, -1)
    return logits, last_out


# ----------------------------------------------------------------------------
# Pure-JAX (f32) reference for correctness checking
# ----------------------------------------------------------------------------
def reference_forward(x, params):
    B, S, D = x.shape
    eps = 1e-5
    x2d = x.reshape(B * S, D)
    y = x2d @ params["w1"] + params["b1"]
    y = (y - params["bn_mean"]) / jnp.sqrt(params["bn_var"] + eps)
    y = y * params["bn_gamma"] + params["bn_beta"]
    z = jnp.maximum(y, 0.0).reshape(B, S, HIDDEN)

    cur_z = z[:, 0]
    outs = []
    for s in range(S):
        if s > 0:
            cur_z = jnp.maximum(z[:, s], cur_z)
        outs.append(cur_z @ params["w2"][s] + params["b2"][s, 0])
    logits_bsc = jnp.stack(outs, axis=1)
    return logits_bsc.reshape(B * S, -1), logits_bsc[:, -1, :].reshape(B, -1)


if __name__ == "__main__":
    B, S, D, C = 2, 4, 32, 16  # batch, num_segments, input_dim, num_classes
    key = jax.random.PRNGKey(0)
    k_x, k_w1, k_b1, k_w2, k_b2, k_g, k_be = jax.random.split(key, 7)

    x = jax.random.normal(k_x, (B, S, D), dtype=jnp.float32)

    params = {
        # MLP Linear(input_dim, 4096), stored pre-transposed as (D, H)
        "w1": jax.random.normal(k_w1, (D, HIDDEN), dtype=jnp.float32) * 0.05,
        "b1": jax.random.normal(k_b1, (HIDDEN,), dtype=jnp.float32) * 0.05,
        # BatchNorm1d(4096) eval-mode parameters / running stats
        "bn_gamma": 1.0 + 0.1 * jax.random.normal(k_g, (HIDDEN,), dtype=jnp.float32),
        "bn_beta": 0.1 * jax.random.normal(k_be, (HIDDEN,), dtype=jnp.float32),
        "bn_mean": jnp.zeros((HIDDEN,), dtype=jnp.float32),
        "bn_var": jnp.ones((HIDDEN,), dtype=jnp.float32),
        # per-segment classifiers Linear(4096, C), stored as (S, H, C)
        "w2": jax.random.normal(k_w2, (S, HIDDEN, C), dtype=jnp.float32) * 0.02,
        "b2": jax.random.normal(k_b2, (S, 1, C), dtype=jnp.float32) * 0.02,
    }

    logits, last_out = jax.block_until_ready(pooling_classifier_forward(x, params))
    ref_logits, ref_last = reference_forward(x, params)

    assert logits.shape == (B * S, C) and last_out.shape == (B, C)
    # bf16 matmul operands vs f32 reference -> relaxed tolerance
    assert jnp.allclose(logits, ref_logits, atol=2e-2, rtol=2e-2)
    assert jnp.allclose(last_out, ref_last, atol=2e-2, rtol=2e-2)

    print("KERNEL_OK")
</pallas_src>

<mosaic_0001>
module attributes {stable_mosaic.version = 11 : i64} {
  func.func @fused_kernel(%arg0: i32, %arg1: i32, %arg2: memref<1x8x32xbf16, #tpu.memory_space<vmem>>, %arg3: memref<32x4096xbf16, #tpu.memory_space<vmem>>, %arg4: memref<1x4096xf32, #tpu.memory_space<vmem>>, %arg5: memref<1x4096xf32, #tpu.memory_space<vmem>>, %arg6: memref<4x4096x128xbf16, #tpu.memory_space<vmem>>, %arg7: memref<4x1x128xf32, #tpu.memory_space<vmem>>, %arg8: memref<1x8x128xf32, #tpu.memory_space<vmem>>, %arg9: memref<8x4096xf32, #tpu.memory_space<vmem>>) attributes {dimension_semantics = [#tpu.dimension_semantics<parallel>, #tpu.dimension_semantics<arbitrary>], iteration_bounds = array<i64: 1, 4>, scalar_prefetch = 0 : i64, scratch_operands = 1 : i64, tpu.core_type = #tpu.core_type<tc>, window_params = [{transform_indices = @transform_0, window_bounds = array<i64: 1, 8, 32>}, {pipeline_mode = #tpu.pipeline_mode<synchronous>, transform_indices = @transform_1, window_bounds = array<i64: 32, 4096>}, {pipeline_mode = #tpu.pipeline_mode<synchronous>, transform_indices = @transform_2, window_bounds = array<i64: 1, 4096>}, {pipeline_mode = #tpu.pipeline_mode<synchronous>, transform_indices = @transform_3, window_bounds = array<i64: 1, 4096>}, {pipeline_mode = #tpu.pipeline_mode<synchronous>, transform_indices = @transform_4, window_bounds = array<i64: 4, 4096, 128>}, {pipeline_mode = #tpu.pipeline_mode<synchronous>, transform_indices = @transform_5, window_bounds = array<i64: 4, 1, 128>}, {transform_indices = @transform_6, window_bounds = array<i64: 1, 8, 128>}]} {
    %c0 = arith.constant 0 : index
    %c0_0 = arith.constant 0 : index
    %c0_1 = arith.constant 0 : index
    %0 = vector.load %arg2[%c0, %c0_0, %c0_1] : memref<1x8x32xbf16, #tpu.memory_space<vmem>>, vector<1x8x32xbf16>
    %1 = vector.shape_cast %0 : vector<1x8x32xbf16> to vector<8x32xbf16>
    %c0_2 = arith.constant 0 : index
    %c0_3 = arith.constant 0 : index
    %2 = vector.load %arg3[%c0_2, %c0_3] : memref<32x4096xbf16, #tpu.memory_space<vmem>>, vector<32x4096xbf16>
    %cst = arith.constant dense<0.000000e+00> : vector<8x4096xf32>
    %3 = tpu.matmul %1, %2, %cst {dimension_numbers = #tpu.dot_dimension_numbers<[1], [0], [0], [1], [0, 0, 1, 1], [], []>} : vector<8x32xbf16>, vector<32x4096xbf16>, vector<8x4096xf32> -> vector<8x4096xf32>
    %c0_4 = arith.constant 0 : index
    %c0_5 = arith.constant 0 : index
    %4 = vector.load %arg4[%c0_4, %c0_5] : memref<1x4096xf32, #tpu.memory_space<vmem>>, vector<1x4096xf32>
    %5 = vector.broadcast %4 : vector<1x4096xf32> to vector<8x4096xf32>
    %6 = arith.mulf %3, %5 : vector<8x4096xf32>
    %c0_6 = arith.constant 0 : index
    %c0_7 = arith.constant 0 : index
    %7 = vector.load %arg5[%c0_6, %c0_7] : memref<1x4096xf32, #tpu.memory_space<vmem>>, vector<1x4096xf32>
    %8 = vector.broadcast %7 : vector<1x4096xf32> to vector<8x4096xf32>
    %9 = arith.addf %6, %8 : vector<8x4096xf32>
    %cst_8 = arith.constant 0.000000e+00 : f32
    %10 = vector.broadcast %cst_8 : f32 to vector<8x4096xf32>
    %11 = arith.maximumf %9, %10 : vector<8x4096xf32>
    %c0_i32 = arith.constant 0 : i32
    %12 = arith.cmpi eq, %arg1, %c0_i32 : i32
    %13 = arith.extui %12 : i1 to i32
    %c0_i32_9 = arith.constant 0 : i32
    %14 = arith.cmpi ne, %13, %c0_i32_9 : i32
    scf.if %14 {
      %c0_22 = arith.constant 0 : index
      %c0_23 = arith.constant 0 : index
      %32 = vector.load %arg9[%c0_22, %c0_23] : memref<8x4096xf32, #tpu.memory_space<vmem>>, vector<8x4096xf32>
      tpu.vector_store %arg9[%c0_22, %c0_23], %11 {strides = array<i32>} : memref<8x4096xf32, #tpu.memory_space<vmem>>, vector<8x4096xf32>,
    } else {
    }
    %c0_i32_10 = arith.constant 0 : i32
    %15 = arith.cmpi sgt, %arg1, %c0_i32_10 : i32
    %16 = arith.extui %15 : i1 to i32
    %c0_i32_11 = arith.constant 0 : i32
    %17 = arith.cmpi ne, %16, %c0_i32_11 : i32
    scf.if %17 {
      %c0_22 = arith.constant 0 : index
      %c0_23 = arith.constant 0 : index
      %32 = vector.load %arg9[%c0_22, %c0_23] : memref<8x4096xf32, #tpu.memory_space<vmem>>, vector<8x4096xf32>
      %33 = arith.maximumf %32, %11 : vector<8x4096xf32>
      %c0_24 = arith.constant 0 : index
      %c0_25 = arith.constant 0 : index
      %34 = vector.load %arg9[%c0_24, %c0_25] : memref<8x4096xf32, #tpu.memory_space<vmem>>, vector<8x4096xf32>
      tpu.vector_store %arg9[%c0_24, %c0_25], %33 {strides = array<i32>} : memref<8x4096xf32, #tpu.memory_space<vmem>>, vector<8x4096xf32>,
    } else {
    }
    %18 = arith.index_cast %arg1 : i32 to index
    %c0_12 = arith.constant 0 : index
    %c0_13 = arith.constant 0 : index
    %19 = vector.load %arg6[%18, %c0_12, %c0_13] : memref<4x4096x128xbf16, #tpu.memory_space<vmem>>, vector<1x4096x128xbf16>
    %20 = vector.shape_cast %19 : vector<1x4096x128xbf16> to vector<4096x128xbf16>
    %21 = arith.index_cast %arg1 : i32 to index
    %c0_14 = arith.constant 0 : index
    %c0_15 = arith.constant 0 : index
    %22 = vector.load %arg7[%21, %c0_14, %c0_15] : memref<4x1x128xf32, #tpu.memory_space<vmem>>, vector<1x1x128xf32>
    %23 = vector.shape_cast %22 : vector<1x1x128xf32> to vector<1x128xf32>
    %c0_16 = arith.constant 0 : index
    %c0_17 = arith.constant 0 : index
    %24 = vector.load %arg9[%c0_16, %c0_17] : memref<8x4096xf32, #tpu.memory_space<vmem>>, vector<8x4096xf32>
    %25 = arith.truncf %24 : vector<8x4096xf32> to vector<8x4096xbf16>
    %cst_18 = arith.constant dense<0.000000e+00> : vector<8x128xf32>
    %26 = tpu.matmul %25, %20, %cst_18 {dimension_numbers = #tpu.dot_dimension_numbers<[1], [0], [0], [1], [0, 0, 1, 1], [], []>} : vector<8x4096xbf16>, vector<4096x128xbf16>, vector<8x128xf32> -> vector<8x128xf32>
    %27 = vector.broadcast %23 : vector<1x128xf32> to vector<8x128xf32>
    %28 = arith.addf %26, %27 : vector<8x128xf32>
    %c0_19 = arith.constant 0 : index
    %c0_20 = arith.constant 0 : index
    %c0_21 = arith.constant 0 : index
    %29 = vector.load %arg8[%c0_19, %c0_20, %c0_21] : memref<1x8x128xf32, #tpu.memory_space<vmem>>, vector<1x8x128xf32>
    %30 = vector.shape_cast %29 : vector<1x8x128xf32> to vector<8x128xf32>
    %31 = vector.shape_cast %28 : vector<8x128xf32> to vector<1x8x128xf32>
    tpu.vector_store %arg8[%c0_19, %c0_20, %c0_21], %31 {strides = array<i32>} : memref<1x8x128xf32, #tpu.memory_space<vmem>>, vector<1x8x128xf32>,
    return
  }
  func.func @transform_0(%arg0: i32, %arg1: i32) -> (i32, i32, i32) {
    %c0_i32 = arith.constant 0 : i32
    %c0_i32_0 = arith.constant 0 : i32
    return %arg1, %arg0, %c0_i32 : i32, i32, i32
  }
  func.func @transform_1(%arg0: i32, %arg1: i32) -> (i32, i32) {
    %c0_i32 = arith.constant 0 : i32
    %c0_i32_0 = arith.constant 0 : i32
    %c0_i32_1 = arith.constant 0 : i32
    return %c0_i32, %c0_i32_0 : i32, i32
  }
  func.func @transform_2(%arg0: i32, %arg1: i32) -> (i32, i32) {
    %c0_i32 = arith.constant 0 : i32
    %c0_i32_0 = arith.constant 0 : i32
    %c0_i32_1 = arith.constant 0 : i32
    return %c0_i32, %c0_i32_0 : i32, i32
  }
  func.func @transform_3(%arg0: i32, %arg1: i32) -> (i32, i32) {
    %c0_i32 = arith.constant 0 : i32
    %c0_i32_0 = arith.constant 0 : i32
    %c0_i32_1 = arith.constant 0 : i32
    return %c0_i32, %c0_i32_0 : i32, i32
  }
  func.func @transform_4(%arg0: i32, %arg1: i32) -> (i32, i32, i32) {
    %c0_i32 = arith.constant 0 : i32
    %c0_i32_0 = arith.constant 0 : i32
    %c0_i32_1 = arith.constant 0 : i32
    %c0_i32_2 = arith.constant 0 : i32
    return %c0_i32, %c0_i32_0, %c0_i32_1 : i32, i32, i32
  }
  func.func @transform_5(%arg0: i32, %arg1: i32) -> (i32, i32, i32) {
    %c0_i32 = arith.constant 0 : i32
    %c0_i32_0 = arith.constant 0 : i32
    %c0_i32_1 = arith.constant 0 : i32
    %c0_i32_2 = arith.constant 0 : i32
    return %c0_i32, %c0_i32_0, %c0_i32_1 : i32, i32, i32
  }
  func.func @transform_6(%arg0: i32, %arg1: i32) -> (i32, i32, i32) {
    %c0_i32 = arith.constant 0 : i32
    %c0_i32_0 = arith.constant 0 : i32
    return %arg1, %arg0, %c0_i32 : i32, i32, i32
  }
}

</mosaic_0001>

<llo_original>
// kernel: tpu_custom_call.1
$region0: #{tpu_custom_call.1}
  #allocation0 [shape = 'u32[]', space=smem, size = 0x4, offset = 0x4, fixed_abs, tag = 'smem constant byte address 0x4 - core index']
  #allocation1 [shape = 'u32[72,128]{1,0:T(1,128)}', space=vmem, size = 0x9000, scoped, tag = 'internal scratch']
  #allocation2 [shape = 'f32[8,4096]{1,0:T(8,128)}', space=vmem, size = 0x20000, scoped, tag = 'scratch operand']
  %s0 = inlined_call_operand.hbm [shape: bf16[4,8,32], index: 0, kind: input, shape index: {}]
  %s1 = inlined_call_operand.hbm [shape: bf16[32,4096], index: 1, kind: input, shape index: {}]
  %s2 = inlined_call_operand.hbm [shape: f32[1,4096], index: 2, kind: input, shape index: {}]
  %s3 = inlined_call_operand.hbm [shape: f32[1,4096], index: 3, kind: input, shape index: {}]
  %s4 = inlined_call_operand.hbm [shape: bf16[4,4096,128], index: 4, kind: input, shape index: {}]
  %s5 = inlined_call_operand.hbm [shape: f32[4,1,128], index: 5, kind: input, shape index: {}]
  %s6 = inlined_call_operand.hbm [shape: f32[4,8,128], index: 6, kind: output, shape index: {}]
  %s7 = sld [smem:[#allocation0]]
  $region89: #{tpu_custom_call.1} parent=0
    _
  %s9 = ssub.s32 1, %s7
  %s10 = scalar_select 0, %s9, %s7
  $region1: #{tpu_custom_call.1} parent=0
    #allocation3 [shape = 'u8[4096]{0}', space=vmem, size = 0x1000, scoped, tag = 'input window, operand 0']
    #allocation4 [shape = 's32[2]{0}', space=sflag, size = 0x8, scoped, tag = 'scoped memory for tpu_custom_call.1']
    #allocation5 [shape = 's32[2]{0}', space=sflag, size = 0x8, scoped, tag = 'scoped memory for tpu_custom_call.1']
    #allocation6 [shape = 'u8[262144]{0}', space=vmem, size = 0x40000, scoped, tag = 'input window, operand 1, single buffered']
    #allocation7 [shape = 's32[1]{0}', space=sflag, size = 0x4, scoped, tag = 'scoped memory for tpu_custom_call.1']
    #allocation8 [shape = 'u8[16384]{0}', space=vmem, size = 0x4000, scoped, tag = 'input window, operand 2, single buffered']
    #allocation9 [shape = 'u8[16384]{0}', space=vmem, size = 0x4000, scoped, tag = 'input window, operand 3, single buffered']
    #allocation10 [shape = 's32[1]{0}', space=sflag, size = 0x4, scoped, tag = 'scoped memory for tpu_custom_call.1']
    #allocation11 [shape = 'u8[4194304]{0}', space=vmem, size = 0x400000, scoped, tag = 'input window, operand 4, single buffered']
    #allocation12 [shape = 'u8[2048]{0}', space=vmem, size = 0x800, scoped, tag = 'input window, operand 5, single buffered']
    #allocation13 [shape = 's32[1]{0}', space=sflag, size = 0x4, scoped, tag = 'scoped memory for tpu_custom_call.1']
    #allocation14 [shape = 'u8[8192]{0}', space=vmem, size = 0x2000, scoped, tag = 'output window, operand 0']
    %11 = vsyncpa [#allocation4], 0
    %s12 = scalar_lea.sflag [#allocation4], 1
    %13 = vsyncpa %s12, 0
    %14 = vsyncpa [#allocation7], 0
    %15 = vsyncpa [#allocation10], 0
    %16 = vsyncpa [#allocation13], 0
    %17 = vsyncpa [#allocation5], 0
    %s18 = scalar_lea.sflag [#allocation5], 1
    %19 = vsyncpa %s18, 0
    loop: start=0, step=1, limit=6
    $region2: #{tpu_custom_call.1} parent=1 // loop_pre_header
      _
    $region3: #{tpu_custom_call.1} parent=1 // loop_header
      %s21 = sphi 0, %s25
      %p22 = scmp.ge.s32.totalorder %s21, 6
      %s28 = sphi 0, %s40
      %s29 = sphi 0, %s36
      %s30 = sphi 0, %s28
      %s31 = sphi 0, %s29
      %s32 = sphi 0, %s30
      %s33 = sphi 0, %s31
      %s45 = sphi 0, %s47
      %s48 = sphi 0, %s45
      %s49 = sphi 0, %s48
      %s65 = sphi 0, %s49
      %s69 = sphi 0, %s69
      %s71 = sphi 0, %s69
      %s72 = sphi 0, %s71
      %s86 = sphi 0, %s72
      %s90 = sphi 0, %s90
      %s92 = sphi 0, %s90
      %s93 = sphi 0, %s92
      %s107 = sphi 0, %s93
      %s111 = sphi 0, %s111
      %s113 = sphi 0, %s111
      %s114 = sphi 0, %s113
      %s128 = sphi 0, %s114
      %s132 = sphi 0, %s132
      %s134 = sphi 0, %s132
      %s135 = sphi 0, %s134
      %s149 = sphi 0, %s135
      %s153 = sphi 0, %s153
      %s155 = sphi 0, %s153
      %s156 = sphi 0, %s155
      %s170 = sphi 0, %s156
      %s178 = sphi 0, %s180
      %s181 = sphi 0, %s178
      %s182 = sphi 0, %s181
      %s198 = sphi 0, %s182
    $region4: #{tpu_custom_call.1} parent=1 // loop_header_branch
      %24 = sbr.rel (%p22) target = $region8
    $region5: #{tpu_custom_call.1} parent=1 // loop_body
      %s26 = ssub.s32 %s21, 1
      %s27 = ssub.s32 %s21, 2
      %s34 = sadd.s32 1, %s29
      %p35 = scmp.ge.s32.totalorder %s34, 4
      %s36 = scalar_select %p35, 0, %s34
      %s37 = sadd.s32 1, %s28
      %s38 = scalar_select %p35, %s37, %s28
      %p39 = scmp.ge.s32.totalorder %s38, 1
      %s40 = scalar_select %p39, 0, %s38
      %s41 = ssub.s32 %s29, %s36
      %s42 = ssub.s32 %s28, %s40
      %s43 = sor.u32 %s41, %s42
      %p44 = scmp.eq.s32.totalorder %s43, 0
      %s46 = sadd.s32 %s45, 1
      %s47 = scalar_select %p44, %s45, %s46
      %p50 = pneg %p44
      %p51 = scmp.eq.s32.totalorder %s21, 3
      %p52 = por %p50, %p51
      %p53 = scmp.ne.s32.totalorder %s45, %s48
      %p54 = scmp.eq.s32.totalorder %s21, 0
      %p55 = por %p53, %p54
      %p56 = scmp.ne.s32.totalorder %s45, %s48
      %p57 = scmp.eq.s32.totalorder %s26, 3
      %p58 = por %p56, %p57
      %p59 = scmp.ne.s32.totalorder %s48, %s49
      %p60 = scmp.eq.s32.totalorder %s26, 0
      %p61 = por %p59, %p60
      %p62 = scmp.ne.s32.totalorder %s48, %s49
      %p63 = scmp.eq.s32.totalorder %s27, 3
      %p64 = por %p62, %p63
      %p66 = scmp.ne.s32.totalorder %s49, %s65
      %p67 = scmp.eq.s32.totalorder %s27, 0
      %p68 = por %p66, %p67
      %s70 = sadd.s32 %s69, 1
      %p73 = scmp.eq.s32.totalorder %s21, 3
      %p74 = scmp.ne.s32.totalorder %s69, %s71
      %p75 = scmp.eq.s32.totalorder %s21, 0
      %p76 = por %p74, %p75
      %p77 = scmp.ne.s32.totalorder %s69, %s71
      %p78 = scmp.eq.s32.totalorder %s26, 3
      %p79 = por %p77, %p78
      %p80 = scmp.ne.s32.totalorder %s71, %s72
      %p81 = scmp.eq.s32.totalorder %s26, 0
      %p82 = por %p80, %p81
      %p83 = scmp.ne.s32.totalorder %s71, %s72
      %p84 = scmp.eq.s32.totalorder %s27, 3
      %p85 = por %p83, %p84
      %p87 = scmp.ne.s32.totalorder %s72, %s86
      %p88 = scmp.eq.s32.totalorder %s27, 0
      %p89 = por %p87, %p88
      %s91 = sadd.s32 %s90, 1
      %p94 = scmp.eq.s32.totalorder %s21, 3
      %p95 = scmp.ne.s32.totalorder %s90, %s92
      %p96 = scmp.eq.s32.totalorder %s21, 0
      %p97 = por %p95, %p96
      %p98 = scmp.ne.s32.totalorder %s90, %s92
      %p99 = scmp.eq.s32.totalorder %s26, 3
      %p100 = por %p98, %p99
      %p101 = scmp.ne.s32.totalorder %s92, %s93
      %p102 = scmp.eq.s32.totalorder %s26, 0
      %p103 = por %p101, %p102
      %p104 = scmp.ne.s32.totalorder %s92, %s93
      %p105 = scmp.eq.s32.totalorder %s27, 3
      %p106 = por %p104, %p105
      %p108 = scmp.ne.s32.totalorder %s93, %s107
      %p109 = scmp.eq.s32.totalorder %s27, 0
      %p110 = por %p108, %p109
      %s112 = sadd.s32 %s111, 1
      %p115 = scmp.eq.s32.totalorder %s21, 3
      %p116 = scmp.ne.s32.totalorder %s111, %s113
      %p117 = scmp.eq.s32.totalorder %s21, 0
      %p118 = por %p116, %p117
      %p119 = scmp.ne.s32.totalorder %s111, %s113
      %p120 = scmp.eq.s32.totalorder %s26, 3
      %p121 = por %p119, %p120
      %p122 = scmp.ne.s32.totalorder %s113, %s114
      %p123 = scmp.eq.s32.totalorder %s26, 0
      %p124 = por %p122, %p123
      %p125 = scmp.ne.s32.totalorder %s113, %s114
      %p126 = scmp.eq.s32.totalorder %s27, 3
      %p127 = por %p125, %p126
      %p129 = scmp.ne.s32.totalorder %s114, %s128
      %p130 = scmp.eq.s32.totalorder %s27, 0
      %p131 = por %p129, %p130
      %s133 = sadd.s32 %s132, 1
      %p136 = scmp.eq.s32.totalorder %s21, 3
      %p137 = scmp.ne.s32.totalorder %s132, %s134
      %p138 = scmp.eq.s32.totalorder %s21, 0
      %p139 = por %p137, %p138
      %p140 = scmp.ne.s32.totalorder %s132, %s134
      %p141 = scmp.eq.s32.totalorder %s26, 3
      %p142 = por %p140, %p141
      %p143 = scmp.ne.s32.totalorder %s134, %s135
      %p144 = scmp.eq.s32.totalorder %s26, 0
      %p145 = por %p143, %p144
      %p146 = scmp.ne.s32.totalorder %s134, %s135
      %p147 = scmp.eq.s32.totalorder %s27, 3
      %p148 = por %p146, %p147
      %p150 = scmp.ne.s32.totalorder %s135, %s149
      %p151 = scmp.eq.s32.totalorder %s27, 0
      %p152 = por %p150, %p151
      %s154 = sadd.s32 %s153, 1
      %p157 = scmp.eq.s32.totalorder %s21, 3
      %p158 = scmp.ne.s32.totalorder %s153, %s155
      %p159 = scmp.eq.s32.totalorder %s21, 0
      %p160 = por %p158, %p159
      %p161 = scmp.ne.s32.totalorder %s153, %s155
      %p162 = scmp.eq.s32.totalorder %s26, 3
      %p163 = por %p161, %p162
      %p164 = scmp.ne.s32.totalorder %s155, %s156
      %p165 = scmp.eq.s32.totalorder %s26, 0
      %p166 = por %p164, %p165
      %p167 = scmp.ne.s32.totalorder %s155, %s156
      %p168 = scmp.eq.s32.totalorder %s27, 3
      %p169 = por %p167, %p168
      %p171 = scmp.ne.s32.totalorder %s156, %s170
      %p172 = scmp.eq.s32.totalorder %s27, 0
      %p173 = por %p171, %p172
      %s174 = ssub.s32 %s29, %s36
      %s175 = ssub.s32 %s28, %s40
      %s176 = sor.u32 %s174, %s175
      %p177 = scmp.eq.s32.totalorder %s176, 0
      %s179 = sadd.s32 %s178, 1
      %s180 = scalar_select %p177, %s178, %s179
      %p183 = pneg %p177
      %p184 = scmp.eq.s32.totalorder %s21, 3
      %p185 = por %p183, %p184
      %p186 = scmp.ne.s32.totalorder %s178, %s181
      %p187 = scmp.eq.s32.totalorder %s21, 0
      %p188 = por %p186, %p187
      %p189 = scmp.ne.s32.totalorder %s178, %s181
      %p190 = scmp.eq.s32.totalorder %s26, 3
      %p191 = por %p189, %p190
      %p192 = scmp.ne.s32.totalorder %s181, %s182
      %p193 = scmp.eq.s32.totalorder %s26, 0
      %p194 = por %p192, %p193
      %p195 = scmp.ne.s32.totalorder %s181, %s182
      %p196 = scmp.eq.s32.totalorder %s27, 3
      %p197 = por %p195, %p196
      %p199 = scmp.ne.s32.totalorder %s182, %s198
      %p200 = scmp.eq.s32.totalorder %s27, 0
      %p201 = por %p199, %p200
      %p202 = scmp.le.s32.totalorder 1, %s21
      %p203 = scmp.lt.s32.totalorder %s21, 5
      %p204 = pnand %p202, %p203
      %p205 = pneg %p204
      // Predicated region
      $region9: #{tpu_custom_call.1} parent=5 // pred_check
        _
      $region10: #{tpu_custom_call.1} parent=5 // pred_check_branch
        %207 = sbr.rel (%p204) target = $region12
      $region11: #{tpu_custom_call.1} parent=5 // pred_region
        %s208 = ssub.s32 %s21, 1
        // Predicated region
        $region13: #{tpu_custom_call.1} parent=11 // pred_check
          %p209 = pneg %p82
        $region14: #{tpu_custom_call.1} parent=11 // pred_check_branch
          %211 = sbr.rel (%p209) target = $region16
        $region15: #{tpu_custom_call.1} parent=11 // pred_region
          %213 = vsyncadd [#allocation7], 0
          %s214 = sshll.u32 %s1, 4
          %s215 = int_to_ptr.hbm [resolvable:$true] %s214
          %s216 = sshll.u32 [#allocation6], 4
          %s217 = int_to_ptr.vmem [resolvable:$true] %s216
          %222 = dma.hbm_to_vmem [thread:$0]  %s215, 8192, %s217, [#allocation7], 2048, 2048, 128
        $region16: #{tpu_custom_call.1} parent=11 // pred_fallthru
          _
        // Predicated region
        $region17: #{tpu_custom_call.1} parent=11 // pred_check
          %p223 = pneg %p103
        $region18: #{tpu_custom_call.1} parent=11 // pred_check_branch
          %225 = sbr.rel (%p223) target = $region20
        $region19: #{tpu_custom_call.1} parent=11 // pred_region
          %227 = vsyncadd [#allocation7], 0
          %s229 = sshll.u32 %s2, 4
          %s230 = int_to_ptr.hbm [resolvable:$true] %s229
          %s231 = sshll.u32 [#allocation8], 4
          %s232 = int_to_ptr.vmem [resolvable:$true] %s231
          %234 = dma.hbm_to_vmem [thread:$0]  %s230, 512, %s232, [#allocation7]
        $region20: #{tpu_custom_call.1} parent=11 // pred_fallthru
          _
        // Predicated region
        $region21: #{tpu_custom_call.1} parent=11 // pred_check
          %p235 = pneg %p124
        $region22: #{tpu_custom_call.1} parent=11 // pred_check_branch
          %237 = sbr.rel (%p235) target = $region24
        $region23: #{tpu_custom_call.1} parent=11 // pred_region
          %239 = vsyncadd [#allocation10], 0
          %s241 = sshll.u32 %s3, 4
          %s242 = int_to_ptr.hbm [resolvable:$true] %s241
          %s243 = sshll.u32 [#allocation9], 4
          %s244 = int_to_ptr.vmem [resolvable:$true] %s243
          %246 = dma.hbm_to_vmem [thread:$0]  %s242, 512, %s244, [#allocation10]
        $region24: #{tpu_custom_call.1} parent=11 // pred_fallthru
          _
        // Predicated region
        $region25: #{tpu_custom_call.1} parent=11 // pred_check
          %p247 = pneg %p145
        $region26: #{tpu_custom_call.1} parent=11 // pred_check_branch
          %249 = sbr.rel (%p247) target = $region28
        $region27: #{tpu_custom_call.1} parent=11 // pred_region
          %251 = vsyncadd [#allocation10], 0
          %s252 = sshll.u32 %s4, 4
          %s253 = int_to_ptr.hbm [resolvable:$true] %s252
          %s254 = sshll.u32 [#allocation11], 4
          %s255 = int_to_ptr.vmem [resolvable:$true] %s254
          %260 = dma.hbm_to_vmem [thread:$0]  %s253, 131072, %s255, [#allocation10], 64, 64, 4
        $region28: #{tpu_custom_call.1} parent=11 // pred_fallthru
          _
        // Predicated region
        $region29: #{tpu_custom_call.1} parent=11 // pred_check
          %p261 = pneg %p166
        $region30: #{tpu_custom_call.1} parent=11 // pred_check_branch
          %263 = sbr.rel (%p261) target = $region32
        $region31: #{tpu_custom_call.1} parent=11 // pred_region
          %265 = vsyncadd [#allocation13], 0
          %s266 = sshll.u32 %s5, 4
          %s267 = int_to_ptr.hbm [resolvable:$true] %s266
          %s268 = sshll.u32 [#allocation12], 4
          %s269 = int_to_ptr.vmem [resolvable:$true] %s268
          %274 = dma.hbm_to_vmem [thread:$0]  %s267, 64, %s269, [#allocation13], 16, 16, 1
        $region32: #{tpu_custom_call.1} parent=11 // pred_fallthru
          _
      $region12: #{tpu_custom_call.1} parent=5 // pred_fallthru
        _
      %p275 = scmp.lt.s32.totalorder %s21, 4
      // Predicated region
      $region33: #{tpu_custom_call.1} parent=5 // pred_check
        %p276 = pneg %p275
      $region34: #{tpu_custom_call.1} parent=5 // pred_check_branch
        %278 = sbr.rel (%p276) target = $region36
      $region35: #{tpu_custom_call.1} parent=5 // pred_region
        // Predicated region
        $region37: #{tpu_custom_call.1} parent=35 // pred_check
          %p279 = pneg %p55
        $region38: #{tpu_custom_call.1} parent=35 // pred_check_branch
          %281 = sbr.rel (%p279) target = $region40
        $region39: #{tpu_custom_call.1} parent=35 // pred_region
          %s282 = sand.u32 %s45, 1
          %s283 = scalar_lea.sflag [#allocation4], %s282
          %s284 = sand.u32 %s45, 1
          %s285 = smul.addr %s284, 4
          %s286 = scalar_lea.vmem [#allocation3], %s285
          %288 = vsyncadd %s283, 0
          %s289 = sadd.s32 %s28, %s29
          %s290 = smul.addr %s289, 4
          %s291 = scalar_lea.hbm %s0, %s290
          %s293 = sshll.u32 %s291, 4
          %s294 = int_to_ptr.hbm [resolvable:$true] %s293
          %s295 = sshll.u32 %s286, 4
          %s296 = int_to_ptr.vmem [resolvable:$true] %s295
          %298 = dma.hbm_to_vmem [thread:$0]  %s294, 64, %s296, %s283
        $region40: #{tpu_custom_call.1} parent=35 // pred_fallthru
          _
      $region36: #{tpu_custom_call.1} parent=5 // pred_fallthru
        _
      %p299 = scmp.le.s32.totalorder 1, %s21
      %p300 = scmp.lt.s32.totalorder %s21, 5
      %p301 = pnand %p299, %p300
      %p302 = pneg %p301
      // Predicated region
      $region41: #{tpu_custom_call.1} parent=5 // pred_check
        _
      $region42: #{tpu_custom_call.1} parent=5 // pred_check_branch
        %304 = sbr.rel (%p301) target = $region44
      $region43: #{tpu_custom_call.1} parent=5 // pred_region
        %s305 = ssub.s32 %s21, 1
        %s306 = sand.u32 %s48, 1
        %s307 = scalar_lea.sflag [#allocation4], %s306
        %s308 = sand.u32 %s48, 1
        %s309 = smul.addr %s308, 4
        %s310 = scalar_lea.vmem [#allocation3], %s309
        // Predicated region
        $region45: #{tpu_custom_call.1} parent=43 // pred_check
          %p311 = pneg %p61
        $region46: #{tpu_custom_call.1} parent=43 // pred_check_branch
          %313 = sbr.rel (%p311) target = $region48
        $region47: #{tpu_custom_call.1} parent=43 // pred_region
          %315 = dma.done %s307, 64
        $region48: #{tpu_custom_call.1} parent=43 // pred_fallthru
          _
        // Predicated region
        $region49: #{tpu_custom_call.1} parent=43 // pred_check
          %p316 = pneg %p82
        $region50: #{tpu_custom_call.1} parent=43 // pred_check_branch
          %318 = sbr.rel (%p316) target = $region52
        $region51: #{tpu_custom_call.1} parent=43 // pred_region
          %320 = dma.done [#allocation7], 8192
        $region52: #{tpu_custom_call.1} parent=43 // pred_fallthru
          _
        // Predicated region
        $region53: #{tpu_custom_call.1} parent=43 // pred_check
          %p321 = pneg %p103
        $region54: #{tpu_custom_call.1} parent=43 // pred_check_branch
          %323 = sbr.rel (%p321) target = $region56
        $region55: #{tpu_custom_call.1} parent=43 // pred_region
          %325 = dma.done [#allocation7], 512
        $region56: #{tpu_custom_call.1} parent=43 // pred_fallthru
          _
        // Predicated region
        $region57: #{tpu_custom_call.1} parent=43 // pred_check
          %p326 = pneg %p124
        $region58: #{tpu_custom_call.1} parent=43 // pred_check_branch
          %328 = sbr.rel (%p326) target = $region60
        $region59: #{tpu_custom_call.1} parent=43 // pred_region
          %330 = dma.done [#allocation10], 512
        $region60: #{tpu_custom_call.1} parent=43 // pred_fallthru
          _
        // Predicated region
        $region61: #{tpu_custom_call.1} parent=43 // pred_check
          %p331 = pneg %p145
        $region62: #{tpu_custom_call.1} parent=43 // pred_check_branch
          %333 = sbr.rel (%p331) target = $region64
        $region63: #{tpu_custom_call.1} parent=43 // pred_region
          %335 = dma.done [#allocation10], 131072
        $region64: #{tpu_custom_call.1} parent=43 // pred_fallthru
          _
        // Predicated region
        $region65: #{tpu_custom_call.1} parent=43 // pred_check
          %p336 = pneg %p166
        $region66: #{tpu_custom_call.1} parent=43 // pred_check_branch
          %338 = sbr.rel (%p336) target = $region68
        $region67: #{tpu_custom_call.1} parent=43 // pred_region
          %340 = dma.done [#allocation13], 64
        $region68: #{tpu_custom_call.1} parent=43 // pred_fallthru
          _
        %s341 = sand.u32 %s48, 1
        %s342 = scalar_lea.sflag [#allocation4], %s341
        %s343 = sand.u32 %s48, 1
        %s344 = smul.addr %s343, 4
        %s345 = scalar_lea.vmem [#allocation3], %s344
        %p346 = pneg %p61
        %p347 = pneg %p58
        %p348 = pneg %p82
        %p349 = pneg %p79
        %p350 = pneg %p103
        %p351 = pneg %p100
        %p352 = pneg %p124
        %p353 = pneg %p121
        %p354 = pneg %p145
        %p355 = pneg %p142
        %p356 = pneg %p166
        %p357 = pneg %p163
        %p358 = pneg %p194
        %p359 = pneg %p191
        %s360 = sand.u32 %s181, 1
        %s361 = scalar_lea.sflag [#allocation5], %s360
        %s362 = sand.u32 %s181, 1
        %s363 = smul.addr %s362, 8
        %s364 = scalar_lea.vmem [#allocation14], %s363
        %v366 = vld [vmem:[%s310] sm:$0xf]
        %v367 = vld [vmem:[#allocation6] sm:$0xff]
        %v368 = vld [vmem:[#allocation6 + $0x8] sm:$0xff]
        %v369 = vld [vmem:[#allocation6 + $0x10] sm:$0xff]
        %v370 = vld [vmem:[#allocation6 + $0x18] sm:$0xff]
        %v371 = vld [vmem:[#allocation6 + $0x20] sm:$0xff]
        %v372 = vld [vmem:[#allocation6 + $0x28] sm:$0xff]
        %v373 = vld [vmem:[#allocation6 + $0x30] sm:$0xff]
        %v374 = vld [vmem:[#allocation6 + $0x38] sm:$0xff]
        %v375 = vld [vmem:[#allocation6 + $0x40] sm:$0xff]
        %v376 = vld [vmem:[#allocation6 + $0x48] sm:$0xff]
        %v377 = vld [vmem:[#allocation6 + $0x50] sm:$0xff]
        %v378 = vld [vmem:[#allocation6 + $0x58] sm:$0xff]
        %v379 = vld [vmem:[#allocation6 + $0x60] sm:$0xff]
        %v380 = vld [vmem:[#allocation6 + $0x68] sm:$0xff]
        %v381 = vld [vmem:[#allocation6 + $0x70] sm:$0xff]
        %v382 = vld [vmem:[#allocation6 + $0x78] sm:$0xff]
        %v383 = vld [vmem:[#allocation6 + $0x80] sm:$0xff]
        %v384 = vld [vmem:[#allocation6 + $0x88] sm:$0xff]
        %v385 = vld [vmem:[#allocation6 + $0x90] sm:$0xff]
        %v386 = vld [vmem:[#allocation6 + $0x98] sm:$0xff]
        %v387 = vld [vmem:[#allocation6 + $0xa0] sm:$0xff]
        %v388 = vld [vmem:[#allocation6 + $0xa8] sm:$0xff]
        %v389 = vld [vmem:[#allocation6 + $0xb0] sm:$0xff]
        %v390 = vld [vmem:[#allocation6 + $0xb8] sm:$0xff]
        %v391 = vld [vmem:[#allocation6 + $0xc0] sm:$0xff]
        %v392 = vld [vmem:[#allocation6 + $0xc8] sm:$0xff]
        %v393 = vld [vmem:[#allocation6 + $0xd0] sm:$0xff]
        %v394 = vld [vmem:[#allocation6 + $0xd8] sm:$0xff]
        %v395 = vld [vmem:[#allocation6 + $0xe0] sm:$0xff]
        %v396 = vld [vmem:[#allocation6 + $0xe8] sm:$0xff]
        %v397 = vld [vmem:[#allocation6 + $0xf0] sm:$0xff]
        %v398 = vld [vmem:[#allocation6 + $0xf8] sm:$0xff]
        %v399 = vld [vmem:[#allocation6 + $0x100] sm:$0xff]
        %v400 = vld [vmem:[#allocation6 + $0x108] sm:$0xff]
        %v401 = vld [vmem:[#allocation6 + $0x110] sm:$0xff]
        %v402 = vld [vmem:[#allocation6 + $0x118] sm:$0xff]
        %v403 = vld [vmem:[#allocation6 + $0x120] sm:$0xff]
        %v404 = vld [vmem:[#allocation6 + $0x128] sm:$0xff]
        %v405 = vld [vmem:[#allocation6 + $0x130] sm:$0xff]
        %v406 = vld [vmem:[#allocation6 + $0x138] sm:$0xff]
        %v407 = vld [vmem:[#allocation6 + $0x140] sm:$0xff]
        %v408 = vld [vmem:[#allocation6 + $0x148] sm:$0xff]
        %v409 = vld [vmem:[#allocation6 + $0x150] sm:$0xff]
        %v410 = vld [vmem:[#allocation6 + $0x158] sm:$0xff]
        %v411 = vld [vmem:[#allocation6 + $0x160] sm:$0xff]
        %v412 = vld [vmem:[#allocation6 + $0x168] sm:$0xff]
        %v413 = vld [vmem:[#allocation6 + $0x170] sm:$0xff]
        %v414 = vld [vmem:[#allocation6 + $0x178] sm:$0xff]
        %v415 = vld [vmem:[#allocation6 + $0x180] sm:$0xff]
        %v416 = vld [vmem:[#allocation6 + $0x188] sm:$0xff]
        %v417 = vld [vmem:[#allocation6 + $0x190] sm:$0xff]
        %v418 = vld [vmem:[#allocation6 + $0x198] sm:$0xff]
        %v419 = vld [vmem:[#allocation6 + $0x1a0] sm:$0xff]
        %v420 = vld [vmem:[#allocation6 + $0x1a8] sm:$0xff]
        %v421 = vld [vmem:[#allocation6 + $0x1b0] sm:$0xff]
        %v422 = vld [vmem:[#allocation6 + $0x1b8] sm:$0xff]
        %v423 = vld [vmem:[#allocation6 + $0x1c0] sm:$0xff]
        %v424 = vld [vmem:[#allocation6 + $0x1c8] sm:$0xff]
        %v425 = vld [vmem:[#allocation6 + $0x1d0] sm:$0xff]
        %v426 = vld [vmem:[#allocation6 + $0x1d8] sm:$0xff]
        %v427 = vld [vmem:[#allocation6 + $0x1e0] sm:$0xff]
        %v428 = vld [vmem:[#allocation6 + $0x1e8] sm:$0xff]
        %v429 = vld [vmem:[#allocation6 + $0x1f0] sm:$0xff]
        %v430 = vld [vmem:[#allocation6 + $0x1f8] sm:$0xff]
        %v495 = vunpack.c.l.b16 %v367
        %v496 = vunpack.c.h.b16 %v367
        %v497 = vunpack.c.l.b16 %v368
        %v498 = vunpack.c.h.b16 %v368
        %v499 = vunpack.c.l.b16 %v369
        %v500 = vunpack.c.h.b16 %v369
        %v501 = vunpack.c.l.b16 %v370
        %v502 = vunpack.c.h.b16 %v370
        %v503 = vunpack.c.l.b16 %v371
        %v504 = vunpack.c.h.b16 %v371
        %v505 = vunpack.c.l.b16 %v372
        %v506 = vunpack.c.h.b16 %v372
        %v507 = vunpack.c.l.b16 %v373
        %v508 = vunpack.c.h.b16 %v373
        %v509 = vunpack.c.l.b16 %v374
        %v510 = vunpack.c.h.b16 %v374
        %v511 = vunpack.c.l.b16 %v375
        %v512 = vunpack.c.h.b16 %v375
        %v513 = vunpack.c.l.b16 %v376
        %v514 = vunpack.c.h.b16 %v376
        %v515 = vunpack.c.l.b16 %v377
        %v516 = vunpack.c.h.b16 %v377
        %v517 = vunpack.c.l.b16 %v378
        %v518 = vunpack.c.h.b16 %v378
        %v519 = vunpack.c.l.b16 %v379
        %v520 = vunpack.c.h.b16 %v379
        %v521 = vunpack.c.l.b16 %v380
        %v522 = vunpack.c.h.b16 %v380
        %v523 = vunpack.c.l.b16 %v381
        %v524 = vunpack.c.h.b16 %v381
        %v525 = vunpack.c.l.b16 %v382
        %v526 = vunpack.c.h.b16 %v382
        %v527 = vunpack.c.l.b16 %v383
        %v528 = vunpack.c.h.b16 %v383
        %v529 = vunpack.c.l.b16 %v384
        %v530 = vunpack.c.h.b16 %v384
        %v531 = vunpack.c.l.b16 %v385
        %v532 = vunpack.c.h.b16 %v385
        %v533 = vunpack.c.l.b16 %v386
        %v534 = vunpack.c.h.b16 %v386
        %v535 = vunpack.c.l.b16 %v387
        %v536 = vunpack.c.h.b16 %v387
        %v537 = vunpack.c.l.b16 %v388
        %v538 = vunpack.c.h.b16 %v388
        %v539 = vunpack.c.l.b16 %v389
        %v540 = vunpack.c.h.b16 %v389
        %v541 = vunpack.c.l.b16 %v390
        %v542 = vunpack.c.h.b16 %v390
        %v543 = vunpack.c.l.b16 %v391
        %v544 = vunpack.c.h.b16 %v391
        %v545 = vunpack.c.l.b16 %v392
        %v546 = vunpack.c.h.b16 %v392
        %v547 = vunpack.c.l.b16 %v393
        %v548 = vunpack.c.h.b16 %v393
        %v549 = vunpack.c.l.b16 %v394
        %v550 = vunpack.c.h.b16 %v394
        %v551 = vunpack.c.l.b16 %v395
        %v552 = vunpack.c.h.b16 %v395
        %v553 = vunpack.c.l.b16 %v396
        %v554 = vunpack.c.h.b16 %v396
        %v555 = vunpack.c.l.b16 %v397
        %v556 = vunpack.c.h.b16 %v397
        %v557 = vunpack.c.l.b16 %v398
        %v558 = vunpack.c.h.b16 %v398
        %v559 = vunpack.c.l.b16 %v399
        %v560 = vunpack.c.h.b16 %v399
        %v561 = vunpack.c.l.b16 %v400
        %v562 = vunpack.c.h.b16 %v400
        %v563 = vunpack.c.l.b16 %v401
        %v564 = vunpack.c.h.b16 %v401
        %v565 = vunpack.c.l.b16 %v402
        %v566 = vunpack.c.h.b16 %v402
        %v567 = vunpack.c.l.b16 %v403
        %v568 = vunpack.c.h.b16 %v403
        %v569 = vunpack.c.l.b16 %v404
        %v570 = vunpack.c.h.b16 %v404
        %v571 = vunpack.c.l.b16 %v405
        %v572 = vunpack.c.h.b16 %v405
        %v573 = vunpack.c.l.b16 %v406
        %v574 = vunpack.c.h.b16 %v406
        %v575 = vunpack.c.l.b16 %v407
        %v576 = vunpack.c.h.b16 %v407
        %v577 = vunpack.c.l.b16 %v408
        %v578 = vunpack.c.h.b16 %v408
        %v579 = vunpack.c.l.b16 %v409
        %v580 = vunpack.c.h.b16 %v409
        %v581 = vunpack.c.l.b16 %v410
        %v582 = vunpack.c.h.b16 %v410
        %v583 = vunpack.c.l.b16 %v411
        %v584 = vunpack.c.h.b16 %v411
        %v585 = vunpack.c.l.b16 %v412
        %v586 = vunpack.c.h.b16 %v412
        %v587 = vunpack.c.l.b16 %v413
        %v588 = vunpack.c.h.b16 %v413
        %v589 = vunpack.c.l.b16 %v414
        %v590 = vunpack.c.h.b16 %v414
        %v591 = vunpack.c.l.b16 %v415
        %v592 = vunpack.c.h.b16 %v415
        %v593 = vunpack.c.l.b16 %v416
        %v594 = vunpack.c.h.b16 %v416
        %v595 = vunpack.c.l.b16 %v417
        %v596 = vunpack.c.h.b16 %v417
        %v597 = vunpack.c.l.b16 %v418
        %v598 = vunpack.c.h.b16 %v418
        %v599 = vunpack.c.l.b16 %v419
        %v600 = vunpack.c.h.b16 %v419
        %v601 = vunpack.c.l.b16 %v420
        %v602 = vunpack.c.h.b16 %v420
        %v603 = vunpack.c.l.b16 %v421
        %v604 = vunpack.c.h.b16 %v421
        %v605 = vunpack.c.l.b16 %v422
        %v606 = vunpack.c.h.b16 %v422
        %v607 = vunpack.c.l.b16 %v423
        %v608 = vunpack.c.h.b16 %v423
        %v609 = vunpack.c.l.b16 %v424
        %v610 = vunpack.c.h.b16 %v424
        %v611 = vunpack.c.l.b16 %v425
        %v612 = vunpack.c.h.b16 %v425
        %v613 = vunpack.c.l.b16 %v426
        %v614 = vunpack.c.h.b16 %v426
        %v615 = vunpack.c.l.b16 %v427
        %v616 = vunpack.c.h.b16 %v427
        %v617 = vunpack.c.l.b16 %v428
        %v618 = vunpack.c.h.b16 %v428
        %v619 = vunpack.c.l.b16 %v429
        %v620 = vunpack.c.h.b16 %v429
        %v621 = vunpack.c.l.b16 %v430
        %v622 = vunpack.c.h.b16 %v430
        %v623 = vpack.c.b16 %v527, %v495
        %v624 = vpack.c.b16 %v528, %v496
        %v625 = vpack.c.b16 %v529, %v497
        %v626 = vpack.c.b16 %v530, %v498
        %v627 = vpack.c.b16 %v531, %v499
        %v628 = vpack.c.b16 %v532, %v500
        %v629 = vpack.c.b16 %v533, %v501
        %v630 = vpack.c.b16 %v534, %v502
        %v631 = vpack.c.b16 %v535, %v503
        %v632 = vpack.c.b16 %v536, %v504
        %v633 = vpack.c.b16 %v537, %v505
        %v634 = vpack.c.b16 %v538, %v506
        %v635 = vpack.c.b16 %v539, %v507
        %v636 = vpack.c.b16 %v540, %v508
        %v637 = vpack.c.b16 %v541, %v509
        %v638 = vpack.c.b16 %v542, %v510
        %v639 = vpack.c.b16 %v543, %v511
        %v640 = vpack.c.b16 %v544, %v512
        %v641 = vpack.c.b16 %v545, %v513
        %v642 = vpack.c.b16 %v546, %v514
        %v643 = vpack.c.b16 %v547, %v515
        %v644 = vpack.c.b16 %v548, %v516
        %v645 = vpack.c.b16 %v549, %v517
        %v646 = vpack.c.b16 %v550, %v518
        %v647 = vpack.c.b16 %v551, %v519
        %v648 = vpack.c.b16 %v552, %v520
        %v649 = vpack.c.b16 %v553, %v521
        %v650 = vpack.c.b16 %v554, %v522
        %v651 = vpack.c.b16 %v555, %v523
        %v652 = vpack.c.b16 %v556, %v524
        %v653 = vpack.c.b16 %v557, %v525
        %v654 = vpack.c.b16 %v558, %v526
        %v655 = vpack.c.b16 %v591, %v559
        %v656 = vpack.c.b16 %v592, %v560
        %v657 = vpack.c.b16 %v593, %v561
        %v658 = vpack.c.b16 %v594, %v562
        %v659 = vpack.c.b16 %v595, %v563
        %v660 = vpack.c.b16 %v596, %v564
        %v661 = vpack.c.b16 %v597, %v565
        %v662 = vpack.c.b16 %v598, %v566
        %v663 = vpack.c.b16 %v599, %v567
        %v664 = vpack.c.b16 %v600, %v568
        %v665 = vpack.c.b16 %v601, %v569
        %v666 = vpack.c.b16 %v602, %v570
        %v667 = vpack.c.b16 %v603, %v571
        %v668 = vpack.c.b16 %v604, %v572
        %v669 = vpack.c.b16 %v605, %v573
        %v670 = vpack.c.b16 %v606, %v574
        %v671 = vpack.c.b16 %v607, %v575
        %v672 = vpack.c.b16 %v608, %v576
        %v673 = vpack.c.b16 %v609, %v577
        %v674 = vpack.c.b16 %v610, %v578
        %v675 = vpack.c.b16 %v611, %v579
        %v676 = vpack.c.b16 %v612, %v580
        %v677 = vpack.c.b16 %v613, %v581
        %v678 = vpack.c.b16 %v614, %v582
        %v679 = vpack.c.b16 %v615, %v583
        %v680 = vpack.c.b16 %v616, %v584
        %v681 = vpack.c.b16 %v617, %v585
        %v682 = vpack.c.b16 %v618, %v586
        %v683 = vpack.c.b16 %v619, %v587
        %v684 = vpack.c.b16 %v620, %v588
        %v685 = vpack.c.b16 %v621, %v589
        %v686 = vpack.c.b16 %v622, %v590
        %vm751 = vcmask 261120
        %v753 = vsel %vm751, %v366, 0
        %755 = vmatpush.bf16.msra.mxu0 0
        %756 = vmatpush.bf16.msra.mxu0 0
        %757 = vmatpush.bf16.msra.mxu0 0
        %758 = vmatpush.bf16.msra.mxu0 0
        %759 = vmatpush.bf16.msra.mxu0 0
        %760 = vmatpush.bf16.msra.mxu0 0
        %761 = vmatpush.bf16.msra.mxu0 %v655
        %762 = vmatpush.bf16.msra.mxu0 %v623
        %763 = vmatmul.bf16.gmra.mxu0 %v753
        %v764 = vpop.f32.mrf.mxu0
        %v765 = vadd.f32 0.0, %v764
        %v766 = vpop.f32.mrf.mxu0
        %767 = vdwg.mxu0
        %768 = vmatpush.bf16.msra.mxu0 0
        %769 = vmatpush.bf16.msra.mxu0 0
        %770 = vmatpush.bf16.msra.mxu0 0
        %771 = vmatpush.bf16.msra.mxu0 0
        %772 = vmatpush.bf16.msra.mxu0 0
        %773 = vmatpush.bf16.msra.mxu0 0
        %774 = vmatpush.bf16.msra.mxu0 %v656
        %775 = vmatpush.bf16.msra.mxu0 %v624
        %776 = vmatmul.bf16.gmra.mxu0 %v753
        %v777 = vpop.f32.mrf.mxu0
        %v778 = vadd.f32 0.0, %v777
        %v779 = vpop.f32.mrf.mxu0
        %780 = vdwg.mxu0
        %781 = vmatpush.bf16.msra.mxu0 0
        %782 = vmatpush.bf16.msra.mxu0 0
        %783 = vmatpush.bf16.msra.mxu0 0
        %784 = vmatpush.bf16.msra.mxu0 0
        %785 = vmatpush.bf16.msra.mxu0 0
        %786 = vmatpush.bf16.msra.mxu0 0
        %787 = vmatpush.bf16.msra.mxu0 %v657
        %788 = vmatpush.bf16.msra.mxu0 %v625
        %789 = vmatmul.bf16.gmra.mxu0 %v753
        %v790 = vpop.f32.mrf.mxu0
        %v791 = vadd.f32 0.0, %v790
        %v792 = vpop.f32.mrf.mxu0
        %793 = vdwg.mxu0
        %794 = vmatpush.bf16.msra.mxu0 0
        %795 = vmatpush.bf16.msra.mxu0 0
        %796 = vmatpush.bf16.msra.mxu0 0
        %797 = vmatpush.bf16.msra.mxu0 0
        %798 = vmatpush.bf16.msra.mxu0 0
        %799 = vmatpush.bf16.msra.mxu0 0
        %800 = vmatpush.bf16.msra.mxu0 %v658
        %801 = vmatpush.bf16.msra.mxu0 %v626
        %802 = vmatmul.bf16.gmra.mxu0 %v753
        %v803 = vpop.f32.mrf.mxu0
        %v804 = vadd.f32 0.0, %v803
        %v805 = vpop.f32.mrf.mxu0
        %806 = vdwg.mxu0
        %807 = vmatpush.bf16.msra.mxu0 0
        %808 = vmatpush.bf16.msra.mxu0 0
        %809 = vmatpush.bf16.msra.mxu0 0
        %810 = vmatpush.bf16.msra.mxu0 0
        %811 = vmatpush.bf16.msra.mxu0 0
        %812 = vmatpush.bf16.msra.mxu0 0
        %813 = vmatpush.bf16.msra.mxu0 %v659
        %814 = vmatpush.bf16.msra.mxu0 %v627
        %815 = vmatmul.bf16.gmra.mxu0 %v753
        %v816 = vpop.f32.mrf.mxu0
        %v817 = vadd.f32 0.0, %v816
        %v818 = vpop.f32.mrf.mxu0
        %819 = vdwg.mxu0
        %820 = vmatpush.bf16.msra.mxu0 0
        %821 = vmatpush.bf16.msra.mxu0 0
        %822 = vmatpush.bf16.msra.mxu0 0
        %823 = vmatpush.bf16.msra.mxu0 0
        %824 = vmatpush.bf16.msra.mxu0 0
        %825 = vmatpush.bf16.msra.mxu0 0
        %826 = vmatpush.bf16.msra.mxu0 %v660
        %827 = vmatpush.bf16.msra.mxu0 %v628
        %828 = vmatmul.bf16.gmra.mxu0 %v753
        %v829 = vpop.f32.mrf.mxu0
        %v830 = vadd.f32 0.0, %v829
        %v831 = vpop.f32.mrf.mxu0
        %832 = vdwg.mxu0
        %833 = vmatpush.bf16.msra.mxu0 0
        %834 = vmatpush.bf16.msra.mxu0 0
        %835 = vmatpush.bf16.msra.mxu0 0
        %836 = vmatpush.bf16.msra.mxu0 0
        %837 = vmatpush.bf16.msra.mxu0 0
        %838 = vmatpush.bf16.msra.mxu0 0
        %839 = vmatpush.bf16.msra.mxu0 %v661
        %840 = vmatpush.bf16.msra.mxu0 %v629
        %841 = vmatmul.bf16.gmra.mxu0 %v753
        %v842 = vpop.f32.mrf.mxu0
        %v843 = vadd.f32 0.0, %v842
        %v844 = vpop.f32.mrf.mxu0
        %845 = vdwg.mxu0
        %846 = vmatpush.bf16.msra.mxu0 0
        %847 = vmatpush.bf16.msra.mxu0 0
        %848 = vmatpush.bf16.msra.mxu0 0
        %849 = vmatpush.bf16.msra.mxu0 0
        %850 = vmatpush.bf16.msra.mxu0 0
        %851 = vmatpush.bf16.msra.mxu0 0
        %852 = vmatpush.bf16.msra.mxu0 %v662
        %853 = vmatpush.bf16.msra.mxu0 %v630
        %854 = vmatmul.bf16.gmra.mxu0 %v753
        %v855 = vpop.f32.mrf.mxu0
        %v856 = vadd.f32 0.0, %v855
        %v857 = vpop.f32.mrf.mxu0
        %858 = vdwg.mxu0
        %859 = vmatpush.bf16.msra.mxu0 0
        %860 = vmatpush.bf16.msra.mxu0 0
        %861 = vmatpush.bf16.msra.mxu0 0
        %862 = vmatpush.bf16.msra.mxu0 0
        %863 = vmatpush.bf16.msra.mxu0 0
        %864 = vmatpush.bf16.msra.mxu0 0
        %865 = vmatpush.bf16.msra.mxu0 %v663
        %866 = vmatpush.bf16.msra.mxu0 %v631
        %867 = vmatmul.bf16.gmra.mxu0 %v753
        %v868 = vpop.f32.mrf.mxu0
        %v869 = vadd.f32 0.0, %v868
        %v870 = vpop.f32.mrf.mxu0
        %871 = vdwg.mxu0
        %872 = vmatpush.bf16.msra.mxu0 0
        %873 = vmatpush.bf16.msra.mxu0 0
        %874 = vmatpush.bf16.msra.mxu0 0
        %875 = vmatpush.bf16.msra.mxu0 0
        %876 = vmatpush.bf16.msra.mxu0 0
        %877 = vmatpush.bf16.msra.mxu0 0
        %878 = vmatpush.bf16.msra.mxu0 %v664
        %879 = vmatpush.bf16.msra.mxu0 %v632
        %880 = vmatmul.bf16.gmra.mxu0 %v753
        %v881 = vpop.f32.mrf.mxu0
        %v882 = vadd.f32 0.0, %v881
        %v883 = vpop.f32.mrf.mxu0
        %884 = vdwg.mxu0
        %885 = vmatpush.bf16.msra.mxu0 0
        %886 = vmatpush.bf16.msra.mxu0 0
        %887 = vmatpush.bf16.msra.mxu0 0
        %888 = vmatpush.bf16.msra.mxu0 0
        %889 = vmatpush.bf16.msra.mxu0 0
        %890 = vmatpush.bf16.msra.mxu0 0
        %891 = vmatpush.bf16.msra.mxu0 %v665
        %892 = vmatpush.bf16.msra.mxu0 %v633
        %893 = vmatmul.bf16.gmra.mxu0 %v753
        %v894 = vpop.f32.mrf.mxu0
        %v895 = vadd.f32 0.0, %v894
        %v896 = vpop.f32.mrf.mxu0
        %897 = vdwg.mxu0
        %898 = vmatpush.bf16.msra.mxu0 0
        %899 = vmatpush.bf16.msra.mxu0 0
        %900 = vmatpush.bf16.msra.mxu0 0
        %901 = vmatpush.bf16.msra.mxu0 0
        %902 = vmatpush.bf16.msra.mxu0 0
        %903 = vmatpush.bf16.msra.mxu0 0
        %904 = vmatpush.bf16.msra.mxu0 %v666
        %905 = vmatpush.bf16.msra.mxu0 %v634
        %906 = vmatmul.bf16.gmra.mxu0 %v753
        %v907 = vpop.f32.mrf.mxu0
        %v908 = vadd.f32 0.0, %v907
        %v909 = vpop.f32.mrf.mxu0
        %910 = vdwg.mxu0
        %911 = vmatpush.bf16.msra.mxu0 0
        %912 = vmatpush.bf16.msra.mxu0 0
        %913 = vmatpush.bf16.msra.mxu0 0
        %914 = vmatpush.bf16.msra.mxu0 0
        %915 = vmatpush.bf16.msra.mxu0 0
        %916 = vmatpush.bf16.msra.mxu0 0
        %917 = vmatpush.bf16.msra.mxu0 %v667
        %918 = vmatpush.bf16.msra.mxu0 %v635
        %919 = vmatmul.bf16.gmra.mxu0 %v753
        %v920 = vpop.f32.mrf.mxu0
        %v921 = vadd.f32 0.0, %v920
        %v922 = vpop.f32.mrf.mxu0
        %923 = vdwg.mxu0
        %924 = vmatpush.bf16.msra.mxu0 0
        %925 = vmatpush.bf16.msra.mxu0 0
        %926 = vmatpush.bf16.msra.mxu0 0
        %927 = vmatpush.bf16.msra.mxu0 0
        %928 = vmatpush.bf16.msra.mxu0 0
        %929 = vmatpush.bf16.msra.mxu0 0
        %930 = vmatpush.bf16.msra.mxu0 %v668
        %931 = vmatpush.bf16.msra.mxu0 %v636
        %932 = vmatmul.bf16.gmra.mxu0 %v753
        %v933 = vpop.f32.mrf.mxu0
        %v934 = vadd.f32 0.0, %v933
        %v935 = vpop.f32.mrf.mxu0
        %936 = vdwg.mxu0
        %937 = vmatpush.bf16.msra.mxu0 0
        %938 = vmatpush.bf16.msra.mxu0 0
        %939 = vmatpush.bf16.msra.mxu0 0
        %940 = vmatpush.bf16.msra.mxu0 0
        %941 = vmatpush.bf16.msra.mxu0 0
        %942 = vmatpush.bf16.msra.mxu0 0
        %943 = vmatpush.bf16.msra.mxu0 %v669
        %944 = vmatpush.bf16.msra.mxu0 %v637
        %945 = vmatmul.bf16.gmra.mxu0 %v753
        %v946 = vpop.f32.mrf.mxu0
        %v947 = vadd.f32 0.0, %v946
        %v948 = vpop.f32.mrf.mxu0
        %949 = vdwg.mxu0
        %950 = vmatpush.bf16.msra.mxu0 0
        %951 = vmatpush.bf16.msra.mxu0 0
        %952 = vmatpush.bf16.msra.mxu0 0
        %953 = vmatpush.bf16.msra.mxu0 0
        %954 = vmatpush.bf16.msra.mxu0 0
        %955 = vmatpush.bf16.msra.mxu0 0
        %956 = vmatpush.bf16.msra.mxu0 %v670
        %957 = vmatpush.bf16.msra.mxu0 %v638
        %958 = vmatmul.bf16.gmra.mxu0 %v753
        %v959 = vpop.f32.mrf.mxu0
        %v960 = vadd.f32 0.0, %v959
        %v961 = vpop.f32.mrf.mxu0
        %962 = vdwg.mxu0
        %963 = vmatpush.bf16.msra.mxu0 0
        %964 = vmatpush.bf16.msra.mxu0 0
        %965 = vmatpush.bf16.msra.mxu0 0
        %966 = vmatpush.bf16.msra.mxu0 0
        %967 = vmatpush.bf16.msra.mxu0 0
        %968 = vmatpush.bf16.msra.mxu0 0
        %969 = vmatpush.bf16.msra.mxu0 %v671
        %970 = vmatpush.bf16.msra.mxu0 %v639
        %971 = vmatmul.bf16.gmra.mxu0 %v753
        %v972 = vpop.f32.mrf.mxu0
        %v973 = vadd.f32 0.0, %v972
        %v974 = vpop.f32.mrf.mxu0
        %975 = vdwg.mxu0
        %976 = vmatpush.bf16.msra.mxu0 0
        %977 = vmatpush.bf16.msra.mxu0 0
        %978 = vmatpush.bf16.msra.mxu0 0
        %979 = vmatpush.bf16.msra.mxu0 0
        %980 = vmatpush.bf16.msra.mxu0 0
        %981 = vmatpush.bf16.msra.mxu0 0
        %982 = vmatpush.bf16.msra.mxu0 %v672
        %983 = vmatpush.bf16.msra.mxu0 %v640
        %984 = vmatmul.bf16.gmra.mxu0 %v753
        %v985 = vpop.f32.mrf.mxu0
        %v986 = vadd.f32 0.0, %v985
        %v987 = vpop.f32.mrf.mxu0
        %988 = vdwg.mxu0
        %989 = vmatpush.bf16.msra.mxu0 0
        %990 = vmatpush.bf16.msra.mxu0 0
        %991 = vmatpush.bf16.msra.mxu0 0
        %992 = vmatpush.bf16.msra.mxu0 0
        %993 = vmatpush.bf16.msra.mxu0 0
        %994 = vmatpush.bf16.msra.mxu0 0
        %995 = vmatpush.bf16.msra.mxu0 %v673
        %996 = vmatpush.bf16.msra.mxu0 %v641
        %997 = vmatmul.bf16.gmra.mxu0 %v753
        %v998 = vpop.f32.mrf.mxu0
        %v999 = vadd.f32 0.0, %v998
        %v1000 = vpop.f32.mrf.mxu0
        %1001 = vdwg.mxu0
        %1002 = vmatpush.bf16.msra.mxu0 0
        %1003 = vmatpush.bf16.msra.mxu0 0
        %1004 = vmatpush.bf16.msra.mxu0 0
        %1005 = vmatpush.bf16.msra.mxu0 0
        %1006 = vmatpush.bf16.msra.mxu0 0
        %1007 = vmatpush.bf16.msra.mxu0 0
        %1008 = vmatpush.bf16.msra.mxu0 %v674
        %1009 = vmatpush.bf16.msra.mxu0 %v642
        %1010 = vmatmul.bf16.gmra.mxu0 %v753
        %v1011 = vpop.f32.mrf.mxu0
        %v1012 = vadd.f32 0.0, %v1011
        %v1013 = vpop.f32.mrf.mxu0
        %1014 = vdwg.mxu0
        %1015 = vmatpush.bf16.msra.mxu0 0
        %1016 = vmatpush.bf16.msra.mxu0 0
        %1017 = vmatpush.bf16.msra.mxu0 0
        %1018 = vmatpush.bf16.msra.mxu0 0
        %1019 = vmatpush.bf16.msra.mxu0 0
        %1020 = vmatpush.bf16.msra.mxu0 0
        %1021 = vmatpush.bf16.msra.mxu0 %v675
        %1022 = vmatpush.bf16.msra.mxu0 %v643
        %1023 = vmatmul.bf16.gmra.mxu0 %v753
        %v1024 = vpop.f32.mrf.mxu0
        %v1025 = vadd.f32 0.0, %v1024
        %v1026 = vpop.f32.mrf.mxu0
        %1027 = vdwg.mxu0
        %1028 = vmatpush.bf16.msra.mxu0 0
        %1029 = vmatpush.bf16.msra.mxu0 0
        %1030 = vmatpush.bf16.msra.mxu0 0
        %1031 = vmatpush.bf16.msra.mxu0 0
        %1032 = vmatpush.bf16.msra.mxu0 0
        %1033 = vmatpush.bf16.msra.mxu0 0
        %1034 = vmatpush.bf16.msra.mxu0 %v676
        %1035 = vmatpush.bf16.msra.mxu0 %v644
        %1036 = vmatmul.bf16.gmra.mxu0 %v753
        %v1037 = vpop.f32.mrf.mxu0
        %v1038 = vadd.f32 0.0, %v1037
        %v1039 = vpop.f32.mrf.mxu0
        %1040 = vdwg.mxu0
        %1041 = vmatpush.bf16.msra.mxu0 0
        %1042 = vmatpush.bf16.msra.mxu0 0
        %1043 = vmatpush.bf16.msra.mxu0 0
        %1044 = vmatpush.bf16.msra.mxu0 0
        %1045 = vmatpush.bf16.msra.mxu0 0
        %1046 = vmatpush.bf16.msra.mxu0 0
        %1047 = vmatpush.bf16.msra.mxu0 %v677
        %1048 = vmatpush.bf16.msra.mxu0 %v645
        %1049 = vmatmul.bf16.gmra.mxu0 %v753
        %v1050 = vpop.f32.mrf.mxu0
        %v1051 = vadd.f32 0.0, %v1050
        %v1052 = vpop.f32.mrf.mxu0
        %1053 = vdwg.mxu0
        %1054 = vmatpush.bf16.msra.mxu0 0
        %1055 = vmatpush.bf16.msra.mxu0 0
        %1056 = vmatpush.bf16.msra.mxu0 0
        %1057 = vmatpush.bf16.msra.mxu0 0
        %1058 = vmatpush.bf16.msra.mxu0 0
        %1059 = vmatpush.bf16.msra.mxu0 0
        %1060 = vmatpush.bf16.msra.mxu0 %v678
        %1061 = vmatpush.bf16.msra.mxu0 %v646
        %1062 = vmatmul.bf16.gmra.mxu0 %v753
        %v1063 = vpop.f32.mrf.mxu0
        %v1064 = vadd.f32 0.0, %v1063
        %v1065 = vpop.f32.mrf.mxu0
        %1066 = vdwg.mxu0
        %1067 = vmatpush.bf16.msra.mxu0 0
        %1068 = vmatpush.bf16.msra.mxu0 0
        %1069 = vmatpush.bf16.msra.mxu0 0
        %1070 = vmatpush.bf16.msra.mxu0 0
        %1071 = vmatpush.bf16.msra.mxu0 0
        %1072 = vmatpush.bf16.msra.mxu0 0
        %1073 = vmatpush.bf16.msra.mxu0 %v679
        %1074 = vmatpush.bf16.msra.mxu0 %v647
        %1075 = vmatmul.bf16.gmra.mxu0 %v753
        %v1076 = vpop.f32.mrf.mxu0
        %v1077 = vadd.f32 0.0, %v1076
        %v1078 = vpop.f32.mrf.mxu0
        %1079 = vdwg.mxu0
        %1080 = vmatpush.bf16.msra.mxu0 0
        %1081 = vmatpush.bf16.msra.mxu0 0
        %1082 = vmatpush.bf16.msra.mxu0 0
        %1083 = vmatpush.bf16.msra.mxu0 0
        %1084 = vmatpush.bf16.msra.mxu0 0
        %1085 = vmatpush.bf16.msra.mxu0 0
        %1086 = vmatpush.bf16.msra.mxu0 %v680
        %1087 = vmatpush.bf16.msra.mxu0 %v648
        %1088 = vmatmul.bf16.gmra.mxu0 %v753
        %v1089 = vpop.f32.mrf.mxu0
        %v1090 = vadd.f32 0.0, %v1089
        %v1091 = vpop.f32.mrf.mxu0
        %1092 = vdwg.mxu0
        %1093 = vmatpush.bf16.msra.mxu0 0
        %1094 = vmatpush.bf16.msra.mxu0 0
        %1095 = vmatpush.bf16.msra.mxu0 0
        %1096 = vmatpush.bf16.msra.mxu0 0
        %1097 = vmatpush.bf16.msra.mxu0 0
        %1098 = vmatpush.bf16.msra.mxu0 0
        %1099 = vmatpush.bf16.msra.mxu0 %v681
        %1100 = vmatpush.bf16.msra.mxu0 %v649
        %1101 = vmatmul.bf16.gmra.mxu0 %v753
        %v1102 = vpop.f32.mrf.mxu0
        %v1103 = vadd.f32 0.0, %v1102
        %v1104 = vpop.f32.mrf.mxu0
        %1105 = vdwg.mxu0
        %1106 = vmatpush.bf16.msra.mxu0 0
        %1107 = vmatpush.bf16.msra.mxu0 0
        %1108 = vmatpush.bf16.msra.mxu0 0
        %1109 = vmatpush.bf16.msra.mxu0 0
        %1110 = vmatpush.bf16.msra.mxu0 0
        %1111 = vmatpush.bf16.msra.mxu0 0
        %1112 = vmatpush.bf16.msra.mxu0 %v682
        %1113 = vmatpush.bf16.msra.mxu0 %v650
        %1114 = vmatmul.bf16.gmra.mxu0 %v753
        %v1115 = vpop.f32.mrf.mxu0
        %v1116 = vadd.f32 0.0, %v1115
        %v1117 = vpop.f32.mrf.mxu0
        %1118 = vdwg.mxu0
        %1119 = vmatpush.bf16.msra.mxu0 0
        %1120 = vmatpush.bf16.msra.mxu0 0
        %1121 = vmatpush.bf16.msra.mxu0 0
        %1122 = vmatpush.bf16.msra.mxu0 0
        %1123 = vmatpush.bf16.msra.mxu0 0
        %1124 = vmatpush.bf16.msra.mxu0 0
        %1125 = vmatpush.bf16.msra.mxu0 %v683
        %1126 = vmatpush.bf16.msra.mxu0 %v651
        %1127 = vmatmul.bf16.gmra.mxu0 %v753
        %v1128 = vpop.f32.mrf.mxu0
        %v1129 = vadd.f32 0.0, %v1128
        %v1130 = vpop.f32.mrf.mxu0
        %1131 = vdwg.mxu0
        %1132 = vmatpush.bf16.msra.mxu0 0
        %1133 = vmatpush.bf16.msra.mxu0 0
        %1134 = vmatpush.bf16.msra.mxu0 0
        %1135 = vmatpush.bf16.msra.mxu0 0
        %1136 = vmatpush.bf16.msra.mxu0 0
        %1137 = vmatpush.bf16.msra.mxu0 0
        %1138 = vmatpush.bf16.msra.mxu0 %v684
        %1139 = vmatpush.bf16.msra.mxu0 %v652
        %1140 = vmatmul.bf16.gmra.mxu0 %v753
        %v1141 = vpop.f32.mrf.mxu0
        %v1142 = vadd.f32 0.0, %v1141
        %v1143 = vpop.f32.mrf.mxu0
        %1144 = vdwg.mxu0
        %1145 = vmatpush.bf16.msra.mxu0 0
        %1146 = vmatpush.bf16.msra.mxu0 0
        %1147 = vmatpush.bf16.msra.mxu0 0
        %1148 = vmatpush.bf16.msra.mxu0 0
        %1149 = vmatpush.bf16.msra.mxu0 0
        %1150 = vmatpush.bf16.msra.mxu0 0
        %1151 = vmatpush.bf16.msra.mxu0 %v685
        %1152 = vmatpush.bf16.msra.mxu0 %v653
        %1153 = vmatmul.bf16.gmra.mxu0 %v753
        %v1154 = vpop.f32.mrf.mxu0
        %v1155 = vadd.f32 0.0, %v1154
        %v1156 = vpop.f32.mrf.mxu0
        %1157 = vdwg.mxu0
        %1158 = vmatpush.bf16.msra.mxu0 0
        %1159 = vmatpush.bf16.msra.mxu0 0
        %1160 = vmatpush.bf16.msra.mxu0 0
        %1161 = vmatpush.bf16.msra.mxu0 0
        %1162 = vmatpush.bf16.msra.mxu0 0
        %1163 = vmatpush.bf16.msra.mxu0 0
        %1164 = vmatpush.bf16.msra.mxu0 %v686
        %1165 = vmatpush.bf16.msra.mxu0 %v654
        %1166 = vmatmul.bf16.gmra.mxu0 %v753
        %v1167 = vpop.f32.mrf.mxu0
        %v1168 = vadd.f32 0.0, %v1167
        %v1169 = vpop.f32.mrf.mxu0
        %1170 = vdwg.mxu0
        %v1171 = vld [vmem:[#allocation8] sm:$0xff]
        %v1172 = vld [vmem:[#allocation8 + $0x8] sm:$0xff]
        %v1173 = vld [vmem:[#allocation8 + $0x10] sm:$0xff]
        %v1174 = vld [vmem:[#allocation8 + $0x18] sm:$0xff]
        %v1179 = vperm.slane %v1171, 0
        %v1180 = vperm.slane %v1171, 1
        %v1181 = vperm.slane %v1171, 2
        %v1182 = vperm.slane %v1171, 3
        %v1183 = vperm.slane %v1171, 4
        %v1184 = vperm.slane %v1171, 5
        %v1185 = vperm.slane %v1171, 6
        %v1186 = vperm.slane %v1171, 7
        %v1187 = vperm.slane %v1172, 0
        %v1188 = vperm.slane %v1172, 1
        %v1189 = vperm.slane %v1172, 2
        %v1190 = vperm.slane %v1172, 3
        %v1191 = vperm.slane %v1172, 4
        %v1192 = vperm.slane %v1172, 5
        %v1193 = vperm.slane %v1172, 6
        %v1194 = vperm.slane %v1172, 7
        %v1195 = vperm.slane %v1173, 0
        %v1196 = vperm.slane %v1173, 1
        %v1197 = vperm.slane %v1173, 2
        %v1198 = vperm.slane %v1173, 3
        %v1199 = vperm.slane %v1173, 4
        %v1200 = vperm.slane %v1173, 5
        %v1201 = vperm.slane %v1173, 6
        %v1202 = vperm.slane %v1173, 7
        %v1203 = vperm.slane %v1174, 0
        %v1204 = vperm.slane %v1174, 1
        %v1205 = vperm.slane %v1174, 2
        %v1206 = vperm.slane %v1174, 3
        %v1207 = vperm.slane %v1174, 4
        %v1208 = vperm.slane %v1174, 5
        %v1209 = vperm.slane %v1174, 6
        %v1210 = vperm.slane %v1174, 7
        %v1243 = vmul.f32 %v765, %v1179
        %v1244 = vmul.f32 %v778, %v1180
        %v1245 = vmul.f32 %v791, %v1181
        %v1246 = vmul.f32 %v804, %v1182
        %v1247 = vmul.f32 %v817, %v1183
        %v1248 = vmul.f32 %v830, %v1184
        %v1249 = vmul.f32 %v843, %v1185
        %v1250 = vmul.f32 %v856, %v1186
        %v1251 = vmul.f32 %v869, %v1187
        %v1252 = vmul.f32 %v882, %v1188
        %v1253 = vmul.f32 %v895, %v1189
        %v1254 = vmul.f32 %v908, %v1190
        %v1255 = vmul.f32 %v921, %v1191
        %v1256 = vmul.f32 %v934, %v1192
        %v1257 = vmul.f32 %v947, %v1193
        %v1258 = vmul.f32 %v960, %v1194
        %v1259 = vmul.f32 %v973, %v1195
        %v1260 = vmul.f32 %v986, %v1196
        %v1261 = vmul.f32 %v999, %v1197
        %v1262 = vmul.f32 %v1012, %v1198
        %v1263 = vmul.f32 %v1025, %v1199
        %v1264 = vmul.f32 %v1038, %v1200
        %v1265 = vmul.f32 %v1051, %v1201
        %v1266 = vmul.f32 %v1064, %v1202
        %v1267 = vmul.f32 %v1077, %v1203
        %v1268 = vmul.f32 %v1090, %v1204
        %v1269 = vmul.f32 %v1103, %v1205
        %v1270 = vmul.f32 %v1116, %v1206
        %v1271 = vmul.f32 %v1129, %v1207
        %v1272 = vmul.f32 %v1142, %v1208
        %v1273 = vmul.f32 %v1155, %v1209
        %v1274 = vmul.f32 %v1168, %v1210
        %v1275 = vld [vmem:[#allocation9] sm:$0xff]
        %v1276 = vld [vmem:[#allocation9 + $0x8] sm:$0xff]
        %v1277 = vld [vmem:[#allocation9 + $0x10] sm:$0xff]
        %v1278 = vld [vmem:[#allocation9 + $0x18] sm:$0xff]
        %v1283 = vperm.slane %v1275, 0
        %v1284 = vperm.slane %v1275, 1
        %v1285 = vperm.slane %v1275, 2
        %v1286 = vperm.slane %v1275, 3
        %v1287 = vperm.slane %v1275, 4
        %v1288 = vperm.slane %v1275, 5
        %v1289 = vperm.slane %v1275, 6
        %v1290 = vperm.slane %v1275, 7
        %v1291 = vperm.slane %v1276, 0
        %v1292 = vperm.slane %v1276, 1
        %v1293 = vperm.slane %v1276, 2
        %v1294 = vperm.slane %v1276, 3
        %v1295 = vperm.slane %v1276, 4
        %v1296 = vperm.slane %v1276, 5
        %v1297 = vperm.slane %v1276, 6
        %v1298 = vperm.slane %v1276, 7
        %v1299 = vperm.slane %v1277, 0
        %v1300 = vperm.slane %v1277, 1
        %v1301 = vperm.slane %v1277, 2
        %v1302 = vperm.slane %v1277, 3
        %v1303 = vperm.slane %v1277, 4
        %v1304 = vperm.slane %v1277, 5
        %v1305 = vperm.slane %v1277, 6
        %v1306 = vperm.slane %v1277, 7
        %v1307 = vperm.slane %v1278, 0
        %v1308 = vperm.slane %v1278, 1
        %v1309 = vperm.slane %v1278, 2
        %v1310 = vperm.slane %v1278, 3
        %v1311 = vperm.slane %v1278, 4
        %v1312 = vperm.slane %v1278, 5
        %v1313 = vperm.slane %v1278, 6
        %v1314 = vperm.slane %v1278, 7
        %v1347 = vadd.f32 %v1243, %v1283
        %v1348 = vadd.f32 %v1244, %v1284
        %v1349 = vadd.f32 %v1245, %v1285
        %v1350 = vadd.f32 %v1246, %v1286
        %v1351 = vadd.f32 %v1247, %v1287
        %v1352 = vadd.f32 %v1248, %v1288
        %v1353 = vadd.f32 %v1249, %v1289
        %v1354 = vadd.f32 %v1250, %v1290
        %v1355 = vadd.f32 %v1251, %v1291
        %v1356 = vadd.f32 %v1252, %v1292
        %v1357 = vadd.f32 %v1253, %v1293
        %v1358 = vadd.f32 %v1254, %v1294
        %v1359 = vadd.f32 %v1255, %v1295
        %v1360 = vadd.f32 %v1256, %v1296
        %v1361 = vadd.f32 %v1257, %v1297
        %v1362 = vadd.f32 %v1258, %v1298
        %v1363 = vadd.f32 %v1259, %v1299
        %v1364 = vadd.f32 %v1260, %v1300
        %v1365 = vadd.f32 %v1261, %v1301
        %v1366 = vadd.f32 %v1262, %v1302
        %v1367 = vadd.f32 %v1263, %v1303
        %v1368 = vadd.f32 %v1264, %v1304
        %v1369 = vadd.f32 %v1265, %v1305
        %v1370 = vadd.f32 %v1266, %v1306
        %v1371 = vadd.f32 %v1267, %v1307
        %v1372 = vadd.f32 %v1268, %v1308
        %v1373 = vadd.f32 %v1269, %v1309
        %v1374 = vadd.f32 %v1270, %v1310
        %v1375 = vadd.f32 %v1271, %v1311
        %v1376 = vadd.f32 %v1272, %v1312
        %v1377 = vadd.f32 %v1273, %v1313
        %v1378 = vadd.f32 %v1274, %v1314
        %v1379 = vmax.f32 %v1347, 0.0
        %v1380 = vmax.f32 %v1348, 0.0
        %v1381 = vmax.f32 %v1349, 0.0
        %v1382 = vmax.f32 %v1350, 0.0
        %v1383 = vmax.f32 %v1351, 0.0
        %v1384 = vmax.f32 %v1352, 0.0
        %v1385 = vmax.f32 %v1353, 0.0
        %v1386 = vmax.f32 %v1354, 0.0
        %v1387 = vmax.f32 %v1355, 0.0
        %v1388 = vmax.f32 %v1356, 0.0
        %v1389 = vmax.f32 %v1357, 0.0
        %v1390 = vmax.f32 %v1358, 0.0
        %v1391 = vmax.f32 %v1359, 0.0
        %v1392 = vmax.f32 %v1360, 0.0
        %v1393 = vmax.f32 %v1361, 0.0
        %v1394 = vmax.f32 %v1362, 0.0
        %v1395 = vmax.f32 %v1363, 0.0
        %v1396 = vmax.f32 %v1364, 0.0
        %v1397 = vmax.f32 %v1365, 0.0
        %v1398 = vmax.f32 %v1366, 0.0
        %v1399 = vmax.f32 %v1367, 0.0
        %v1400 = vmax.f32 %v1368, 0.0
        %v1401 = vmax.f32 %v1369, 0.0
        %v1402 = vmax.f32 %v1370, 0.0
        %v1403 = vmax.f32 %v1371, 0.0
        %v1404 = vmax.f32 %v1372, 0.0
        %v1405 = vmax.f32 %v1373, 0.0
        %v1406 = vmax.f32 %v1374, 0.0
        %v1407 = vmax.f32 %v1375, 0.0
        %v1408 = vmax.f32 %v1376, 0.0
        %v1409 = vmax.f32 %v1377, 0.0
        %v1410 = vmax.f32 %v1378, 0.0
        %p1411 = scmp.eq.s32.totalorder %s31, 0
        // Predicated region
        $region69: #{tpu_custom_call.1} parent=43 // pred_check
          %p1412 = pneg %p1411
        $region70: #{tpu_custom_call.1} parent=43 // pred_check_branch
          %1414 = sbr.rel (%p1412) target = $region72
        $region71: #{tpu_custom_call.1} parent=43 // pred_region
          %1415 = vst [vmem:[#allocation2] sm:$0xff] %v1379
          %1416 = vst [vmem:[#allocation2 + $0x8] sm:$0xff] %v1380
          %1417 = vst [vmem:[#allocation2 + $0x10] sm:$0xff] %v1381
          %1418 = vst [vmem:[#allocation2 + $0x18] sm:$0xff] %v1382
          %1419 = vst [vmem:[#allocation2 + $0x20] sm:$0xff] %v1383
          %1420 = vst [vmem:[#allocation2 + $0x28] sm:$0xff] %v1384
          %1421 = vst [vmem:[#allocation2 + $0x30] sm:$0xff] %v1385
          %1422 = vst [vmem:[#allocation2 + $0x38] sm:$0xff] %v1386
          %1423 = vst [vmem:[#allocation2 + $0x40] sm:$0xff] %v1387
          %1424 = vst [vmem:[#allocation2 + $0x48] sm:$0xff] %v1388
          %1425 = vst [vmem:[#allocation2 + $0x50] sm:$0xff] %v1389
          %1426 = vst [vmem:[#allocation2 + $0x58] sm:$0xff] %v1390
          %1427 = vst [vmem:[#allocation2 + $0x60] sm:$0xff] %v1391
          %1428 = vst [vmem:[#allocation2 + $0x68] sm:$0xff] %v1392
          %1429 = vst [vmem:[#allocation2 + $0x70] sm:$0xff] %v1393
          %1430 = vst [vmem:[#allocation2 + $0x78] sm:$0xff] %v1394
          %1431 = vst [vmem:[#allocation2 + $0x80] sm:$0xff] %v1395
          %1432 = vst [vmem:[#allocation2 + $0x88] sm:$0xff] %v1396
          %1433 = vst [vmem:[#allocation2 + $0x90] sm:$0xff] %v1397
          %1434 = vst [vmem:[#allocation2 + $0x98] sm:$0xff] %v1398
          %1435 = vst [vmem:[#allocation2 + $0xa0] sm:$0xff] %v1399
          %1436 = vst [vmem:[#allocation2 + $0xa8] sm:$0xff] %v1400
          %1437 = vst [vmem:[#allocation2 + $0xb0] sm:$0xff] %v1401
          %1438 = vst [vmem:[#allocation2 + $0xb8] sm:$0xff] %v1402
          %1439 = vst [vmem:[#allocation2 + $0xc0] sm:$0xff] %v1403
          %1440 = vst [vmem:[#allocation2 + $0xc8] sm:$0xff] %v1404
          %1441 = vst [vmem:[#allocation2 + $0xd0] sm:$0xff] %v1405
          %1442 = vst [vmem:[#allocation2 + $0xd8] sm:$0xff] %v1406
          %1443 = vst [vmem:[#allocation2 + $0xe0] sm:$0xff] %v1407
          %1444 = vst [vmem:[#allocation2 + $0xe8] sm:$0xff] %v1408
          %1445 = vst [vmem:[#allocation2 + $0xf0] sm:$0xff] %v1409
          %1446 = vst [vmem:[#allocation2 + $0xf8] sm:$0xff] %v1410
        $region72: #{tpu_custom_call.1} parent=43 // pred_fallthru
          _
        %p1447 = scmp.gt.s32.totalorder %s31, 0
        // Predicated region
        $region73: #{tpu_custom_call.1} parent=43 // pred_check
          %p1448 = pneg %p1447
        $region74: #{tpu_custom_call.1} parent=43 // pred_check_branch
          %1450 = sbr.rel (%p1448) target = $region76
        $region75: #{tpu_custom_call.1} parent=43 // pred_region
          %v1451 = vld [vmem:[#allocation2] sm:$0xff]
          %v1452 = vld [vmem:[#allocation2 + $0x8] sm:$0xff]
          %v1453 = vld [vmem:[#allocation2 + $0x10] sm:$0xff]
          %v1454 = vld [vmem:[#allocation2 + $0x18] sm:$0xff]
          %v1455 = vld [vmem:[#allocation2 + $0x20] sm:$0xff]
          %v1456 = vld [vmem:[#allocation2 + $0x28] sm:$0xff]
          %v1457 = vld [vmem:[#allocation2 + $0x30] sm:$0xff]
          %v1458 = vld [vmem:[#allocation2 + $0x38] sm:$0xff]
          %v1459 = vld [vmem:[#allocation2 + $0x40] sm:$0xff]
          %v1460 = vld [vmem:[#allocation2 + $0x48] sm:$0xff]
          %v1461 = vld [vmem:[#allocation2 + $0x50] sm:$0xff]
          %v1462 = vld [vmem:[#allocation2 + $0x58] sm:$0xff]
          %v1463 = vld [vmem:[#allocation2 + $0x60] sm:$0xff]
          %v1464 = vld [vmem:[#allocation2 + $0x68] sm:$0xff]
          %v1465 = vld [vmem:[#allocation2 + $0x70] sm:$0xff]
          %v1466 = vld [vmem:[#allocation2 + $0x78] sm:$0xff]
          %v1467 = vld [vmem:[#allocation2 + $0x80] sm:$0xff]
          %v1468 = vld [vmem:[#allocation2 + $0x88] sm:$0xff]
          %v1469 = vld [vmem:[#allocation2 + $0x90] sm:$0xff]
          %v1470 = vld [vmem:[#allocation2 + $0x98] sm:$0xff]
          %v1471 = vld [vmem:[#allocation2 + $0xa0] sm:$0xff]
          %v1472 = vld [vmem:[#allocation2 + $0xa8] sm:$0xff]
          %v1473 = vld [vmem:[#allocation2 + $0xb0] sm:$0xff]
          %v1474 = vld [vmem:[#allocation2 + $0xb8] sm:$0xff]
          %v1475 = vld [vmem:[#allocation2 + $0xc0] sm:$0xff]
          %v1476 = vld [vmem:[#allocation2 + $0xc8] sm:$0xff]
          %v1477 = vld [vmem:[#allocation2 + $0xd0] sm:$0xff]
          %v1478 = vld [vmem:[#allocation2 + $0xd8] sm:$0xff]
          %v1479 = vld [vmem:[#allocation2 + $0xe0] sm:$0xff]
          %v1480 = vld [vmem:[#allocation2 + $0xe8] sm:$0xff]
          %v1481 = vld [vmem:[#allocation2 + $0xf0] sm:$0xff]
          %v1482 = vld [vmem:[#allocation2 + $0xf8] sm:$0xff]
          %v1483 = vmax.f32 %v1451, %v1379
          %v1484 = vmax.f32 %v1452, %v1380
          %v1485 = vmax.f32 %v1453, %v1381
          %v1486 = vmax.f32 %v1454, %v1382
          %v1487 = vmax.f32 %v1455, %v1383
          %v1488 = vmax.f32 %v1456, %v1384
          %v1489 = vmax.f32 %v1457, %v1385
          %v1490 = vmax.f32 %v1458, %v1386
          %v1491 = vmax.f32 %v1459, %v1387
          %v1492 = vmax.f32 %v1460, %v1388
          %v1493 = vmax.f32 %v1461, %v1389
          %v1494 = vmax.f32 %v1462, %v1390
          %v1495 = vmax.f32 %v1463, %v1391
          %v1496 = vmax.f32 %v1464, %v1392
          %v1497 = vmax.f32 %v1465, %v1393
          %v1498 = vmax.f32 %v1466, %v1394
          %v1499 = vmax.f32 %v1467, %v1395
          %v1500 = vmax.f32 %v1468, %v1396
          %v1501 = vmax.f32 %v1469, %v1397
          %v1502 = vmax.f32 %v1470, %v1398
          %v1503 = vmax.f32 %v1471, %v1399
          %v1504 = vmax.f32 %v1472, %v1400
          %v1505 = vmax.f32 %v1473, %v1401
          %v1506 = vmax.f32 %v1474, %v1402
          %v1507 = vmax.f32 %v1475, %v1403
          %v1508 = vmax.f32 %v1476, %v1404
          %v1509 = vmax.f32 %v1477, %v1405
          %v1510 = vmax.f32 %v1478, %v1406
          %v1511 = vmax.f32 %v1479, %v1407
          %v1512 = vmax.f32 %v1480, %v1408
          %v1513 = vmax.f32 %v1481, %v1409
          %v1514 = vmax.f32 %v1482, %v1410
          %1515 = vst [vmem:[#allocation2] sm:$0xff] %v1483
          %1516 = vst [vmem:[#allocation2 + $0x8] sm:$0xff] %v1484
          %1517 = vst [vmem:[#allocation2 + $0x10] sm:$0xff] %v1485
          %1518 = vst [vmem:[#allocation2 + $0x18] sm:$0xff] %v1486
          %1519 = vst [vmem:[#allocation2 + $0x20] sm:$0xff] %v1487
          %1520 = vst [vmem:[#allocation2 + $0x28] sm:$0xff] %v1488
          %1521 = vst [vmem:[#allocation2 + $0x30] sm:$0xff] %v1489
          %1522 = vst [vmem:[#allocation2 + $0x38] sm:$0xff] %v1490
          %1523 = vst [vmem:[#allocation2 + $0x40] sm:$0xff] %v1491
          %1524 = vst [vmem:[#allocation2 + $0x48] sm:$0xff] %v1492
          %1525 = vst [vmem:[#allocation2 + $0x50] sm:$0xff] %v1493
          %1526 = vst [vmem:[#allocation2 + $0x58] sm:$0xff] %v1494
          %1527 = vst [vmem:[#allocation2 + $0x60] sm:$0xff] %v1495
          %1528 = vst [vmem:[#allocation2 + $0x68] sm:$0xff] %v1496
          %1529 = vst [vmem:[#allocation2 + $0x70] sm:$0xff] %v1497
          %1530 = vst [vmem:[#allocation2 + $0x78] sm:$0xff] %v1498
          %1531 = vst [vmem:[#allocation2 + $0x80] sm:$0xff] %v1499
          %1532 = vst [vmem:[#allocation2 + $0x88] sm:$0xff] %v1500
          %1533 = vst [vmem:[#allocation2 + $0x90] sm:$0xff] %v1501
          %1534 = vst [vmem:[#allocation2 + $0x98] sm:$0xff] %v1502
          %1535 = vst [vmem:[#allocation2 + $0xa0] sm:$0xff] %v1503
          %1536 = vst [vmem:[#allocation2 + $0xa8] sm:$0xff] %v1504
          %1537 = vst [vmem:[#allocation2 + $0xb0] sm:$0xff] %v1505
          %1538 = vst [vmem:[#allocation2 + $0xb8] sm:$0xff] %v1506
          %1539 = vst [vmem:[#allocation2 + $0xc0] sm:$0xff] %v1507
          %1540 = vst [vmem:[#allocation2 + $0xc8] sm:$0xff] %v1508
          %1541 = vst [vmem:[#allocation2 + $0xd0] sm:$0xff] %v1509
          %1542 = vst [vmem:[#allocation2 + $0xd8] sm:$0xff] %v1510
          %1543 = vst [vmem:[#allocation2 + $0xe0] sm:$0xff] %v1511
          %1544 = vst [vmem:[#allocation2 + $0xe8] sm:$0xff] %v1512
          %1545 = vst [vmem:[#allocation2 + $0xf0] sm:$0xff] %v1513
          %1546 = vst [vmem:[#allocation2 + $0xf8] sm:$0xff] %v1514
        $region76: #{tpu_custom_call.1} parent=43 // pred_fallthru
          _
        %s1547 = smul.u32 %s31, 512
        %s1548 = smul.addr %s1547, 4
        %s1549 = scalar_lea.vmem [#allocation11], %s1548
        %v1550 = vld [vmem:[%s1549] sm:$0xf]
        %v1551 = vld [vmem:[%s1549 + $0x4] sm:$0xf]
        %v1552 = vld [vmem:[%s1549 + $0x8] sm:$0xf]
        %v1553 = vld [vmem:[%s1549 + $0xc] sm:$0xf]
        %v1554 = vld [vmem:[%s1549 + $0x10] sm:$0xf]
        %v1555 = vld [vmem:[%s1549 + $0x14] sm:$0xf]
        %v1556 = vld [vmem:[%s1549 + $0x18] sm:$0xf]
        %v1557 = vld [vmem:[%s1549 + $0x1c] sm:$0xf]
        %v1558 = vld [vmem:[%s1549 + $0x20] sm:$0xf]
        %v1559 = vld [vmem:[%s1549 + $0x24] sm:$0xf]
        %v1560 = vld [vmem:[%s1549 + $0x28] sm:$0xf]
        %v1561 = vld [vmem:[%s1549 + $0x2c] sm:$0xf]
        %v1562 = vld [vmem:[%s1549 + $0x30] sm:$0xf]
        %v1563 = vld [vmem:[%s1549 + $0x34] sm:$0xf]
        %v1564 = vld [vmem:[%s1549 + $0x38] sm:$0xf]
        %v1565 = vld [vmem:[%s1549 + $0x3c] sm:$0xf]
        %v1566 = vld [vmem:[%s1549 + $0x40] sm:$0xf]
        %v1567 = vld [vmem:[%s1549 + $0x44] sm:$0xf]
        %v1568 = vld [vmem:[%s1549 + $0x48] sm:$0xf]
        %v1569 = vld [vmem:[%s1549 + $0x4c] sm:$0xf]
        %v1570 = vld [vmem:[%s1549 + $0x50] sm:$0xf]
        %v1571 = vld [vmem:[%s1549 + $0x54] sm:$0xf]
        %v1572 = vld [vmem:[%s1549 + $0x58] sm:$0xf]
        %v1573 = vld [vmem:[%s1549 + $0x5c] sm:$0xf]
        %v1574 = vld [vmem:[%s1549 + $0x60] sm:$0xf]
        %v1575 = vld [vmem:[%s1549 + $0x64] sm:$0xf]
        %v1576 = vld [vmem:[%s1549 + $0x68] sm:$0xf]
        %v1577 = vld [vmem:[%s1549 + $0x6c] sm:$0xf]
        %v1578 = vld [vmem:[%s1549 + $0x70] sm:$0xf]
        %v1579 = vld [vmem:[%s1549 + $0x74] sm:$0xf]
        %v1580 = vld [vmem:[%s1549 + $0x78] sm:$0xf]
        %v1581 = vld [vmem:[%s1549 + $0x7c] sm:$0xf]
        %v1582 = vld [vmem:[%s1549 + $0x80] sm:$0xf]
        %v1583 = vld [vmem:[%s1549 + $0x84] sm:$0xf]
        %v1584 = vld [vmem:[%s1549 + $0x88] sm:$0xf]
        %v1585 = vld [vmem:[%s1549 + $0x8c] sm:$0xf]
        %v1586 = vld [vmem:[%s1549 + $0x90] sm:$0xf]
        %v1587 = vld [vmem:[%s1549 + $0x94] sm:$0xf]
        %v1588 = vld [vmem:[%s1549 + $0x98] sm:$0xf]
        %v1589 = vld [vmem:[%s1549 + $0x9c] sm:$0xf]
        %v1590 = vld [vmem:[%s1549 + $0xa0] sm:$0xf]
        %v1591 = vld [vmem:[%s1549 + $0xa4] sm:$0xf]
        %v1592 = vld [vmem:[%s1549 + $0xa8] sm:$0xf]
        %v1593 = vld [vmem:[%s1549 + $0xac] sm:$0xf]
        %v1594 = vld [vmem:[%s1549 + $0xb0] sm:$0xf]
        %v1595 = vld [vmem:[%s1549 + $0xb4] sm:$0xf]
        %v1596 = vld [vmem:[%s1549 + $0xb8] sm:$0xf]
        %v1597 = vld [vmem:[%s1549 + $0xbc] sm:$0xf]
        %v1598 = vld [vmem:[%s1549 + $0xc0] sm:$0xf]
        %v1599 = vld [vmem:[%s1549 + $0xc4] sm:$0xf]
        %v1600 = vld [vmem:[%s1549 + $0xc8] sm:$0xf]
        %v1601 = vld [vmem:[%s1549 + $0xcc] sm:$0xf]
        %v1602 = vld [vmem:[%s1549 + $0xd0] sm:$0xf]
        %v1603 = vld [vmem:[%s1549 + $0xd4] sm:$0xf]
        %v1604 = vld [vmem:[%s1549 + $0xd8] sm:$0xf]
        %v1605 = vld [vmem:[%s1549 + $0xdc] sm:$0xf]
        %v1606 = vld [vmem:[%s1549 + $0xe0] sm:$0xf]
        %v1607 = vld [vmem:[%s1549 + $0xe4] sm:$0xf]
        %v1608 = vld [vmem:[%s1549 + $0xe8] sm:$0xf]
        %v1609 = vld [vmem:[%s1549 + $0xec] sm:$0xf]
        %v1610 = vld [vmem:[%s1549 + $0xf0] sm:$0xf]
        %v1611 = vld [vmem:[%s1549 + $0xf4] sm:$0xf]
        %v1612 = vld [vmem:[%s1549 + $0xf8] sm:$0xf]
        %v1613 = vld [vmem:[%s1549 + $0xfc] sm:$0xf]
        %v1614 = vld [vmem:[%s1549 + $0x100] sm:$0xf]
        %v1615 = vld [vmem:[%s1549 + $0x104] sm:$0xf]
        %v1616 = vld [vmem:[%s1549 + $0x108] sm:$0xf]
        %v1617 = vld [vmem:[%s1549 + $0x10c] sm:$0xf]
        %v1618 = vld [vmem:[%s1549 + $0x110] sm:$0xf]
        %v1619 = vld [vmem:[%s1549 + $0x114] sm:$0xf]
        %v1620 = vld [vmem:[%s1549 + $0x118] sm:$0xf]
        %v1621 = vld [vmem:[%s1549 + $0x11c] sm:$0xf]
        %v1622 = vld [vmem:[%s1549 + $0x120] sm:$0xf]
        %v1623 = vld [vmem:[%s1549 + $0x124] sm:$0xf]
        %v1624 = vld [vmem:[%s1549 + $0x128] sm:$0xf]
        %v1625 = vld [vmem:[%s1549 + $0x12c] sm:$0xf]
        %v1626 = vld [vmem:[%s1549 + $0x130] sm:$0xf]
        %v1627 = vld [vmem:[%s1549 + $0x134] sm:$0xf]
        %v1628 = vld [vmem:[%s1549 + $0x138] sm:$0xf]
        %v1629 = vld [vmem:[%s1549 + $0x13c] sm:$0xf]
        %v1630 = vld [vmem:[%s1549 + $0x140] sm:$0xf]
        %v1631 = vld [vmem:[%s1549 + $0x144] sm:$0xf]
        %v1632 = vld [vmem:[%s1549 + $0x148] sm:$0xf]
        %v1633 = vld [vmem:[%s1549 + $0x14c] sm:$0xf]
        %v1634 = vld [vmem:[%s1549 + $0x150] sm:$0xf]
        %v1635 = vld [vmem:[%s1549 + $0x154] sm:$0xf]
        %v1636 = vld [vmem:[%s1549 + $0x158] sm:$0xf]
        %v1637 = vld [vmem:[%s1549 + $0x15c] sm:$0xf]
        %v1638 = vld [vmem:[%s1549 + $0x160] sm:$0xf]
        %v1639 = vld [vmem:[%s1549 + $0x164] sm:$0xf]
        %v1640 = vld [vmem:[%s1549 + $0x168] sm:$0xf]
        %v1641 = vld [vmem:[%s1549 + $0x16c] sm:$0xf]
        %v1642 = vld [vmem:[%s1549 + $0x170] sm:$0xf]
        %v1643 = vld [vmem:[%s1549 + $0x174] sm:$0xf]
        %v1644 = vld [vmem:[%s1549 + $0x178] sm:$0xf]
        %v1645 = vld [vmem:[%s1549 + $0x17c] sm:$0xf]
        %v1646 = vld [vmem:[%s1549 + $0x180] sm:$0xf]
        %v1647 = vld [vmem:[%s1549 + $0x184] sm:$0xf]
        %v1648 = vld [vmem:[%s1549 + $0x188] sm:$0xf]
        %v1649 = vld [vmem:[%s1549 + $0x18c] sm:$0xf]
        %v1650 = vld [vmem:[%s1549 + $0x190] sm:$0xf]
        %v1651 = vld [vmem:[%s1549 + $0x194] sm:$0xf]
        %v1652 = vld [vmem:[%s1549 + $0x198] sm:$0xf]
        %v1653 = vld [vmem:[%s1549 + $0x19c] sm:$0xf]
        %v1654 = vld [vmem:[%s1549 + $0x1a0] sm:$0xf]
        %v1655 = vld [vmem:[%s1549 + $0x1a4] sm:$0xf]
        %v1656 = vld [vmem:[%s1549 + $0x1a8] sm:$0xf]
        %v1657 = vld [vmem:[%s1549 + $0x1ac] sm:$0xf]
        %v1658 = vld [vmem:[%s1549 + $0x1b0] sm:$0xf]
        %v1659 = vld [vmem:[%s1549 + $0x1b4] sm:$0xf]
        %v1660 = vld [vmem:[%s1549 + $0x1b8] sm:$0xf]
        %v1661 = vld [vmem:[%s1549 + $0x1bc] sm:$0xf]
        %v1662 = vld [vmem:[%s1549 + $0x1c0] sm:$0xf]
        %v1663 = vld [vmem:[%s1549 + $0x1c4] sm:$0xf]
        %v1664 = vld [vmem:[%s1549 + $0x1c8] sm:$0xf]
        %v1665 = vld [vmem:[%s1549 + $0x1cc] sm:$0xf]
        %v1666 = vld [vmem:[%s1549 + $0x1d0] sm:$0xf]
        %v1667 = vld [vmem:[%s1549 + $0x1d4] sm:$0xf]
        %v1668 = vld [vmem:[%s1549 + $0x1d8] sm:$0xf]
        %v1669 = vld [vmem:[%s1549 + $0x1dc] sm:$0xf]
        %v1670 = vld [vmem:[%s1549 + $0x1e0] sm:$0xf]
        %v1671 = vld [vmem:[%s1549 + $0x1e4] sm:$0xf]
        %v1672 = vld [vmem:[%s1549 + $0x1e8] sm:$0xf]
        %v1673 = vld [vmem:[%s1549 + $0x1ec] sm:$0xf]
        %v1674 = vld [vmem:[%s1549 + $0x1f0] sm:$0xf]
        %v1675 = vld [vmem:[%s1549 + $0x1f4] sm:$0xf]
        %v1676 = vld [vmem:[%s1549 + $0x1f8] sm:$0xf]
        %v1677 = vld [vmem:[%s1549 + $0x1fc] sm:$0xf]
        %v1678 = vld [vmem:[%s1549 + $0x200] sm:$0xf]
        %v1679 = vld [vmem:[%s1549 + $0x204] sm:$0xf]
        %v1680 = vld [vmem:[%s1549 + $0x208] sm:$0xf]
        %v1681 = vld [vmem:[%s1549 + $0x20c] sm:$0xf]
        %v1682 = vld [vmem:[%s1549 + $0x210] sm:$0xf]
        %v1683 = vld [vmem:[%s1549 + $0x214] sm:$0xf]
        %v1684 = vld [vmem:[%s1549 + $0x218] sm:$0xf]
        %v1685 = vld [vmem:[%s1549 + $0x21c] sm:$0xf]
        %v1686 = vld [vmem:[%s1549 + $0x220] sm:$0xf]
        %v1687 = vld [vmem:[%s1549 + $0x224] sm:$0xf]
        %v1688 = vld [vmem:[%s1549 + $0x228] sm:$0xf]
        %v1689 = vld [vmem:[%s1549 + $0x22c] sm:$0xf]
        %v1690 = vld [vmem:[%s1549 + $0x230] sm:$0xf]
        %v1691 = vld [vmem:[%s1549 + $0x234] sm:$0xf]
        %v1692 = vld [vmem:[%s1549 + $0x238] sm:$0xf]
        %v1693 = vld [vmem:[%s1549 + $0x23c] sm:$0xf]
        %v1694 = vld [vmem:[%s1549 + $0x240] sm:$0xf]
        %v1695 = vld [vmem:[%s1549 + $0x244] sm:$0xf]
        %v1696 = vld [vmem:[%s1549 + $0x248] sm:$0xf]
        %v1697 = vld [vmem:[%s1549 + $0x24c] sm:$0xf]
        %v1698 = vld [vmem:[%s1549 + $0x250] sm:$0xf]
        %v1699 = vld [vmem:[%s1549 + $0x254] sm:$0xf]
        %v1700 = vld [vmem:[%s1549 + $0x258] sm:$0xf]
        %v1701 = vld [vmem:[%s1549 + $0x25c] sm:$0xf]
        %v1702 = vld [vmem:[%s1549 + $0x260] sm:$0xf]
        %v1703 = vld [vmem:[%s1549 + $0x264] sm:$0xf]
        %v1704 = vld [vmem:[%s1549 + $0x268] sm:$0xf]
        %v1705 = vld [vmem:[%s1549 + $0x26c] sm:$0xf]
        %v1706 = vld [vmem:[%s1549 + $0x270] sm:$0xf]
        %v1707 = vld [vmem:[%s1549 + $0x274] sm:$0xf]
        %v1708 = vld [vmem:[%s1549 + $0x278] sm:$0xf]
        %v1709 = vld [vmem:[%s1549 + $0x27c] sm:$0xf]
        %v1710 = vld [vmem:[%s1549 + $0x280] sm:$0xf]
        %v1711 = vld [vmem:[%s1549 + $0x284] sm:$0xf]
        %v1712 = vld [vmem:[%s1549 + $0x288] sm:$0xf]
        %v1713 = vld [vmem:[%s1549 + $0x28c] sm:$0xf]
        %v1714 = vld [vmem:[%s1549 + $0x290] sm:$0xf]
        %v1715 = vld [vmem:[%s1549 + $0x294] sm:$0xf]
        %v1716 = vld [vmem:[%s1549 + $0x298] sm:$0xf]
        %v1717 = vld [vmem:[%s1549 + $0x29c] sm:$0xf]
        %v1718 = vld [vmem:[%s1549 + $0x2a0] sm:$0xf]
        %v1719 = vld [vmem:[%s1549 + $0x2a4] sm:$0xf]
        %v1720 = vld [vmem:[%s1549 + $0x2a8] sm:$0xf]
        %v1721 = vld [vmem:[%s1549 + $0x2ac] sm:$0xf]
        %v1722 = vld [vmem:[%s1549 + $0x2b0] sm:$0xf]
        %v1723 = vld [vmem:[%s1549 + $0x2b4] sm:$0xf]
        %v1724 = vld [vmem:[%s1549 + $0x2b8] sm:$0xf]
        %v1725 = vld [vmem:[%s1549 + $0x2bc] sm:$0xf]
        %v1726 = vld [vmem:[%s1549 + $0x2c0] sm:$0xf]
        %v1727 = vld [vmem:[%s1549 + $0x2c4] sm:$0xf]
        %v1728 = vld [vmem:[%s1549 + $0x2c8] sm:$0xf]
        %v1729 = vld [vmem:[%s1549 + $0x2cc] sm:$0xf]
        %v1730 = vld [vmem:[%s1549 + $0x2d0] sm:$0xf]
        %v1731 = vld [vmem:[%s1549 + $0x2d4] sm:$0xf]
        %v1732 = vld [vmem:[%s1549 + $0x2d8] sm:$0xf]
        %v1733 = vld [vmem:[%s1549 + $0x2dc] sm:$0xf]
        %v1734 = vld [vmem:[%s1549 + $0x2e0] sm:$0xf]
        %v1735 = vld [vmem:[%s1549 + $0x2e4] sm:$0xf]
        %v1736 = vld [vmem:[%s1549 + $0x2e8] sm:$0xf]
        %v1737 = vld [vmem:[%s1549 + $0x2ec] sm:$0xf]
        %v1738 = vld [vmem:[%s1549 + $0x2f0] sm:$0xf]
        %v1739 = vld [vmem:[%s1549 + $0x2f4] sm:$0xf]
        %v1740 = vld [vmem:[%s1549 + $0x2f8] sm:$0xf]
        %v1741 = vld [vmem:[%s1549 + $0x2fc] sm:$0xf]
        %v1742 = vld [vmem:[%s1549 + $0x300] sm:$0xf]
        %v1743 = vld [vmem:[%s1549 + $0x304] sm:$0xf]
        %v1744 = vld [vmem:[%s1549 + $0x308] sm:$0xf]
        %v1745 = vld [vmem:[%s1549 + $0x30c] sm:$0xf]
        %v1746 = vld [vmem:[%s1549 + $0x310] sm:$0xf]
        %v1747 = vld [vmem:[%s1549 + $0x314] sm:$0xf]
        %v1748 = vld [vmem:[%s1549 + $0x318] sm:$0xf]
        %v1749 = vld [vmem:[%s1549 + $0x31c] sm:$0xf]
        %v1750 = vld [vmem:[%s1549 + $0x320] sm:$0xf]
        %v1751 = vld [vmem:[%s1549 + $0x324] sm:$0xf]
        %v1752 = vld [vmem:[%s1549 + $0x328] sm:$0xf]
        %v1753 = vld [vmem:[%s1549 + $0x32c] sm:$0xf]
        %v1754 = vld [vmem:[%s1549 + $0x330] sm:$0xf]
        %v1755 = vld [vmem:[%s1549 + $0x334] sm:$0xf]
        %v1756 = vld [vmem:[%s1549 + $0x338] sm:$0xf]
        %v1757 = vld [vmem:[%s1549 + $0x33c] sm:$0xf]
        %v1758 = vld [vmem:[%s1549 + $0x340] sm:$0xf]
        %v1759 = vld [vmem:[%s1549 + $0x344] sm:$0xf]
        %v1760 = vld [vmem:[%s1549 + $0x348] sm:$0xf]
        %v1761 = vld [vmem:[%s1549 + $0x34c] sm:$0xf]
        %v1762 = vld [vmem:[%s1549 + $0x350] sm:$0xf]
        %v1763 = vld [vmem:[%s1549 + $0x354] sm:$0xf]
        %v1764 = vld [vmem:[%s1549 + $0x358] sm:$0xf]
        %v1765 = vld [vmem:[%s1549 + $0x35c] sm:$0xf]
        %v1766 = vld [vmem:[%s1549 + $0x360] sm:$0xf]
        %v1767 = vld [vmem:[%s1549 + $0x364] sm:$0xf]
        %v1768 = vld [vmem:[%s1549 + $0x368] sm:$0xf]
        %v1769 = vld [vmem:[%s1549 + $0x36c] sm:$0xf]
        %v1770 = vld [vmem:[%s1549 + $0x370] sm:$0xf]
        %v1771 = vld [vmem:[%s1549 + $0x374] sm:$0xf]
        %v1772 = vld [vmem:[%s1549 + $0x378] sm:$0xf]
        %v1773 = vld [vmem:[%s1549 + $0x37c] sm:$0xf]
        %v1774 = vld [vmem:[%s1549 + $0x380] sm:$0xf]
        %v1775 = vld [vmem:[%s1549 + $0x384] sm:$0xf]
        %v1776 = vld [vmem:[%s1549 + $0x388] sm:$0xf]
        %v1777 = vld [vmem:[%s1549 + $0x38c] sm:$0xf]
        %v1778 = vld [vmem:[%s1549 + $0x390] sm:$0xf]
        %v1779 = vld [vmem:[%s1549 + $0x394] sm:$0xf]
        %v1780 = vld [vmem:[%s1549 + $0x398] sm:$0xf]
        %v1781 = vld [vmem:[%s1549 + $0x39c] sm:$0xf]
        %v1782 = vld [vmem:[%s1549 + $0x3a0] sm:$0xf]
        %v1783 = vld [vmem:[%s1549 + $0x3a4] sm:$0xf]
        %v1784 = vld [vmem:[%s1549 + $0x3a8] sm:$0xf]
        %v1785 = vld [vmem:[%s1549 + $0x3ac] sm:$0xf]
        %v1786 = vld [vmem:[%s1549 + $0x3b0] sm:$0xf]
        %v1787 = vld [vmem:[%s1549 + $0x3b4] sm:$0xf]
        %v1788 = vld [vmem:[%s1549 + $0x3b8] sm:$0xf]
        %v1789 = vld [vmem:[%s1549 + $0x3bc] sm:$0xf]
        %v1790 = vld [vmem:[%s1549 + $0x3c0] sm:$0xf]
        %v1791 = vld [vmem:[%s1549 + $0x3c4] sm:$0xf]
        %v1792 = vld [vmem:[%s1549 + $0x3c8] sm:$0xf]
        %v1793 = vld [vmem:[%s1549 + $0x3cc] sm:$0xf]
        %v1794 = vld [vmem:[%s1549 + $0x3d0] sm:$0xf]
        %v1795 = vld [vmem:[%s1549 + $0x3d4] sm:$0xf]
        %v1796 = vld [vmem:[%s1549 + $0x3d8] sm:$0xf]
        %v1797 = vld [vmem:[%s1549 + $0x3dc] sm:$0xf]
        %v1798 = vld [vmem:[%s1549 + $0x3e0] sm:$0xf]
        %v1799 = vld [vmem:[%s1549 + $0x3e4] sm:$0xf]
        %v1800 = vld [vmem:[%s1549 + $0x3e8] sm:$0xf]
        %v1801 = vld [vmem:[%s1549 + $0x3ec] sm:$0xf]
        %v1802 = vld [vmem:[%s1549 + $0x3f0] sm:$0xf]
        %v1803 = vld [vmem:[%s1549 + $0x3f4] sm:$0xf]
        %v1804 = vld [vmem:[%s1549 + $0x3f8] sm:$0xf]
        %v1805 = vld [vmem:[%s1549 + $0x3fc] sm:$0xf]
        %v1806 = vld [vmem:[%s1549 + $0x400] sm:$0xf]
        %v1807 = vld [vmem:[%s1549 + $0x404] sm:$0xf]
        %v1808 = vld [vmem:[%s1549 + $0x408] sm:$0xf]
        %v1809 = vld [vmem:[%s1549 + $0x40c] sm:$0xf]
        %v1810 = vld [vmem:[%s1549 + $0x410] sm:$0xf]
        %v1811 = vld [vmem:[%s1549 + $0x414] sm:$0xf]
        %v1812 = vld [vmem:[%s1549 + $0x418] sm:$0xf]
        %v1813 = vld [vmem:[%s1549 + $0x41c] sm:$0xf]
        %v1814 = vld [vmem:[%s1549 + $0x420] sm:$0xf]
        %v1815 = vld [vmem:[%s1549 + $0x424] sm:$0xf]
        %v1816 = vld [vmem:[%s1549 + $0x428] sm:$0xf]
        %v1817 = vld [vmem:[%s1549 + $0x42c] sm:$0xf]
        %v1818 = vld [vmem:[%s1549 + $0x430] sm:$0xf]
        %v1819 = vld [vmem:[%s1549 + $0x434] sm:$0xf]
        %v1820 = vld [vmem:[%s1549 + $0x438] sm:$0xf]
        %v1821 = vld [vmem:[%s1549 + $0x43c] sm:$0xf]
        %v1822 = vld [vmem:[%s1549 + $0x440] sm:$0xf]
        %v1823 = vld [vmem:[%s1549 + $0x444] sm:$0xf]
        %v1824 = vld [vmem:[%s1549 + $0x448] sm:$0xf]
        %v1825 = vld [vmem:[%s1549 + $0x44c] sm:$0xf]
        %v1826 = vld [vmem:[%s1549 + $0x450] sm:$0xf]
        %v1827 = vld [vmem:[%s1549 + $0x454] sm:$0xf]
        %v1828 = vld [vmem:[%s1549 + $0x458] sm:$0xf]
        %v1829 = vld [vmem:[%s1549 + $0x45c] sm:$0xf]
        %v1830 = vld [vmem:[%s1549 + $0x460] sm:$0xf]
        %v1831 = vld [vmem:[%s1549 + $0x464] sm:$0xf]
        %v1832 = vld [vmem:[%s1549 + $0x468] sm:$0xf]
        %v1833 = vld [vmem:[%s1549 + $0x46c] sm:$0xf]
        %v1834 = vld [vmem:[%s1549 + $0x470] sm:$0xf]
        %v1835 = vld [vmem:[%s1549 + $0x474] sm:$0xf]
        %v1836 = vld [vmem:[%s1549 + $0x478] sm:$0xf]
        %v1837 = vld [vmem:[%s1549 + $0x47c] sm:$0xf]
        %v1838 = vld [vmem:[%s1549 + $0x480] sm:$0xf]
        %v1839 = vld [vmem:[%s1549 + $0x484] sm:$0xf]
        %v1840 = vld [vmem:[%s1549 + $0x488] sm:$0xf]
        %v1841 = vld [vmem:[%s1549 + $0x48c] sm:$0xf]
        %v1842 = vld [vmem:[%s1549 + $0x490] sm:$0xf]
        %v1843 = vld [vmem:[%s1549 + $0x494] sm:$0xf]
        %v1844 = vld [vmem:[%s1549 + $0x498] sm:$0xf]
        %v1845 = vld [vmem:[%s1549 + $0x49c] sm:$0xf]
        %v1846 = vld [vmem:[%s1549 + $0x4a0] sm:$0xf]
        %v1847 = vld [vmem:[%s1549 + $0x4a4] sm:$0xf]
        %v1848 = vld [vmem:[%s1549 + $0x4a8] sm:$0xf]
        %v1849 = vld [vmem:[%s1549 + $0x4ac] sm:$0xf]
        %v1850 = vld [vmem:[%s1549 + $0x4b0] sm:$0xf]
        %v1851 = vld [vmem:[%s1549 + $0x4b4] sm:$0xf]
        %v1852 = vld [vmem:[%s1549 + $0x4b8] sm:$0xf]
        %v1853 = vld [vmem:[%s1549 + $0x4bc] sm:$0xf]
        %v1854 = vld [vmem:[%s1549 + $0x4c0] sm:$0xf]
        %v1855 = vld [vmem:[%s1549 + $0x4c4] sm:$0xf]
        %v1856 = vld [vmem:[%s1549 + $0x4c8] sm:$0xf]
        %v1857 = vld [vmem:[%s1549 + $0x4cc] sm:$0xf]
        %v1858 = vld [vmem:[%s1549 + $0x4d0] sm:$0xf]
        %v1859 = vld [vmem:[%s1549 + $0x4d4] sm:$0xf]
        %v1860 = vld [vmem:[%s1549 + $0x4d8] sm:$0xf]
        %v1861 = vld [vmem:[%s1549 + $0x4dc] sm:$0xf]
        %v1862 = vld [vmem:[%s1549 + $0x4e0] sm:$0xf]
        %v1863 = vld [vmem:[%s1549 + $0x4e4] sm:$0xf]
        %v1864 = vld [vmem:[%s1549 + $0x4e8] sm:$0xf]
        %v1865 = vld [vmem:[%s1549 + $0x4ec] sm:$0xf]
        %v1866 = vld [vmem:[%s1549 + $0x4f0] sm:$0xf]
        %v1867 = vld [vmem:[%s1549 + $0x4f4] sm:$0xf]
        %v1868 = vld [vmem:[%s1549 + $0x4f8] sm:$0xf]
        %v1869 = vld [vmem:[%s1549 + $0x4fc] sm:$0xf]
        %v1870 = vld [vmem:[%s1549 + $0x500] sm:$0xf]
        %v1871 = vld [vmem:[%s1549 + $0x504] sm:$0xf]
        %v1872 = vld [vmem:[%s1549 + $0x508] sm:$0xf]
        %v1873 = vld [vmem:[%s1549 + $0x50c] sm:$0xf]
        %v1874 = vld [vmem:[%s1549 + $0x510] sm:$0xf]
        %v1875 = vld [vmem:[%s1549 + $0x514] sm:$0xf]
        %v1876 = vld [vmem:[%s1549 + $0x518] sm:$0xf]
        %v1877 = vld [vmem:[%s1549 + $0x51c] sm:$0xf]
        %v1878 = vld [vmem:[%s1549 + $0x520] sm:$0xf]
        %v1879 = vld [vmem:[%s1549 + $0x524] sm:$0xf]
        %v1880 = vld [vmem:[%s1549 + $0x528] sm:$0xf]
        %v1881 = vld [vmem:[%s1549 + $0x52c] sm:$0xf]
        %v1882 = vld [vmem:[%s1549 + $0x530] sm:$0xf]
        %v1883 = vld [vmem:[%s1549 + $0x534] sm:$0xf]
        %v1884 = vld [vmem:[%s1549 + $0x538] sm:$0xf]
        %v1885 = vld [vmem:[%s1549 + $0x53c] sm:$0xf]
        %v1886 = vld [vmem:[%s1549 + $0x540] sm:$0xf]
        %v1887 = vld [vmem:[%s1549 + $0x544] sm:$0xf]
        %v1888 = vld [vmem:[%s1549 + $0x548] sm:$0xf]
        %v1889 = vld [vmem:[%s1549 + $0x54c] sm:$0xf]
        %v1890 = vld [vmem:[%s1549 + $0x550] sm:$0xf]
        %v1891 = vld [vmem:[%s1549 + $0x554] sm:$0xf]
        %v1892 = vld [vmem:[%s1549 + $0x558] sm:$0xf]
        %v1893 = vld [vmem:[%s1549 + $0x55c] sm:$0xf]
        %v1894 = vld [vmem:[%s1549 + $0x560] sm:$0xf]
        %v1895 = vld [vmem:[%s1549 + $0x564] sm:$0xf]
        %v1896 = vld [vmem:[%s1549 + $0x568] sm:$0xf]
        %v1897 = vld [vmem:[%s1549 + $0x56c] sm:$0xf]
        %v1898 = vld [vmem:[%s1549 + $0x570] sm:$0xf]
        %v1899 = vld [vmem:[%s1549 + $0x574] sm:$0xf]
        %v1900 = vld [vmem:[%s1549 + $0x578] sm:$0xf]
        %v1901 = vld [vmem:[%s1549 + $0x57c] sm:$0xf]
        %v1902 = vld [vmem:[%s1549 + $0x580] sm:$0xf]
        %v1903 = vld [vmem:[%s1549 + $0x584] sm:$0xf]
        %v1904 = vld [vmem:[%s1549 + $0x588] sm:$0xf]
        %v1905 = vld [vmem:[%s1549 + $0x58c] sm:$0xf]
        %v1906 = vld [vmem:[%s1549 + $0x590] sm:$0xf]
        %v1907 = vld [vmem:[%s1549 + $0x594] sm:$0xf]
        %v1908 = vld [vmem:[%s1549 + $0x598] sm:$0xf]
        %v1909 = vld [vmem:[%s1549 + $0x59c] sm:$0xf]
        %v1910 = vld [vmem:[%s1549 + $0x5a0] sm:$0xf]
        %v1911 = vld [vmem:[%s1549 + $0x5a4] sm:$0xf]
        %v1912 = vld [vmem:[%s1549 + $0x5a8] sm:$0xf]
        %v1913 = vld [vmem:[%s1549 + $0x5ac] sm:$0xf]
        %v1914 = vld [vmem:[%s1549 + $0x5b0] sm:$0xf]
        %v1915 = vld [vmem:[%s1549 + $0x5b4] sm:$0xf]
        %v1916 = vld [vmem:[%s1549 + $0x5b8] sm:$0xf]
        %v1917 = vld [vmem:[%s1549 + $0x5bc] sm:$0xf]
        %v1918 = vld [vmem:[%s1549 + $0x5c0] sm:$0xf]
        %v1919 = vld [vmem:[%s1549 + $0x5c4] sm:$0xf]
        %v1920 = vld [vmem:[%s1549 + $0x5c8] sm:$0xf]
        %v1921 = vld [vmem:[%s1549 + $0x5cc] sm:$0xf]
        %v1922 = vld [vmem:[%s1549 + $0x5d0] sm:$0xf]
        %v1923 = vld [vmem:[%s1549 + $0x5d4] sm:$0xf]
        %v1924 = vld [vmem:[%s1549 + $0x5d8] sm:$0xf]
        %v1925 = vld [vmem:[%s1549 + $0x5dc] sm:$0xf]
        %v1926 = vld [vmem:[%s1549 + $0x5e0] sm:$0xf]
        %v1927 = vld [vmem:[%s1549 + $0x5e4] sm:$0xf]
        %v1928 = vld [vmem:[%s1549 + $0x5e8] sm:$0xf]
        %v1929 = vld [vmem:[%s1549 + $0x5ec] sm:$0xf]
        %v1930 = vld [vmem:[%s1549 + $0x5f0] sm:$0xf]
        %v1931 = vld [vmem:[%s1549 + $0x5f4] sm:$0xf]
        %v1932 = vld [vmem:[%s1549 + $0x5f8] sm:$0xf]
        %v1933 = vld [vmem:[%s1549 + $0x5fc] sm:$0xf]
        %v1934 = vld [vmem:[%s1549 + $0x600] sm:$0xf]
        %v1935 = vld [vmem:[%s1549 + $0x604] sm:$0xf]
        %v1936 = vld [vmem:[%s1549 + $0x608] sm:$0xf]
        %v1937 = vld [vmem:[%s1549 + $0x60c] sm:$0xf]
        %v1938 = vld [vmem:[%s1549 + $0x610] sm:$0xf]
        %v1939 = vld [vmem:[%s1549 + $0x614] sm:$0xf]
        %v1940 = vld [vmem:[%s1549 + $0x618] sm:$0xf]
        %v1941 = vld [vmem:[%s1549 + $0x61c] sm:$0xf]
        %v1942 = vld [vmem:[%s1549 + $0x620] sm:$0xf]
        %v1943 = vld [vmem:[%s1549 + $0x624] sm:$0xf]
        %v1944 = vld [vmem:[%s1549 + $0x628] sm:$0xf]
        %v1945 = vld [vmem:[%s1549 + $0x62c] sm:$0xf]
        %v1946 = vld [vmem:[%s1549 + $0x630] sm:$0xf]
        %v1947 = vld [vmem:[%s1549 + $0x634] sm:$0xf]
        %v1948 = vld [vmem:[%s1549 + $0x638] sm:$0xf]
        %v1949 = vld [vmem:[%s1549 + $0x63c] sm:$0xf]
        %v1950 = vld [vmem:[%s1549 + $0x640] sm:$0xf]
        %v1951 = vld [vmem:[%s1549 + $0x644] sm:$0xf]
        %v1952 = vld [vmem:[%s1549 + $0x648] sm:$0xf]
        %v1953 = vld [vmem:[%s1549 + $0x64c] sm:$0xf]
        %v1954 = vld [vmem:[%s1549 + $0x650] sm:$0xf]
        %v1955 = vld [vmem:[%s1549 + $0x654] sm:$0xf]
        %v1956 = vld [vmem:[%s1549 + $0x658] sm:$0xf]
        %v1957 = vld [vmem:[%s1549 + $0x65c] sm:$0xf]
        %v1958 = vld [vmem:[%s1549 + $0x660] sm:$0xf]
        %v1959 = vld [vmem:[%s1549 + $0x664] sm:$0xf]
        %v1960 = vld [vmem:[%s1549 + $0x668] sm:$0xf]
        %v1961 = vld [vmem:[%s1549 + $0x66c] sm:$0xf]
        %v1962 = vld [vmem:[%s1549 + $0x670] sm:$0xf]
        %v1963 = vld [vmem:[%s1549 + $0x674] sm:$0xf]
        %v1964 = vld [vmem:[%s1549 + $0x678] sm:$0xf]
        %v1965 = vld [vmem:[%s1549 + $0x67c] sm:$0xf]
        %v1966 = vld [vmem:[%s1549 + $0x680] sm:$0xf]
        %v1967 = vld [vmem:[%s1549 + $0x684] sm:$0xf]
        %v1968 = vld [vmem:[%s1549 + $0x688] sm:$0xf]
        %v1969 = vld [vmem:[%s1549 + $0x68c] sm:$0xf]
        %v1970 = vld [vmem:[%s1549 + $0x690] sm:$0xf]
        %v1971 = vld [vmem:[%s1549 + $0x694] sm:$0xf]
        %v1972 = vld [vmem:[%s1549 + $0x698] sm:$0xf]
        %v1973 = vld [vmem:[%s1549 + $0x69c] sm:$0xf]
        %v1974 = vld [vmem:[%s1549 + $0x6a0] sm:$0xf]
        %v1975 = vld [vmem:[%s1549 + $0x6a4] sm:$0xf]
        %v1976 = vld [vmem:[%s1549 + $0x6a8] sm:$0xf]
        %v1977 = vld [vmem:[%s1549 + $0x6ac] sm:$0xf]
        %v1978 = vld [vmem:[%s1549 + $0x6b0] sm:$0xf]
        %v1979 = vld [vmem:[%s1549 + $0x6b4] sm:$0xf]
        %v1980 = vld [vmem:[%s1549 + $0x6b8] sm:$0xf]
        %v1981 = vld [vmem:[%s1549 + $0x6bc] sm:$0xf]
        %v1982 = vld [vmem:[%s1549 + $0x6c0] sm:$0xf]
        %v1983 = vld [vmem:[%s1549 + $0x6c4] sm:$0xf]
        %v1984 = vld [vmem:[%s1549 + $0x6c8] sm:$0xf]
        %v1985 = vld [vmem:[%s1549 + $0x6cc] sm:$0xf]
        %v1986 = vld [vmem:[%s1549 + $0x6d0] sm:$0xf]
        %v1987 = vld [vmem:[%s1549 + $0x6d4] sm:$0xf]
        %v1988 = vld [vmem:[%s1549 + $0x6d8] sm:$0xf]
        %v1989 = vld [vmem:[%s1549 + $0x6dc] sm:$0xf]
        %v1990 = vld [vmem:[%s1549 + $0x6e0] sm:$0xf]
        %v1991 = vld [vmem:[%s1549 + $0x6e4] sm:$0xf]
        %v1992 = vld [vmem:[%s1549 + $0x6e8] sm:$0xf]
        %v1993 = vld [vmem:[%s1549 + $0x6ec] sm:$0xf]
        %v1994 = vld [vmem:[%s1549 + $0x6f0] sm:$0xf]
        %v1995 = vld [vmem:[%s1549 + $0x6f4] sm:$0xf]
        %v1996 = vld [vmem:[%s1549 + $0x6f8] sm:$0xf]
        %v1997 = vld [vmem:[%s1549 + $0x6fc] sm:$0xf]
        %v1998 = vld [vmem:[%s1549 + $0x700] sm:$0xf]
        %v1999 = vld [vmem:[%s1549 + $0x704] sm:$0xf]
        %v2000 = vld [vmem:[%s1549 + $0x708] sm:$0xf]
        %v2001 = vld [vmem:[%s1549 + $0x70c] sm:$0xf]
        %v2002 = vld [vmem:[%s1549 + $0x710] sm:$0xf]
        %v2003 = vld [vmem:[%s1549 + $0x714] sm:$0xf]
        %v2004 = vld [vmem:[%s1549 + $0x718] sm:$0xf]
        %v2005 = vld [vmem:[%s1549 + $0x71c] sm:$0xf]
        %v2006 = vld [vmem:[%s1549 + $0x720] sm:$0xf]
        %v2007 = vld [vmem:[%s1549 + $0x724] sm:$0xf]
        %v2008 = vld [vmem:[%s1549 + $0x728] sm:$0xf]
        %v2009 = vld [vmem:[%s1549 + $0x72c] sm:$0xf]
        %v2010 = vld [vmem:[%s1549 + $0x730] sm:$0xf]
        %v2011 = vld [vmem:[%s1549 + $0x734] sm:$0xf]
        %v2012 = vld [vmem:[%s1549 + $0x738] sm:$0xf]
        %v2013 = vld [vmem:[%s1549 + $0x73c] sm:$0xf]
        %v2014 = vld [vmem:[%s1549 + $0x740] sm:$0xf]
        %v2015 = vld [vmem:[%s1549 + $0x744] sm:$0xf]
        %v2016 = vld [vmem:[%s1549 + $0x748] sm:$0xf]
        %v2017 = vld [vmem:[%s1549 + $0x74c] sm:$0xf]
        %v2018 = vld [vmem:[%s1549 + $0x750] sm:$0xf]
        %v2019 = vld [vmem:[%s1549 + $0x754] sm:$0xf]
        %v2020 = vld [vmem:[%s1549 + $0x758] sm:$0xf]
        %v2021 = vld [vmem:[%s1549 + $0x75c] sm:$0xf]
        %v2022 = vld [vmem:[%s1549 + $0x760] sm:$0xf]
        %v2023 = vld [vmem:[%s1549 + $0x764] sm:$0xf]
        %v2024 = vld [vmem:[%s1549 + $0x768] sm:$0xf]
        %v2025 = vld [vmem:[%s1549 + $0x76c] sm:$0xf]
        %v2026 = vld [vmem:[%s1549 + $0x770] sm:$0xf]
        %v2027 = vld [vmem:[%s1549 + $0x774] sm:$0xf]
        %v2028 = vld [vmem:[%s1549 + $0x778] sm:$0xf]
        %v2029 = vld [vmem:[%s1549 + $0x77c] sm:$0xf]
        %v2030 = vld [vmem:[%s1549 + $0x780] sm:$0xf]
        %v2031 = vld [vmem:[%s1549 + $0x784] sm:$0xf]
        %v2032 = vld [vmem:[%s1549 + $0x788] sm:$0xf]
        %v2033 = vld [vmem:[%s1549 + $0x78c] sm:$0xf]
        %v2034 = vld [vmem:[%s1549 + $0x790] sm:$0xf]
        %v2035 = vld [vmem:[%s1549 + $0x794] sm:$0xf]
        %v2036 = vld [vmem:[%s1549 + $0x798] sm:$0xf]
        %v2037 = vld [vmem:[%s1549 + $0x79c] sm:$0xf]
        %v2038 = vld [vmem:[%s1549 + $0x7a0] sm:$0xf]
        %v2039 = vld [vmem:[%s1549 + $0x7a4] sm:$0xf]
        %v2040 = vld [vmem:[%s1549 + $0x7a8] sm:$0xf]
        %v2041 = vld [vmem:[%s1549 + $0x7ac] sm:$0xf]
        %v2042 = vld [vmem:[%s1549 + $0x7b0] sm:$0xf]
        %v2043 = vld [vmem:[%s1549 + $0x7b4] sm:$0xf]
        %v2044 = vld [vmem:[%s1549 + $0x7b8] sm:$0xf]
        %v2045 = vld [vmem:[%s1549 + $0x7bc] sm:$0xf]
        %v2046 = vld [vmem:[%s1549 + $0x7c0] sm:$0xf]
        %v2047 = vld [vmem:[%s1549 + $0x7c4] sm:$0xf]
        %v2048 = vld [vmem:[%s1549 + $0x7c8] sm:$0xf]
        %v2049 = vld [vmem:[%s1549 + $0x7cc] sm:$0xf]
        %v2050 = vld [vmem:[%s1549 + $0x7d0] sm:$0xf]
        %v2051 = vld [vmem:[%s1549 + $0x7d4] sm:$0xf]
        %v2052 = vld [vmem:[%s1549 + $0x7d8] sm:$0xf]
        %v2053 = vld [vmem:[%s1549 + $0x7dc] sm:$0xf]
        %v2054 = vld [vmem:[%s1549 + $0x7e0] sm:$0xf]
        %v2055 = vld [vmem:[%s1549 + $0x7e4] sm:$0xf]
        %v2056 = vld [vmem:[%s1549 + $0x7e8] sm:$0xf]
        %v2057 = vld [vmem:[%s1549 + $0x7ec] sm:$0xf]
        %v2058 = vld [vmem:[%s1549 + $0x7f0] sm:$0xf]
        %v2059 = vld [vmem:[%s1549 + $0x7f4] sm:$0xf]
        %v2060 = vld [vmem:[%s1549 + $0x7f8] sm:$0xf]
        %v2061 = vld [vmem:[%s1549 + $0x7fc] sm:$0xf]
        %s2062 = scalar_lea.vmem [#allocation12], %s31
        %v2063 = vld [vmem:[%s2062] sm:$0x1]
        %v2064 = vld [vmem:[#allocation2] sm:$0xff]
        %v2065 = vld [vmem:[#allocation2 + $0x8] sm:$0xff]
        %v2066 = vld [vmem:[#allocation2 + $0x10] sm:$0xff]
        %v2067 = vld [vmem:[#allocation2 + $0x18] sm:$0xff]
        %v2068 = vld [vmem:[#allocation2 + $0x20] sm:$0xff]
        %v2069 = vld [vmem:[#allocation2 + $0x28] sm:$0xff]
        %v2070 = vld [vmem:[#allocation2 + $0x30] sm:$0xff]
        %v2071 = vld [vmem:[#allocation2 + $0x38] sm:$0xff]
        %v2072 = vld [vmem:[#allocation2 + $0x40] sm:$0xff]
        %v2073 = vld [vmem:[#allocation2 + $0x48] sm:$0xff]
        %v2074 = vld [vmem:[#allocation2 + $0x50] sm:$0xff]
        %v2075 = vld [vmem:[#allocation2 + $0x58] sm:$0xff]
        %v2076 = vld [vmem:[#allocation2 + $0x60] sm:$0xff]
        %v2077 = vld [vmem:[#allocation2 + $0x68] sm:$0xff]
        %v2078 = vld [vmem:[#allocation2 + $0x70] sm:$0xff]
        %v2079 = vld [vmem:[#allocation2 + $0x78] sm:$0xff]
        %v2080 = vld [vmem:[#allocation2 + $0x80] sm:$0xff]
        %v2081 = vld [vmem:[#allocation2 + $0x88] sm:$0xff]
        %v2082 = vld [vmem:[#allocation2 + $0x90] sm:$0xff]
        %v2083 = vld [vmem:[#allocation2 + $0x98] sm:$0xff]
        %v2084 = vld [vmem:[#allocation2 + $0xa0] sm:$0xff]
        %v2085 = vld [vmem:[#allocation2 + $0xa8] sm:$0xff]
        %v2086 = vld [vmem:[#allocation2 + $0xb0] sm:$0xff]
        %v2087 = vld [vmem:[#allocation2 + $0xb8] sm:$0xff]
        %v2088 = vld [vmem:[#allocation2 + $0xc0] sm:$0xff]
        %v2089 = vld [vmem:[#allocation2 + $0xc8] sm:$0xff]
        %v2090 = vld [vmem:[#allocation2 + $0xd0] sm:$0xff]
        %v2091 = vld [vmem:[#allocation2 + $0xd8] sm:$0xff]
        %v2092 = vld [vmem:[#allocation2 + $0xe0] sm:$0xff]
        %v2093 = vld [vmem:[#allocation2 + $0xe8] sm:$0xff]
        %v2094 = vld [vmem:[#allocation2 + $0xf0] sm:$0xff]
        %v2095 = vld [vmem:[#allocation2 + $0xf8] sm:$0xff]
        %v2096 = vpack.c.bf16 %v2064, %v2064
        %v2097 = vpack.c.bf16 %v2065, %v2065
        %v2098 = vpack.c.bf16 %v2066, %v2066
        %v2099 = vpack.c.bf16 %v2067, %v2067
        %v2100 = vpack.c.bf16 %v2068, %v2068
        %v2101 = vpack.c.bf16 %v2069, %v2069
        %v2102 = vpack.c.bf16 %v2070, %v2070
        %v2103 = vpack.c.bf16 %v2071, %v2071
        %v2104 = vpack.c.bf16 %v2072, %v2072
        %v2105 = vpack.c.bf16 %v2073, %v2073
        %v2106 = vpack.c.bf16 %v2074, %v2074
        %v2107 = vpack.c.bf16 %v2075, %v2075
        %v2108 = vpack.c.bf16 %v2076, %v2076
        %v2109 = vpack.c.bf16 %v2077, %v2077
        %v2110 = vpack.c.bf16 %v2078, %v2078
        %v2111 = vpack.c.bf16 %v2079, %v2079
        %v2112 = vpack.c.bf16 %v2080, %v2080
        %v2113 = vpack.c.bf16 %v2081, %v2081
        %v2114 = vpack.c.bf16 %v2082, %v2082
        %v2115 = vpack.c.bf16 %v2083, %v2083
        %v2116 = vpack.c.bf16 %v2084, %v2084
        %v2117 = vpack.c.bf16 %v2085, %v2085
        %v2118 = vpack.c.bf16 %v2086, %v2086
        %v2119 = vpack.c.bf16 %v2087, %v2087
        %v2120 = vpack.c.bf16 %v2088, %v2088
        %v2121 = vpack.c.bf16 %v2089, %v2089
        %v2122 = vpack.c.bf16 %v2090, %v2090
        %v2123 = vpack.c.bf16 %v2091, %v2091
        %v2124 = vpack.c.bf16 %v2092, %v2092
        %v2125 = vpack.c.bf16 %v2093, %v2093
        %v2126 = vpack.c.bf16 %v2094, %v2094
        %v2127 = vpack.c.bf16 %v2095, %v2095
        %v2129 = vperm.slane %v2063, 0
        %v2643 = vunpack.c.l.b16 %v1550
        %v2644 = vunpack.c.l.b16 %v1551
        %v2645 = vunpack.c.l.b16 %v1552
        %v2646 = vunpack.c.l.b16 %v1553
        %v2647 = vunpack.c.l.b16 %v1554
        %v2648 = vunpack.c.l.b16 %v1555
        %v2649 = vunpack.c.l.b16 %v1556
        %v2650 = vunpack.c.l.b16 %v1557
        %v2651 = vunpack.c.l.b16 %v1558
        %v2652 = vunpack.c.l.b16 %v1559
        %v2653 = vunpack.c.l.b16 %v1560
        %v2654 = vunpack.c.l.b16 %v1561
        %v2655 = vunpack.c.l.b16 %v1562
        %v2656 = vunpack.c.l.b16 %v1563
        %v2657 = vunpack.c.l.b16 %v1564
        %v2658 = vunpack.c.l.b16 %v1565
        %v2659 = vunpack.c.l.b16 %v1566
        %v2660 = vunpack.c.l.b16 %v1567
        %v2661 = vunpack.c.l.b16 %v1568
        %v2662 = vunpack.c.l.b16 %v1569
        %v2663 = vunpack.c.l.b16 %v1570
        %v2664 = vunpack.c.l.b16 %v1571
        %v2665 = vunpack.c.l.b16 %v1572
        %v2666 = vunpack.c.l.b16 %v1573
        %v2667 = vunpack.c.l.b16 %v1574
        %v2668 = vunpack.c.l.b16 %v1575
        %v2669 = vunpack.c.l.b16 %v1576
        %v2670 = vunpack.c.l.b16 %v1577
        %v2671 = vunpack.c.l.b16 %v1578
        %v2672 = vunpack.c.l.b16 %v1579
        %v2673 = vunpack.c.l.b16 %v1580
        %v2674 = vunpack.c.l.b16 %v1581
        %v2675 = vunpack.c.l.b16 %v1582
        %v2676 = vunpack.c.l.b16 %v1583
        %v2677 = vunpack.c.l.b16 %v1584
        %v2678 = vunpack.c.l.b16 %v1585
        %v2679 = vunpack.c.l.b16 %v1586
        %v2680 = vunpack.c.l.b16 %v1587
        %v2681 = vunpack.c.l.b16 %v1588
        %v2682 = vunpack.c.l.b16 %v1589
        %v2683 = vunpack.c.l.b16 %v1590
        %v2684 = vunpack.c.l.b16 %v1591
        %v2685 = vunpack.c.l.b16 %v1592
        %v2686 = vunpack.c.l.b16 %v1593
        %v2687 = vunpack.c.l.b16 %v1594
        %v2688 = vunpack.c.l.b16 %v1595
        %v2689 = vunpack.c.l.b16 %v1596
        %v2690 = vunpack.c.l.b16 %v1597
        %v2691 = vunpack.c.l.b16 %v1598
        %v2692 = vunpack.c.l.b16 %v1599
        %v2693 = vunpack.c.l.b16 %v1600
        %v2694 = vunpack.c.l.b16 %v1601
        %v2695 = vunpack.c.l.b16 %v1602
        %v2696 = vunpack.c.l.b16 %v1603
        %v2697 = vunpack.c.l.b16 %v1604
        %v2698 = vunpack.c.l.b16 %v1605
        %v2699 = vunpack.c.l.b16 %v1606
        %v2700 = vunpack.c.l.b16 %v1607
        %v2701 = vunpack.c.l.b16 %v1608
        %v2702 = vunpack.c.l.b16 %v1609
        %v2703 = vunpack.c.l.b16 %v1610
        %v2704 = vunpack.c.l.b16 %v1611
        %v2705 = vunpack.c.l.b16 %v1612
        %v2706 = vunpack.c.l.b16 %v1613
        %v2707 = vunpack.c.l.b16 %v1614
        %v2708 = vunpack.c.l.b16 %v1615
        %v2709 = vunpack.c.l.b16 %v1616
        %v2710 = vunpack.c.l.b16 %v1617
        %v2711 = vunpack.c.l.b16 %v1618
        %v2712 = vunpack.c.l.b16 %v1619
        %v2713 = vunpack.c.l.b16 %v1620
        %v2714 = vunpack.c.l.b16 %v1621
        %v2715 = vunpack.c.l.b16 %v1622
        %v2716 = vunpack.c.l.b16 %v1623
        %v2717 = vunpack.c.l.b16 %v1624
        %v2718 = vunpack.c.l.b16 %v1625
        %v2719 = vunpack.c.l.b16 %v1626
        %v2720 = vunpack.c.l.b16 %v1627
        %v2721 = vunpack.c.l.b16 %v1628
        %v2722 = vunpack.c.l.b16 %v1629
        %v2723 = vunpack.c.l.b16 %v1630
        %v2724 = vunpack.c.l.b16 %v1631
        %v2725 = vunpack.c.l.b16 %v1632
        %v2726 = vunpack.c.l.b16 %v1633
        %v2727 = vunpack.c.l.b16 %v1634
        %v2728 = vunpack.c.l.b16 %v1635
        %v2729 = vunpack.c.l.b16 %v1636
        %v2730 = vunpack.c.l.b16 %v1637
        %v2731 = vunpack.c.l.b16 %v1638
        %v2732 = vunpack.c.l.b16 %v1639
        %v2733 = vunpack.c.l.b16 %v1640
        %v2734 = vunpack.c.l.b16 %v1641
        %v2735 = vunpack.c.l.b16 %v1642
        %v2736 = vunpack.c.l.b16 %v1643
        %v2737 = vunpack.c.l.b16 %v1644
        %v2738 = vunpack.c.l.b16 %v1645
        %v2739 = vunpack.c.l.b16 %v1646
        %v2740 = vunpack.c.l.b16 %v1647
        %v2741 = vunpack.c.l.b16 %v1648
        %v2742 = vunpack.c.l.b16 %v1649
        %v2743 = vunpack.c.l.b16 %v1650
        %v2744 = vunpack.c.l.b16 %v1651
        %v2745 = vunpack.c.l.b16 %v1652
        %v2746 = vunpack.c.l.b16 %v1653
        %v2747 = vunpack.c.l.b16 %v1654
        %v2748 = vunpack.c.l.b16 %v1655
        %v2749 = vunpack.c.l.b16 %v1656
        %v2750 = vunpack.c.l.b16 %v1657
        %v2751 = vunpack.c.l.b16 %v1658
        %v2752 = vunpack.c.l.b16 %v1659
        %v2753 = vunpack.c.l.b16 %v1660
        %v2754 = vunpack.c.l.b16 %v1661
        %v2755 = vunpack.c.l.b16 %v1662
        %v2756 = vunpack.c.l.b16 %v1663
        %v2757 = vunpack.c.l.b16 %v1664
        %v2758 = vunpack.c.l.b16 %v1665
        %v2759 = vunpack.c.l.b16 %v1666
        %v2760 = vunpack.c.l.b16 %v1667
        %v2761 = vunpack.c.l.b16 %v1668
        %v2762 = vunpack.c.l.b16 %v1669
        %v2763 = vunpack.c.l.b16 %v1670
        %v2764 = vunpack.c.l.b16 %v1671
        %v2765 = vunpack.c.l.b16 %v1672
        %v2766 = vunpack.c.l.b16 %v1673
        %v2767 = vunpack.c.l.b16 %v1674
        %v2768 = vunpack.c.l.b16 %v1675
        %v2769 = vunpack.c.l.b16 %v1676
        %v2770 = vunpack.c.l.b16 %v1677
        %v2771 = vunpack.c.l.b16 %v1678
        %v2772 = vunpack.c.l.b16 %v1679
        %v2773 = vunpack.c.l.b16 %v1680
        %v2774 = vunpack.c.l.b16 %v1681
        %v2775 = vunpack.c.l.b16 %v1682
        %v2776 = vunpack.c.l.b16 %v1683
        %v2777 = vunpack.c.l.b16 %v1684
        %v2778 = vunpack.c.l.b16 %v1685
        %v2779 = vunpack.c.l.b16 %v1686
        %v2780 = vunpack.c.l.b16 %v1687
        %v2781 = vunpack.c.l.b16 %v1688
        %v2782 = vunpack.c.l.b16 %v1689
        %v2783 = vunpack.c.l.b16 %v1690
        %v2784 = vunpack.c.l.b16 %v1691
        %v2785 = vunpack.c.l.b16 %v1692
        %v2786 = vunpack.c.l.b16 %v1693
        %v2787 = vunpack.c.l.b16 %v1694
        %v2788 = vunpack.c.l.b16 %v1695
        %v2789 = vunpack.c.l.b16 %v1696
        %v2790 = vunpack.c.l.b16 %v1697
        %v2791 = vunpack.c.l.b16 %v1698
        %v2792 = vunpack.c.l.b16 %v1699
        %v2793 = vunpack.c.l.b16 %v1700
        %v2794 = vunpack.c.l.b16 %v1701
        %v2795 = vunpack.c.l.b16 %v1702
        %v2796 = vunpack.c.l.b16 %v1703
        %v2797 = vunpack.c.l.b16 %v1704
        %v2798 = vunpack.c.l.b16 %v1705
        %v2799 = vunpack.c.l.b16 %v1706
        %v2800 = vunpack.c.l.b16 %v1707
        %v2801 = vunpack.c.l.b16 %v1708
        %v2802 = vunpack.c.l.b16 %v1709
        %v2803 = vunpack.c.l.b16 %v1710
        %v2804 = vunpack.c.l.b16 %v1711
        %v2805 = vunpack.c.l.b16 %v1712
        %v2806 = vunpack.c.l.b16 %v1713
        %v2807 = vunpack.c.l.b16 %v1714
        %v2808 = vunpack.c.l.b16 %v1715
        %v2809 = vunpack.c.l.b16 %v1716
        %v2810 = vunpack.c.l.b16 %v1717
        %v2811 = vunpack.c.l.b16 %v1718
        %v2812 = vunpack.c.l.b16 %v1719
        %v2813 = vunpack.c.l.b16 %v1720
        %v2814 = vunpack.c.l.b16 %v1721
        %v2815 = vunpack.c.l.b16 %v1722
        %v2816 = vunpack.c.l.b16 %v1723
        %v2817 = vunpack.c.l.b16 %v1724
        %v2818 = vunpack.c.l.b16 %v1725
        %v2819 = vunpack.c.l.b16 %v1726
        %v2820 = vunpack.c.l.b16 %v1727
        %v2821 = vunpack.c.l.b16 %v1728
        %v2822 = vunpack.c.l.b16 %v1729
        %v2823 = vunpack.c.l.b16 %v1730
        %v2824 = vunpack.c.l.b16 %v1731
        %v2825 = vunpack.c.l.b16 %v1732
        %v2826 = vunpack.c.l.b16 %v1733
        %v2827 = vunpack.c.l.b16 %v1734
        %v2828 = vunpack.c.l.b16 %v1735
        %v2829 = vunpack.c.l.b16 %v1736
        %v2830 = vunpack.c.l.b16 %v1737
        %v2831 = vunpack.c.l.b16 %v1738
        %v2832 = vunpack.c.l.b16 %v1739
        %v2833 = vunpack.c.l.b16 %v1740
        %v2834 = vunpack.c.l.b16 %v1741
        %v2835 = vunpack.c.l.b16 %v1742
        %v2836 = vunpack.c.l.b16 %v1743
        %v2837 = vunpack.c.l.b16 %v1744
        %v2838 = vunpack.c.l.b16 %v1745
        %v2839 = vunpack.c.l.b16 %v1746
        %v2840 = vunpack.c.l.b16 %v1747
        %v2841 = vunpack.c.l.b16 %v1748
        %v2842 = vunpack.c.l.b16 %v1749
        %v2843 = vunpack.c.l.b16 %v1750
        %v2844 = vunpack.c.l.b16 %v1751
        %v2845 = vunpack.c.l.b16 %v1752
        %v2846 = vunpack.c.l.b16 %v1753
        %v2847 = vunpack.c.l.b16 %v1754
        %v2848 = vunpack.c.l.b16 %v1755
        %v2849 = vunpack.c.l.b16 %v1756
        %v2850 = vunpack.c.l.b16 %v1757
        %v2851 = vunpack.c.l.b16 %v1758
        %v2852 = vunpack.c.l.b16 %v1759
        %v2853 = vunpack.c.l.b16 %v1760
        %v2854 = vunpack.c.l.b16 %v1761
        %v2855 = vunpack.c.l.b16 %v1762
        %v2856 = vunpack.c.l.b16 %v1763
        %v2857 = vunpack.c.l.b16 %v1764
        %v2858 = vunpack.c.l.b16 %v1765
        %v2859 = vunpack.c.l.b16 %v1766
        %v2860 = vunpack.c.l.b16 %v1767
        %v2861 = vunpack.c.l.b16 %v1768
        %v2862 = vunpack.c.l.b16 %v1769
        %v2863 = vunpack.c.l.b16 %v1770
        %v2864 = vunpack.c.l.b16 %v1771
        %v2865 = vunpack.c.l.b16 %v1772
        %v2866 = vunpack.c.l.b16 %v1773
        %v2867 = vunpack.c.l.b16 %v1774
        %v2868 = vunpack.c.l.b16 %v1775
        %v2869 = vunpack.c.l.b16 %v1776
        %v2870 = vunpack.c.l.b16 %v1777
        %v2871 = vunpack.c.l.b16 %v1778
        %v2872 = vunpack.c.l.b16 %v1779
        %v2873 = vunpack.c.l.b16 %v1780
        %v2874 = vunpack.c.l.b16 %v1781
        %v2875 = vunpack.c.l.b16 %v1782
        %v2876 = vunpack.c.l.b16 %v1783
        %v2877 = vunpack.c.l.b16 %v1784
        %v2878 = vunpack.c.l.b16 %v1785
        %v2879 = vunpack.c.l.b16 %v1786
        %v2880 = vunpack.c.l.b16 %v1787
        %v2881 = vunpack.c.l.b16 %v1788
        %v2882 = vunpack.c.l.b16 %v1789
        %v2883 = vunpack.c.l.b16 %v1790
        %v2884 = vunpack.c.l.b16 %v1791
        %v2885 = vunpack.c.l.b16 %v1792
        %v2886 = vunpack.c.l.b16 %v1793
        %v2887 = vunpack.c.l.b16 %v1794
        %v2888 = vunpack.c.l.b16 %v1795
        %v2889 = vunpack.c.l.b16 %v1796
        %v2890 = vunpack.c.l.b16 %v1797
        %v2891 = vunpack.c.l.b16 %v1798
        %v2892 = vunpack.c.l.b16 %v1799
        %v2893 = vunpack.c.l.b16 %v1800
        %v2894 = vunpack.c.l.b16 %v1801
        %v2895 = vunpack.c.l.b16 %v1802
        %v2896 = vunpack.c.l.b16 %v1803
        %v2897 = vunpack.c.l.b16 %v1804
        %v2898 = vunpack.c.l.b16 %v1805
        %v2899 = vunpack.c.l.b16 %v1806
        %v2900 = vunpack.c.l.b16 %v1807
        %v2901 = vunpack.c.l.b16 %v1808
        %v2902 = vunpack.c.l.b16 %v1809
        %v2903 = vunpack.c.l.b16 %v1810
        %v2904 = vunpack.c.l.b16 %v1811
        %v2905 = vunpack.c.l.b16 %v1812
        %v2906 = vunpack.c.l.b16 %v1813
        %v2907 = vunpack.c.l.b16 %v1814
        %v2908 = vunpack.c.l.b16 %v1815
        %v2909 = vunpack.c.l.b16 %v1816
        %v2910 = vunpack.c.l.b16 %v1817
        %v2911 = vunpack.c.l.b16 %v1818
        %v2912 = vunpack.c.l.b16 %v1819
        %v2913 = vunpack.c.l.b16 %v1820
        %v2914 = vunpack.c.l.b16 %v1821
        %v2915 = vunpack.c.l.b16 %v1822
        %v2916 = vunpack.c.l.b16 %v1823
        %v2917 = vunpack.c.l.b16 %v1824
        %v2918 = vunpack.c.l.b16 %v1825
        %v2919 = vunpack.c.l.b16 %v1826
        %v2920 = vunpack.c.l.b16 %v1827
        %v2921 = vunpack.c.l.b16 %v1828
        %v2922 = vunpack.c.l.b16 %v1829
        %v2923 = vunpack.c.l.b16 %v1830
        %v2924 = vunpack.c.l.b16 %v1831
        %v2925 = vunpack.c.l.b16 %v1832
        %v2926 = vunpack.c.l.b16 %v1833
        %v2927 = vunpack.c.l.b16 %v1834
        %v2928 = vunpack.c.l.b16 %v1835
        %v2929 = vunpack.c.l.b16 %v1836
        %v2930 = vunpack.c.l.b16 %v1837
        %v2931 = vunpack.c.l.b16 %v1838
        %v2932 = vunpack.c.l.b16 %v1839
        %v2933 = vunpack.c.l.b16 %v1840
        %v2934 = vunpack.c.l.b16 %v1841
        %v2935 = vunpack.c.l.b16 %v1842
        %v2936 = vunpack.c.l.b16 %v1843
        %v2937 = vunpack.c.l.b16 %v1844
        %v2938 = vunpack.c.l.b16 %v1845
        %v2939 = vunpack.c.l.b16 %v1846
        %v2940 = vunpack.c.l.b16 %v1847
        %v2941 = vunpack.c.l.b16 %v1848
        %v2942 = vunpack.c.l.b16 %v1849
        %v2943 = vunpack.c.l.b16 %v1850
        %v2944 = vunpack.c.l.b16 %v1851
        %v2945 = vunpack.c.l.b16 %v1852
        %v2946 = vunpack.c.l.b16 %v1853
        %v2947 = vunpack.c.l.b16 %v1854
        %v2948 = vunpack.c.l.b16 %v1855
        %v2949 = vunpack.c.l.b16 %v1856
        %v2950 = vunpack.c.l.b16 %v1857
        %v2951 = vunpack.c.l.b16 %v1858
        %v2952 = vunpack.c.l.b16 %v1859
        %v2953 = vunpack.c.l.b16 %v1860
        %v2954 = vunpack.c.l.b16 %v1861
        %v2955 = vunpack.c.l.b16 %v1862
        %v2956 = vunpack.c.l.b16 %v1863
        %v2957 = vunpack.c.l.b16 %v1864
        %v2958 = vunpack.c.l.b16 %v1865
        %v2959 = vunpack.c.l.b16 %v1866
        %v2960 = vunpack.c.l.b16 %v1867
        %v2961 = vunpack.c.l.b16 %v1868
        %v2962 = vunpack.c.l.b16 %v1869
        %v2963 = vunpack.c.l.b16 %v1870
        %v2964 = vunpack.c.l.b16 %v1871
        %v2965 = vunpack.c.l.b16 %v1872
        %v2966 = vunpack.c.l.b16 %v1873
        %v2967 = vunpack.c.l.b16 %v1874
        %v2968 = vunpack.c.l.b16 %v1875
        %v2969 = vunpack.c.l.b16 %v1876
        %v2970 = vunpack.c.l.b16 %v1877
        %v2971 = vunpack.c.l.b16 %v1878
        %v2972 = vunpack.c.l.b16 %v1879
        %v2973 = vunpack.c.l.b16 %v1880
        %v2974 = vunpack.c.l.b16 %v1881
        %v2975 = vunpack.c.l.b16 %v1882
        %v2976 = vunpack.c.l.b16 %v1883
        %v2977 = vunpack.c.l.b16 %v1884
        %v2978 = vunpack.c.l.b16 %v1885
        %v2979 = vunpack.c.l.b16 %v1886
        %v2980 = vunpack.c.l.b16 %v1887
        %v2981 = vunpack.c.l.b16 %v1888
        %v2982 = vunpack.c.l.b16 %v1889
        %v2983 = vunpack.c.l.b16 %v1890
        %v2984 = vunpack.c.l.b16 %v1891
        %v2985 = vunpack.c.l.b16 %v1892
        %v2986 = vunpack.c.l.b16 %v1893
        %v2987 = vunpack.c.l.b16 %v1894
        %v2988 = vunpack.c.l.b16 %v1895
        %v2989 = vunpack.c.l.b16 %v1896
        %v2990 = vunpack.c.l.b16 %v1897
        %v2991 = vunpack.c.l.b16 %v1898
        %v2992 = vunpack.c.l.b16 %v1899
        %v2993 = vunpack.c.l.b16 %v1900
        %v2994 = vunpack.c.l.b16 %v1901
        %v2995 = vunpack.c.l.b16 %v1902
        %v2996 = vunpack.c.l.b16 %v1903
        %v2997 = vunpack.c.l.b16 %v1904
        %v2998 = vunpack.c.l.b16 %v1905
        %v2999 = vunpack.c.l.b16 %v1906
        %v3000 = vunpack.c.l.b16 %v1907
        %v3001 = vunpack.c.l.b16 %v1908
        %v3002 = vunpack.c.l.b16 %v1909
        %v3003 = vunpack.c.l.b16 %v1910
        %v3004 = vunpack.c.l.b16 %v1911
        %v3005 = vunpack.c.l.b16 %v1912
        %v3006 = vunpack.c.l.b16 %v1913
        %v3007 = vunpack.c.l.b16 %v1914
        %v3008 = vunpack.c.l.b16 %v1915
        %v3009 = vunpack.c.l.b16 %v1916
        %v3010 = vunpack.c.l.b16 %v1917
        %v3011 = vunpack.c.l.b16 %v1918
        %v3012 = vunpack.c.l.b16 %v1919
        %v3013 = vunpack.c.l.b16 %v1920
        %v3014 = vunpack.c.l.b16 %v1921
        %v3015 = vunpack.c.l.b16 %v1922
        %v3016 = vunpack.c.l.b16 %v1923
        %v3017 = vunpack.c.l.b16 %v1924
        %v3018 = vunpack.c.l.b16 %v1925
        %v3019 = vunpack.c.l.b16 %v1926
        %v3020 = vunpack.c.l.b16 %v1927
        %v3021 = vunpack.c.l.b16 %v1928
        %v3022 = vunpack.c.l.b16 %v1929
        %v3023 = vunpack.c.l.b16 %v1930
        %v3024 = vunpack.c.l.b16 %v1931
        %v3025 = vunpack.c.l.b16 %v1932
        %v3026 = vunpack.c.l.b16 %v1933
        %v3027 = vunpack.c.l.b16 %v1934
        %v3028 = vunpack.c.l.b16 %v1935
        %v3029 = vunpack.c.l.b16 %v1936
        %v3030 = vunpack.c.l.b16 %v1937
        %v3031 = vunpack.c.l.b16 %v1938
        %v3032 = vunpack.c.l.b16 %v1939
        %v3033 = vunpack.c.l.b16 %v1940
        %v3034 = vunpack.c.l.b16 %v1941
        %v3035 = vunpack.c.l.b16 %v1942
        %v3036 = vunpack.c.l.b16 %v1943
        %v3037 = vunpack.c.l.b16 %v1944
        %v3038 = vunpack.c.l.b16 %v1945
        %v3039 = vunpack.c.l.b16 %v1946
        %v3040 = vunpack.c.l.b16 %v1947
        %v3041 = vunpack.c.l.b16 %v1948
        %v3042 = vunpack.c.l.b16 %v1949
        %v3043 = vunpack.c.l.b16 %v1950
        %v3044 = vunpack.c.l.b16 %v1951
        %v3045 = vunpack.c.l.b16 %v1952
        %v3046 = vunpack.c.l.b16 %v1953
        %v3047 = vunpack.c.l.b16 %v1954
        %v3048 = vunpack.c.l.b16 %v1955
        %v3049 = vunpack.c.l.b16 %v1956
        %v3050 = vunpack.c.l.b16 %v1957
        %v3051 = vunpack.c.l.b16 %v1958
        %v3052 = vunpack.c.l.b16 %v1959
        %v3053 = vunpack.c.l.b16 %v1960
        %v3054 = vunpack.c.l.b16 %v1961
        %v3055 = vunpack.c.l.b16 %v1962
        %v3056 = vunpack.c.l.b16 %v1963
        %v3057 = vunpack.c.l.b16 %v1964
        %v3058 = vunpack.c.l.b16 %v1965
        %v3059 = vunpack.c.l.b16 %v1966
        %v3060 = vunpack.c.l.b16 %v1967
        %v3061 = vunpack.c.l.b16 %v1968
        %v3062 = vunpack.c.l.b16 %v1969
        %v3063 = vunpack.c.l.b16 %v1970
        %v3064 = vunpack.c.l.b16 %v1971
        %v3065 = vunpack.c.l.b16 %v1972
        %v3066 = vunpack.c.l.b16 %v1973
        %v3067 = vunpack.c.l.b16 %v1974
        %v3068 = vunpack.c.l.b16 %v1975
        %v3069 = vunpack.c.l.b16 %v1976
        %v3070 = vunpack.c.l.b16 %v1977
        %v3071 = vunpack.c.l.b16 %v1978
        %v3072 = vunpack.c.l.b16 %v1979
        %v3073 = vunpack.c.l.b16 %v1980
        %v3074 = vunpack.c.l.b16 %v1981
        %v3075 = vunpack.c.l.b16 %v1982
        %v3076 = vunpack.c.l.b16 %v1983
        %v3077 = vunpack.c.l.b16 %v1984
        %v3078 = vunpack.c.l.b16 %v1985
        %v3079 = vunpack.c.l.b16 %v1986
        %v3080 = vunpack.c.l.b16 %v1987
        %v3081 = vunpack.c.l.b16 %v1988
        %v3082 = vunpack.c.l.b16 %v1989
        %v3083 = vunpack.c.l.b16 %v1990
        %v3084 = vunpack.c.l.b16 %v1991
        %v3085 = vunpack.c.l.b16 %v1992
        %v3086 = vunpack.c.l.b16 %v1993
        %v3087 = vunpack.c.l.b16 %v1994
        %v3088 = vunpack.c.l.b16 %v1995
        %v3089 = vunpack.c.l.b16 %v1996
        %v3090 = vunpack.c.l.b16 %v1997
        %v3091 = vunpack.c.l.b16 %v1998
        %v3092 = vunpack.c.l.b16 %v1999
        %v3093 = vunpack.c.l.b16 %v2000
        %v3094 = vunpack.c.l.b16 %v2001
        %v3095 = vunpack.c.l.b16 %v2002
        %v3096 = vunpack.c.l.b16 %v2003
        %v3097 = vunpack.c.l.b16 %v2004
        %v3098 = vunpack.c.l.b16 %v2005
        %v3099 = vunpack.c.l.b16 %v2006
        %v3100 = vunpack.c.l.b16 %v2007
        %v3101 = vunpack.c.l.b16 %v2008
        %v3102 = vunpack.c.l.b16 %v2009
        %v3103 = vunpack.c.l.b16 %v2010
        %v3104 = vunpack.c.l.b16 %v2011
        %v3105 = vunpack.c.l.b16 %v2012
        %v3106 = vunpack.c.l.b16 %v2013
        %v3107 = vunpack.c.l.b16 %v2014
        %v3108 = vunpack.c.l.b16 %v2015
        %v3109 = vunpack.c.l.b16 %v2016
        %v3110 = vunpack.c.l.b16 %v2017
        %v3111 = vunpack.c.l.b16 %v2018
        %v3112 = vunpack.c.l.b16 %v2019
        %v3113 = vunpack.c.l.b16 %v2020
        %v3114 = vunpack.c.l.b16 %v2021
        %v3115 = vunpack.c.l.b16 %v2022
        %v3116 = vunpack.c.l.b16 %v2023
        %v3117 = vunpack.c.l.b16 %v2024
        %v3118 = vunpack.c.l.b16 %v2025
        %v3119 = vunpack.c.l.b16 %v2026
        %v3120 = vunpack.c.l.b16 %v2027
        %v3121 = vunpack.c.l.b16 %v2028
        %v3122 = vunpack.c.l.b16 %v2029
        %v3123 = vunpack.c.l.b16 %v2030
        %v3124 = vunpack.c.l.b16 %v2031
        %v3125 = vunpack.c.l.b16 %v2032
        %v3126 = vunpack.c.l.b16 %v2033
        %v3127 = vunpack.c.l.b16 %v2034
        %v3128 = vunpack.c.l.b16 %v2035
        %v3129 = vunpack.c.l.b16 %v2036
        %v3130 = vunpack.c.l.b16 %v2037
        %v3131 = vunpack.c.l.b16 %v2038
        %v3132 = vunpack.c.l.b16 %v2039
        %v3133 = vunpack.c.l.b16 %v2040
        %v3134 = vunpack.c.l.b16 %v2041
        %v3135 = vunpack.c.l.b16 %v2042
        %v3136 = vunpack.c.l.b16 %v2043
        %v3137 = vunpack.c.l.b16 %v2044
        %v3138 = vunpack.c.l.b16 %v2045
        %v3139 = vunpack.c.l.b16 %v2046
        %v3140 = vunpack.c.l.b16 %v2047
        %v3141 = vunpack.c.l.b16 %v2048
        %v3142 = vunpack.c.l.b16 %v2049
        %v3143 = vunpack.c.l.b16 %v2050
        %v3144 = vunpack.c.l.b16 %v2051
        %v3145 = vunpack.c.l.b16 %v2052
        %v3146 = vunpack.c.l.b16 %v2053
        %v3147 = vunpack.c.l.b16 %v2054
        %v3148 = vunpack.c.l.b16 %v2055
        %v3149 = vunpack.c.l.b16 %v2056
        %v3150 = vunpack.c.l.b16 %v2057
        %v3151 = vunpack.c.l.b16 %v2058
        %v3152 = vunpack.c.l.b16 %v2059
        %v3153 = vunpack.c.l.b16 %v2060
        %v3154 = vunpack.c.l.b16 %v2061
        %v3155 = vpack.c.b16 %v2644, %v2643
        %v3156 = vpack.c.b16 %v2646, %v2645
        %v3157 = vpack.c.b16 %v2648, %v2647
        %v3158 = vpack.c.b16 %v2650, %v2649
        %v3159 = vpack.c.b16 %v2652, %v2651
        %v3160 = vpack.c.b16 %v2654, %v2653
        %v3161 = vpack.c.b16 %v2656, %v2655
        %v3162 = vpack.c.b16 %v2658, %v2657
        %v3163 = vpack.c.b16 %v2660, %v2659
        %v3164 = vpack.c.b16 %v2662, %v2661
        %v3165 = vpack.c.b16 %v2664, %v2663
        %v3166 = vpack.c.b16 %v2666, %v2665
        %v3167 = vpack.c.b16 %v2668, %v2667
        %v3168 = vpack.c.b16 %v2670, %v2669
        %v3169 = vpack.c.b16 %v2672, %v2671
        %v3170 = vpack.c.b16 %v2674, %v2673
        %v3171 = vpack.c.b16 %v2676, %v2675
        %v3172 = vpack.c.b16 %v2678, %v2677
        %v3173 = vpack.c.b16 %v2680, %v2679
        %v3174 = vpack.c.b16 %v2682, %v2681
        %v3175 = vpack.c.b16 %v2684, %v2683
        %v3176 = vpack.c.b16 %v2686, %v2685
        %v3177 = vpack.c.b16 %v2688, %v2687
        %v3178 = vpack.c.b16 %v2690, %v2689
        %v3179 = vpack.c.b16 %v2692, %v2691
        %v3180 = vpack.c.b16 %v2694, %v2693
        %v3181 = vpack.c.b16 %v2696, %v2695
        %v3182 = vpack.c.b16 %v2698, %v2697
        %v3183 = vpack.c.b16 %v2700, %v2699
        %v3184 = vpack.c.b16 %v2702, %v2701
        %v3185 = vpack.c.b16 %v2704, %v2703
        %v3186 = vpack.c.b16 %v2706, %v2705
        %v3187 = vpack.c.b16 %v2708, %v2707
        %v3188 = vpack.c.b16 %v2710, %v2709
        %v3189 = vpack.c.b16 %v2712, %v2711
        %v3190 = vpack.c.b16 %v2714, %v2713
        %v3191 = vpack.c.b16 %v2716, %v2715
        %v3192 = vpack.c.b16 %v2718, %v2717
        %v3193 = vpack.c.b16 %v2720, %v2719
        %v3194 = vpack.c.b16 %v2722, %v2721
        %v3195 = vpack.c.b16 %v2724, %v2723
        %v3196 = vpack.c.b16 %v2726, %v2725
        %v3197 = vpack.c.b16 %v2728, %v2727
        %v3198 = vpack.c.b16 %v2730, %v2729
        %v3199 = vpack.c.b16 %v2732, %v2731
        %v3200 = vpack.c.b16 %v2734, %v2733
        %v3201 = vpack.c.b16 %v2736, %v2735
        %v3202 = vpack.c.b16 %v2738, %v2737
        %v3203 = vpack.c.b16 %v2740, %v2739
        %v3204 = vpack.c.b16 %v2742, %v2741
        %v3205 = vpack.c.b16 %v2744, %v2743
        %v3206 = vpack.c.b16 %v2746, %v2745
        %v3207 = vpack.c.b16 %v2748, %v2747
        %v3208 = vpack.c.b16 %v2750, %v2749
        %v3209 = vpack.c.b16 %v2752, %v2751
        %v3210 = vpack.c.b16 %v2754, %v2753
        %v3211 = vpack.c.b16 %v2756, %v2755
        %v3212 = vpack.c.b16 %v2758, %v2757
        %v3213 = vpack.c.b16 %v2760, %v2759
        %v3214 = vpack.c.b16 %v2762, %v2761
        %v3215 = vpack.c.b16 %v2764, %v2763
        %v3216 = vpack.c.b16 %v2766, %v2765
        %v3217 = vpack.c.b16 %v2768, %v2767
        %v3218 = vpack.c.b16 %v2770, %v2769
        %v3219 = vpack.c.b16 %v2772, %v2771
        %v3220 = vpack.c.b16 %v2774, %v2773
        %v3221 = vpack.c.b16 %v2776, %v2775
        %v3222 = vpack.c.b16 %v2778, %v2777
        %v3223 = vpack.c.b16 %v2780, %v2779
        %v3224 = vpack.c.b16 %v2782, %v2781
        %v3225 = vpack.c.b16 %v2784, %v2783
        %v3226 = vpack.c.b16 %v2786, %v2785
        %v3227 = vpack.c.b16 %v2788, %v2787
        %v3228 = vpack.c.b16 %v2790, %v2789
        %v3229 = vpack.c.b16 %v2792, %v2791
        %v3230 = vpack.c.b16 %v2794, %v2793
        %v3231 = vpack.c.b16 %v2796, %v2795
        %v3232 = vpack.c.b16 %v2798, %v2797
        %v3233 = vpack.c.b16 %v2800, %v2799
        %v3234 = vpack.c.b16 %v2802, %v2801
        %v3235 = vpack.c.b16 %v2804, %v2803
        %v3236 = vpack.c.b16 %v2806, %v2805
        %v3237 = vpack.c.b16 %v2808, %v2807
        %v3238 = vpack.c.b16 %v2810, %v2809
        %v3239 = vpack.c.b16 %v2812, %v2811
        %v3240 = vpack.c.b16 %v2814, %v2813
        %v3241 = vpack.c.b16 %v2816, %v2815
        %v3242 = vpack.c.b16 %v2818, %v2817
        %v3243 = vpack.c.b16 %v2820, %v2819
        %v3244 = vpack.c.b16 %v2822, %v2821
        %v3245 = vpack.c.b16 %v2824, %v2823
        %v3246 = vpack.c.b16 %v2826, %v2825
        %v3247 = vpack.c.b16 %v2828, %v2827
        %v3248 = vpack.c.b16 %v2830, %v2829
        %v3249 = vpack.c.b16 %v2832, %v2831
        %v3250 = vpack.c.b16 %v2834, %v2833
        %v3251 = vpack.c.b16 %v2836, %v2835
        %v3252 = vpack.c.b16 %v2838, %v2837
        %v3253 = vpack.c.b16 %v2840, %v2839
        %v3254 = vpack.c.b16 %v2842, %v2841
        %v3255 = vpack.c.b16 %v2844, %v2843
        %v3256 = vpack.c.b16 %v2846, %v2845
        %v3257 = vpack.c.b16 %v2848, %v2847
        %v3258 = vpack.c.b16 %v2850, %v2849
        %v3259 = vpack.c.b16 %v2852, %v2851
        %v3260 = vpack.c.b16 %v2854, %v2853
        %v3261 = vpack.c.b16 %v2856, %v2855
        %v3262 = vpack.c.b16 %v2858, %v2857
        %v3263 = vpack.c.b16 %v2860, %v2859
        %v3264 = vpack.c.b16 %v2862, %v2861
        %v3265 = vpack.c.b16 %v2864, %v2863
        %v3266 = vpack.c.b16 %v2866, %v2865
        %v3267 = vpack.c.b16 %v2868, %v2867
        %v3268 = vpack.c.b16 %v2870, %v2869
        %v3269 = vpack.c.b16 %v2872, %v2871
        %v3270 = vpack.c.b16 %v2874, %v2873
        %v3271 = vpack.c.b16 %v2876, %v2875
        %v3272 = vpack.c.b16 %v2878, %v2877
        %v3273 = vpack.c.b16 %v2880, %v2879
        %v3274 = vpack.c.b16 %v2882, %v2881
        %v3275 = vpack.c.b16 %v2884, %v2883
        %v3276 = vpack.c.b16 %v2886, %v2885
        %v3277 = vpack.c.b16 %v2888, %v2887
        %v3278 = vpack.c.b16 %v2890, %v2889
        %v3279 = vpack.c.b16 %v2892, %v2891
        %v3280 = vpack.c.b16 %v2894, %v2893
        %v3281 = vpack.c.b16 %v2896, %v2895
        %v3282 = vpack.c.b16 %v2898, %v2897
        %v3283 = vpack.c.b16 %v2900, %v2899
        %v3284 = vpack.c.b16 %v2902, %v2901
        %v3285 = vpack.c.b16 %v2904, %v2903
        %v3286 = vpack.c.b16 %v2906, %v2905
        %v3287 = vpack.c.b16 %v2908, %v2907
        %v3288 = vpack.c.b16 %v2910, %v2909
        %v3289 = vpack.c.b16 %v2912, %v2911
        %v3290 = vpack.c.b16 %v2914, %v2913
        %v3291 = vpack.c.b16 %v2916, %v2915
        %v3292 = vpack.c.b16 %v2918, %v2917
        %v3293 = vpack.c.b16 %v2920, %v2919
        %v3294 = vpack.c.b16 %v2922, %v2921
        %v3295 = vpack.c.b16 %v2924, %v2923
        %v3296 = vpack.c.b16 %v2926, %v2925
        %v3297 = vpack.c.b16 %v2928, %v2927
        %v3298 = vpack.c.b16 %v2930, %v2929
        %v3299 = vpack.c.b16 %v2932, %v2931
        %v3300 = vpack.c.b16 %v2934, %v2933
        %v3301 = vpack.c.b16 %v2936, %v2935
        %v3302 = vpack.c.b16 %v2938, %v2937
        %v3303 = vpack.c.b16 %v2940, %v2939
        %v3304 = vpack.c.b16 %v2942, %v2941
        %v3305 = vpack.c.b16 %v2944, %v2943
        %v3306 = vpack.c.b16 %v2946, %v2945
        %v3307 = vpack.c.b16 %v2948, %v2947
        %v3308 = vpack.c.b16 %v2950, %v2949
        %v3309 = vpack.c.b16 %v2952, %v2951
        %v3310 = vpack.c.b16 %v2954, %v2953
        %v3311 = vpack.c.b16 %v2956, %v2955
        %v3312 = vpack.c.b16 %v2958, %v2957
        %v3313 = vpack.c.b16 %v2960, %v2959
        %v3314 = vpack.c.b16 %v2962, %v2961
        %v3315 = vpack.c.b16 %v2964, %v2963
        %v3316 = vpack.c.b16 %v2966, %v2965
        %v3317 = vpack.c.b16 %v2968, %v2967
        %v3318 = vpack.c.b16 %v2970, %v2969
        %v3319 = vpack.c.b16 %v2972, %v2971
        %v3320 = vpack.c.b16 %v2974, %v2973
        %v3321 = vpack.c.b16 %v2976, %v2975
        %v3322 = vpack.c.b16 %v2978, %v2977
        %v3323 = vpack.c.b16 %v2980, %v2979
        %v3324 = vpack.c.b16 %v2982, %v2981
        %v3325 = vpack.c.b16 %v2984, %v2983
        %v3326 = vpack.c.b16 %v2986, %v2985
        %v3327 = vpack.c.b16 %v2988, %v2987
        %v3328 = vpack.c.b16 %v2990, %v2989
        %v3329 = vpack.c.b16 %v2992, %v2991
        %v3330 = vpack.c.b16 %v2994, %v2993
        %v3331 = vpack.c.b16 %v2996, %v2995
        %v3332 = vpack.c.b16 %v2998, %v2997
        %v3333 = vpack.c.b16 %v3000, %v2999
        %v3334 = vpack.c.b16 %v3002, %v3001
        %v3335 = vpack.c.b16 %v3004, %v3003
        %v3336 = vpack.c.b16 %v3006, %v3005
        %v3337 = vpack.c.b16 %v3008, %v3007
        %v3338 = vpack.c.b16 %v3010, %v3009
        %v3339 = vpack.c.b16 %v3012, %v3011
        %v3340 = vpack.c.b16 %v3014, %v3013
        %v3341 = vpack.c.b16 %v3016, %v3015
        %v3342 = vpack.c.b16 %v3018, %v3017
        %v3343 = vpack.c.b16 %v3020, %v3019
        %v3344 = vpack.c.b16 %v3022, %v3021
        %v3345 = vpack.c.b16 %v3024, %v3023
        %v3346 = vpack.c.b16 %v3026, %v3025
        %v3347 = vpack.c.b16 %v3028, %v3027
        %v3348 = vpack.c.b16 %v3030, %v3029
        %v3349 = vpack.c.b16 %v3032, %v3031
        %v3350 = vpack.c.b16 %v3034, %v3033
        %v3351 = vpack.c.b16 %v3036, %v3035
        %v3352 = vpack.c.b16 %v3038, %v3037
        %v3353 = vpack.c.b16 %v3040, %v3039
        %v3354 = vpack.c.b16 %v3042, %v3041
        %v3355 = vpack.c.b16 %v3044, %v3043
        %v3356 = vpack.c.b16 %v3046, %v3045
        %v3357 = vpack.c.b16 %v3048, %v3047
        %v3358 = vpack.c.b16 %v3050, %v3049
        %v3359 = vpack.c.b16 %v3052, %v3051
        %v3360 = vpack.c.b16 %v3054, %v3053
        %v3361 = vpack.c.b16 %v3056, %v3055
        %v3362 = vpack.c.b16 %v3058, %v3057
        %v3363 = vpack.c.b16 %v3060, %v3059
        %v3364 = vpack.c.b16 %v3062, %v3061
        %v3365 = vpack.c.b16 %v3064, %v3063
        %v3366 = vpack.c.b16 %v3066, %v3065
        %v3367 = vpack.c.b16 %v3068, %v3067
        %v3368 = vpack.c.b16 %v3070, %v3069
        %v3369 = vpack.c.b16 %v3072, %v3071
        %v3370 = vpack.c.b16 %v3074, %v3073
        %v3371 = vpack.c.b16 %v3076, %v3075
        %v3372 = vpack.c.b16 %v3078, %v3077
        %v3373 = vpack.c.b16 %v3080, %v3079
        %v3374 = vpack.c.b16 %v3082, %v3081
        %v3375 = vpack.c.b16 %v3084, %v3083
        %v3376 = vpack.c.b16 %v3086, %v3085
        %v3377 = vpack.c.b16 %v3088, %v3087
        %v3378 = vpack.c.b16 %v3090, %v3089
        %v3379 = vpack.c.b16 %v3092, %v3091
        %v3380 = vpack.c.b16 %v3094, %v3093
        %v3381 = vpack.c.b16 %v3096, %v3095
        %v3382 = vpack.c.b16 %v3098, %v3097
        %v3383 = vpack.c.b16 %v3100, %v3099
        %v3384 = vpack.c.b16 %v3102, %v3101
        %v3385 = vpack.c.b16 %v3104, %v3103
        %v3386 = vpack.c.b16 %v3106, %v3105
        %v3387 = vpack.c.b16 %v3108, %v3107
        %v3388 = vpack.c.b16 %v3110, %v3109
        %v3389 = vpack.c.b16 %v3112, %v3111
        %v3390 = vpack.c.b16 %v3114, %v3113
        %v3391 = vpack.c.b16 %v3116, %v3115
        %v3392 = vpack.c.b16 %v3118, %v3117
        %v3393 = vpack.c.b16 %v3120, %v3119
        %v3394 = vpack.c.b16 %v3122, %v3121
        %v3395 = vpack.c.b16 %v3124, %v3123
        %v3396 = vpack.c.b16 %v3126, %v3125
        %v3397 = vpack.c.b16 %v3128, %v3127
        %v3398 = vpack.c.b16 %v3130, %v3129
        %v3399 = vpack.c.b16 %v3132, %v3131
        %v3400 = vpack.c.b16 %v3134, %v3133
        %v3401 = vpack.c.b16 %v3136, %v3135
        %v3402 = vpack.c.b16 %v3138, %v3137
        %v3403 = vpack.c.b16 %v3140, %v3139
        %v3404 = vpack.c.b16 %v3142, %v3141
        %v3405 = vpack.c.b16 %v3144, %v3143
        %v3406 = vpack.c.b16 %v3146, %v3145
        %v3407 = vpack.c.b16 %v3148, %v3147
        %v3408 = vpack.c.b16 %v3150, %v3149
        %v3409 = vpack.c.b16 %v3152, %v3151
        %v3410 = vpack.c.b16 %v3154, %v3153
        %3667 = vmatpush.bf16.msra.mxu0 %v3162
        %3668 = vmatpush.bf16.msra.mxu0 %v3161
        %3669 = vmatpush.bf16.msra.mxu0 %v3160
        %3670 = vmatpush.bf16.msra.mxu0 %v3159
        %3671 = vmatpush.bf16.msra.mxu0 %v3158
        %3672 = vmatpush.bf16.msra.mxu0 %v3157
        %3673 = vmatpush.bf16.msra.mxu0 %v3156
        %3674 = vmatpush.bf16.msra.mxu0 %v3155
        %3675 = vmatmul.bf16.gmra.mxu0 %v2096
        %v3676 = vpop.f32.mrf.mxu0
        %v3677 = vadd.f32 %v2129, %v3676
        %v3678 = vpop.f32.mrf.mxu0
        %3679 = vdwg.mxu0
        %3680 = vmatpush.bf16.msra.mxu0 %v3170
        %3681 = vmatpush.bf16.msra.mxu0 %v3169
        %3682 = vmatpush.bf16.msra.mxu0 %v3168
        %3683 = vmatpush.bf16.msra.mxu0 %v3167
        %3684 = vmatpush.bf16.msra.mxu0 %v3166
        %3685 = vmatpush.bf16.msra.mxu0 %v3165
        %3686 = vmatpush.bf16.msra.mxu0 %v3164
        %3687 = vmatpush.bf16.msra.mxu0 %v3163
        %3688 = vmatmul.bf16.gmra.mxu0 %v2097
        %v3689 = vpop.f32.mrf.mxu0
        %v3690 = vadd.f32 %v3677, %v3689
        %v3691 = vpop.f32.mrf.mxu0
        %3692 = vdwg.mxu0
        %3693 = vmatpush.bf16.msra.mxu0 %v3178
        %3694 = vmatpush.bf16.msra.mxu0 %v3177
        %3695 = vmatpush.bf16.msra.mxu0 %v3176
        %3696 = vmatpush.bf16.msra.mxu0 %v3175
        %3697 = vmatpush.bf16.msra.mxu0 %v3174
        %3698 = vmatpush.bf16.msra.mxu0 %v3173
        %3699 = vmatpush.bf16.msra.mxu0 %v3172
        %3700 = vmatpush.bf16.msra.mxu0 %v3171
        %3701 = vmatmul.bf16.gmra.mxu0 %v2098
        %v3702 = vpop.f32.mrf.mxu0
        %v3703 = vadd.f32 %v3690, %v3702
        %v3704 = vpop.f32.mrf.mxu0
        %3705 = vdwg.mxu0
        %3706 = vmatpush.bf16.msra.mxu0 %v3186
        %3707 = vmatpush.bf16.msra.mxu0 %v3185
        %3708 = vmatpush.bf16.msra.mxu0 %v3184
        %3709 = vmatpush.bf16.msra.mxu0 %v3183
        %3710 = vmatpush.bf16.msra.mxu0 %v3182
        %3711 = vmatpush.bf16.msra.mxu0 %v3181
        %3712 = vmatpush.bf16.msra.mxu0 %v3180
        %3713 = vmatpush.bf16.msra.mxu0 %v3179
        %3714 = vmatmul.bf16.gmra.mxu0 %v2099
        %v3715 = vpop.f32.mrf.mxu0
        %v3716 = vadd.f32 %v3703, %v3715
        %v3717 = vpop.f32.mrf.mxu0
        %3718 = vdwg.mxu0
        %3719 = vmatpush.bf16.msra.mxu0 %v3194
        %3720 = vmatpush.bf16.msra.mxu0 %v3193
        %3721 = vmatpush.bf16.msra.mxu0 %v3192
        %3722 = vmatpush.bf16.msra.mxu0 %v3191
        %3723 = vmatpush.bf16.msra.mxu0 %v3190
        %3724 = vmatpush.bf16.msra.mxu0 %v3189
        %3725 = vmatpush.bf16.msra.mxu0 %v3188
        %3726 = vmatpush.bf16.msra.mxu0 %v3187
        %3727 = vmatmul.bf16.gmra.mxu0 %v2100
        %v3728 = vpop.f32.mrf.mxu0
        %v3729 = vadd.f32 %v3716, %v3728
        %v3730 = vpop.f32.mrf.mxu0
        %3731 = vdwg.mxu0
        %3732 = vmatpush.bf16.msra.mxu0 %v3202
        %3733 = vmatpush.bf16.msra.mxu0 %v3201
        %3734 = vmatpush.bf16.msra.mxu0 %v3200
        %3735 = vmatpush.bf16.msra.mxu0 %v3199
        %3736 = vmatpush.bf16.msra.mxu0 %v3198
        %3737 = vmatpush.bf16.msra.mxu0 %v3197
        %3738 = vmatpush.bf16.msra.mxu0 %v3196
        %3739 = vmatpush.bf16.msra.mxu0 %v3195
        %3740 = vmatmul.bf16.gmra.mxu0 %v2101
        %v3741 = vpop.f32.mrf.mxu0
        %v3742 = vadd.f32 %v3729, %v3741
        %v3743 = vpop.f32.mrf.mxu0
        %3744 = vdwg.mxu0
        %3745 = vmatpush.bf16.msra.mxu0 %v3210
        %3746 = vmatpush.bf16.msra.mxu0 %v3209
        %3747 = vmatpush.bf16.msra.mxu0 %v3208
        %3748 = vmatpush.bf16.msra.mxu0 %v3207
        %3749 = vmatpush.bf16.msra.mxu0 %v3206
        %3750 = vmatpush.bf16.msra.mxu0 %v3205
        %3751 = vmatpush.bf16.msra.mxu0 %v3204
        %3752 = vmatpush.bf16.msra.mxu0 %v3203
        %3753 = vmatmul.bf16.gmra.mxu0 %v2102
        %v3754 = vpop.f32.mrf.mxu0
        %v3755 = vadd.f32 %v3742, %v3754
        %v3756 = vpop.f32.mrf.mxu0
        %3757 = vdwg.mxu0
        %3758 = vmatpush.bf16.msra.mxu0 %v3218
        %3759 = vmatpush.bf16.msra.mxu0 %v3217
        %3760 = vmatpush.bf16.msra.mxu0 %v3216
        %3761 = vmatpush.bf16.msra.mxu0 %v3215
        %3762 = vmatpush.bf16.msra.mxu0 %v3214
        %3763 = vmatpush.bf16.msra.mxu0 %v3213
        %3764 = vmatpush.bf16.msra.mxu0 %v3212
        %3765 = vmatpush.bf16.msra.mxu0 %v3211
        %3766 = vmatmul.bf16.gmra.mxu0 %v2103
        %v3767 = vpop.f32.mrf.mxu0
        %v3768 = vadd.f32 %v3755, %v3767
        %v3769 = vpop.f32.mrf.mxu0
        %3770 = vdwg.mxu0
        %3771 = vmatpush.bf16.msra.mxu0 %v3226
        %3772 = vmatpush.bf16.msra.mxu0 %v3225
        %3773 = vmatpush.bf16.msra.mxu0 %v3224
        %3774 = vmatpush.bf16.msra.mxu0 %v3223
        %3775 = vmatpush.bf16.msra.mxu0 %v3222
        %3776 = vmatpush.bf16.msra.mxu0 %v3221
        %3777 = vmatpush.bf16.msra.mxu0 %v3220
        %3778 = vmatpush.bf16.msra.mxu0 %v3219
        %3779 = vmatmul.bf16.gmra.mxu0 %v2104
        %v3780 = vpop.f32.mrf.mxu0
        %v3781 = vadd.f32 %v3768, %v3780
        %v3782 = vpop.f32.mrf.mxu0
        %3783 = vdwg.mxu0
        %3784 = vmatpush.bf16.msra.mxu0 %v3234
        %3785 = vmatpush.bf16.msra.mxu0 %v3233
        %3786 = vmatpush.bf16.msra.mxu0 %v3232
        %3787 = vmatpush.bf16.msra.mxu0 %v3231
        %3788 = vmatpush.bf16.msra.mxu0 %v3230
        %3789 = vmatpush.bf16.msra.mxu0 %v3229
        %3790 = vmatpush.bf16.msra.mxu0 %v3228
        %3791 = vmatpush.bf16.msra.mxu0 %v3227
        %3792 = vmatmul.bf16.gmra.mxu0 %v2105
        %v3793 = vpop.f32.mrf.mxu0
        %v3794 = vadd.f32 %v3781, %v3793
        %v3795 = vpop.f32.mrf.mxu0
        %3796 = vdwg.mxu0
        %3797 = vmatpush.bf16.msra.mxu0 %v3242
        %3798 = vmatpush.bf16.msra.mxu0 %v3241
        %3799 = vmatpush.bf16.msra.mxu0 %v3240
        %3800 = vmatpush.bf16.msra.mxu0 %v3239
        %3801 = vmatpush.bf16.msra.mxu0 %v3238
        %3802 = vmatpush.bf16.msra.mxu0 %v3237
        %3803 = vmatpush.bf16.msra.mxu0 %v3236
        %3804 = vmatpush.bf16.msra.mxu0 %v3235
        %3805 = vmatmul.bf16.gmra.mxu0 %v2106
        %v3806 = vpop.f32.mrf.mxu0
        %v3807 = vadd.f32 %v3794, %v3806
        %v3808 = vpop.f32.mrf.mxu0
        %3809 = vdwg.mxu0
        %3810 = vmatpush.bf16.msra.mxu0 %v3250
        %3811 = vmatpush.bf16.msra.mxu0 %v3249
        %3812 = vmatpush.bf16.msra.mxu0 %v3248
        %3813 = vmatpush.bf16.msra.mxu0 %v3247
        %3814 = vmatpush.bf16.msra.mxu0 %v3246
        %3815 = vmatpush.bf16.msra.mxu0 %v3245
        %3816 = vmatpush.bf16.msra.mxu0 %v3244
        %3817 = vmatpush.bf16.msra.mxu0 %v3243
        %3818 = vmatmul.bf16.gmra.mxu0 %v2107
        %v3819 = vpop.f32.mrf.mxu0
        %v3820 = vadd.f32 %v3807, %v3819
        %v3821 = vpop.f32.mrf.mxu0
        %3822 = vdwg.mxu0
        %3823 = vmatpush.bf16.msra.mxu0 %v3258
        %3824 = vmatpush.bf16.msra.mxu0 %v3257
        %3825 = vmatpush.bf16.msra.mxu0 %v3256
        %3826 = vmatpush.bf16.msra.mxu0 %v3255
        %3827 = vmatpush.bf16.msra.mxu0 %v3254
        %3828 = vmatpush.bf16.msra.mxu0 %v3253
        %3829 = vmatpush.bf16.msra.mxu0 %v3252
        %3830 = vmatpush.bf16.msra.mxu0 %v3251
        %3831 = vmatmul.bf16.gmra.mxu0 %v2108
        %v3832 = vpop.f32.mrf.mxu0
        %v3833 = vadd.f32 %v3820, %v3832
        %v3834 = vpop.f32.mrf.mxu0
        %3835 = vdwg.mxu0
        %3836 = vmatpush.bf16.msra.mxu0 %v3266
        %3837 = vmatpush.bf16.msra.mxu0 %v3265
        %3838 = vmatpush.bf16.msra.mxu0 %v3264
        %3839 = vmatpush.bf16.msra.mxu0 %v3263
        %3840 = vmatpush.bf16.msra.mxu0 %v3262
        %3841 = vmatpush.bf16.msra.mxu0 %v3261
        %3842 = vmatpush.bf16.msra.mxu0 %v3260
        %3843 = vmatpush.bf16.msra.mxu0 %v3259
        %3844 = vmatmul.bf16.gmra.mxu0 %v2109
        %v3845 = vpop.f32.mrf.mxu0
        %v3846 = vadd.f32 %v3833, %v3845
        %v3847 = vpop.f32.mrf.mxu0
        %3848 = vdwg.mxu0
        %3849 = vmatpush.bf16.msra.mxu0 %v3274
        %3850 = vmatpush.bf16.msra.mxu0 %v3273
        %3851 = vmatpush.bf16.msra.mxu0 %v3272
        %3852 = vmatpush.bf16.msra.mxu0 %v3271
        %3853 = vmatpush.bf16.msra.mxu0 %v3270
        %3854 = vmatpush.bf16.msra.mxu0 %v3269
        %3855 = vmatpush.bf16.msra.mxu0 %v3268
        %3856 = vmatpush.bf16.msra.mxu0 %v3267
        %3857 = vmatmul.bf16.gmra.mxu0 %v2110
        %v3858 = vpop.f32.mrf.mxu0
        %v3859 = vadd.f32 %v3846, %v3858
        %v3860 = vpop.f32.mrf.mxu0
        %3861 = vdwg.mxu0
        %3862 = vmatpush.bf16.msra.mxu0 %v3282
        %3863 = vmatpush.bf16.msra.mxu0 %v3281
        %3864 = vmatpush.bf16.msra.mxu0 %v3280
        %3865 = vmatpush.bf16.msra.mxu0 %v3279
        %3866 = vmatpush.bf16.msra.mxu0 %v3278
        %3867 = vmatpush.bf16.msra.mxu0 %v3277
        %3868 = vmatpush.bf16.msra.mxu0 %v3276
        %3869 = vmatpush.bf16.msra.mxu0 %v3275
        %3870 = vmatmul.bf16.gmra.mxu0 %v2111
        %v3871 = vpop.f32.mrf.mxu0
        %v3872 = vadd.f32 %v3859, %v3871
        %v3873 = vpop.f32.mrf.mxu0
        %3874 = vdwg.mxu0
        %3875 = vmatpush.bf16.msra.mxu0 %v3290
        %3876 = vmatpush.bf16.msra.mxu0 %v3289
        %3877 = vmatpush.bf16.msra.mxu0 %v3288
        %3878 = vmatpush.bf16.msra.mxu0 %v3287
        %3879 = vmatpush.bf16.msra.mxu0 %v3286
        %3880 = vmatpush.bf16.msra.mxu0 %v3285
        %3881 = vmatpush.bf16.msra.mxu0 %v3284
        %3882 = vmatpush.bf16.msra.mxu0 %v3283
        %3883 = vmatmul.bf16.gmra.mxu0 %v2112
        %v3884 = vpop.f32.mrf.mxu0
        %v3885 = vadd.f32 %v3872, %v3884
        %v3886 = vpop.f32.mrf.mxu0
        %3887 = vdwg.mxu0
        %3888 = vmatpush.bf16.msra.mxu0 %v3298
        %3889 = vmatpush.bf16.msra.mxu0 %v3297
        %3890 = vmatpush.bf16.msra.mxu0 %v3296
        %3891 = vmatpush.bf16.msra.mxu0 %v3295
        %3892 = vmatpush.bf16.msra.mxu0 %v3294
        %3893 = vmatpush.bf16.msra.mxu0 %v3293
        %3894 = vmatpush.bf16.msra.mxu0 %v3292
        %3895 = vmatpush.bf16.msra.mxu0 %v3291
        %3896 = vmatmul.bf16.gmra.mxu0 %v2113
        %v3897 = vpop.f32.mrf.mxu0
        %v3898 = vadd.f32 %v3885, %v3897
        %v3899 = vpop.f32.mrf.mxu0
        %3900 = vdwg.mxu0
        %3901 = vmatpush.bf16.msra.mxu0 %v3306
        %3902 = vmatpush.bf16.msra.mxu0 %v3305
        %3903 = vmatpush.bf16.msra.mxu0 %v3304
        %3904 = vmatpush.bf16.msra.mxu0 %v3303
        %3905 = vmatpush.bf16.msra.mxu0 %v3302
        %3906 = vmatpush.bf16.msra.mxu0 %v3301
        %3907 = vmatpush.bf16.msra.mxu0 %v3300
        %3908 = vmatpush.bf16.msra.mxu0 %v3299
        %3909 = vmatmul.bf16.gmra.mxu0 %v2114
        %v3910 = vpop.f32.mrf.mxu0
        %v3911 = vadd.f32 %v3898, %v3910
        %v3912 = vpop.f32.mrf.mxu0
        %3913 = vdwg.mxu0
        %3914 = vmatpush.bf16.msra.mxu0 %v3314
        %3915 = vmatpush.bf16.msra.mxu0 %v3313
        %3916 = vmatpush.bf16.msra.mxu0 %v3312
        %3917 = vmatpush.bf16.msra.mxu0 %v3311
        %3918 = vmatpush.bf16.msra.mxu0 %v3310
        %3919 = vmatpush.bf16.msra.mxu0 %v3309
        %3920 = vmatpush.bf16.msra.mxu0 %v3308
        %3921 = vmatpush.bf16.msra.mxu0 %v3307
        %3922 = vmatmul.bf16.gmra.mxu0 %v2115
        %v3923 = vpop.f32.mrf.mxu0
        %v3924 = vadd.f32 %v3911, %v3923
        %v3925 = vpop.f32.mrf.mxu0
        %3926 = vdwg.mxu0
        %3927 = vmatpush.bf16.msra.mxu0 %v3322
        %3928 = vmatpush.bf16.msra.mxu0 %v3321
        %3929 = vmatpush.bf16.msra.mxu0 %v3320
        %3930 = vmatpush.bf16.msra.mxu0 %v3319
        %3931 = vmatpush.bf16.msra.mxu0 %v3318
        %3932 = vmatpush.bf16.msra.mxu0 %v3317
        %3933 = vmatpush.bf16.msra.mxu0 %v3316
        %3934 = vmatpush.bf16.msra.mxu0 %v3315
        %3935 = vmatmul.bf16.gmra.mxu0 %v2116
        %v3936 = vpop.f32.mrf.mxu0
        %v3937 = vadd.f32 %v3924, %v3936
        %v3938 = vpop.f32.mrf.mxu0
        %3939 = vdwg.mxu0
        %3940 = vmatpush.bf16.msra.mxu0 %v3330
        %3941 = vmatpush.bf16.msra.mxu0 %v3329
        %3942 = vmatpush.bf16.msra.mxu0 %v3328
        %3943 = vmatpush.bf16.msra.mxu0 %v3327
        %3944 = vmatpush.bf16.msra.mxu0 %v3326
        %3945 = vmatpush.bf16.msra.mxu0 %v3325
        %3946 = vmatpush.bf16.msra.mxu0 %v3324
        %3947 = vmatpush.bf16.msra.mxu0 %v3323
        %3948 = vmatmul.bf16.gmra.mxu0 %v2117
        %v3949 = vpop.f32.mrf.mxu0
        %v3950 = vadd.f32 %v3937, %v3949
        %v3951 = vpop.f32.mrf.mxu0
        %3952 = vdwg.mxu0
        %3953 = vmatpush.bf16.msra.mxu0 %v3338
        %3954 = vmatpush.bf16.msra.mxu0 %v3337
        %3955 = vmatpush.bf16.msra.mxu0 %v3336
        %3956 = vmatpush.bf16.msra.mxu0 %v3335
        %3957 = vmatpush.bf16.msra.mxu0 %v3334
        %3958 = vmatpush.bf16.msra.mxu0 %v3333
        %3959 = vmatpush.bf16.msra.mxu0 %v3332
        %3960 = vmatpush.bf16.msra.mxu0 %v3331
        %3961 = vmatmul.bf16.gmra.mxu0 %v2118
        %v3962 = vpop.f32.mrf.mxu0
        %v3963 = vadd.f32 %v3950, %v3962
        %v3964 = vpop.f32.mrf.mxu0
        %3965 = vdwg.mxu0
        %3966 = vmatpush.bf16.msra.mxu0 %v3346
        %3967 = vmatpush.bf16.msra.mxu0 %v3345
        %3968 = vmatpush.bf16.msra.mxu0 %v3344
        %3969 = vmatpush.bf16.msra.mxu0 %v3343
        %3970 = vmatpush.bf16.msra.mxu0 %v3342
        %3971 = vmatpush.bf16.msra.mxu0 %v3341
        %3972 = vmatpush.bf16.msra.mxu0 %v3340
        %3973 = vmatpush.bf16.msra.mxu0 %v3339
        %3974 = vmatmul.bf16.gmra.mxu0 %v2119
        %v3975 = vpop.f32.mrf.mxu0
        %v3976 = vadd.f32 %v3963, %v3975
        %v3977 = vpop.f32.mrf.mxu0
        %3978 = vdwg.mxu0
        %3979 = vmatpush.bf16.msra.mxu0 %v3354
        %3980 = vmatpush.bf16.msra.mxu0 %v3353
        %3981 = vmatpush.bf16.msra.mxu0 %v3352
        %3982 = vmatpush.bf16.msra.mxu0 %v3351
        %3983 = vmatpush.bf16.msra.mxu0 %v3350
        %3984 = vmatpush.bf16.msra.mxu0 %v3349
        %3985 = vmatpush.bf16.msra.mxu0 %v3348
        %3986 = vmatpush.bf16.msra.mxu0 %v3347
        %3987 = vmatmul.bf16.gmra.mxu0 %v2120
        %v3988 = vpop.f32.mrf.mxu0
        %v3989 = vadd.f32 %v3976, %v3988
        %v3990 = vpop.f32.mrf.mxu0
        %3991 = vdwg.mxu0
        %3992 = vmatpush.bf16.msra.mxu0 %v3362
        %3993 = vmatpush.bf16.msra.mxu0 %v3361
        %3994 = vmatpush.bf16.msra.mxu0 %v3360
        %3995 = vmatpush.bf16.msra.mxu0 %v3359
        %3996 = vmatpush.bf16.msra.mxu0 %v3358
        %3997 = vmatpush.bf16.msra.mxu0 %v3357
        %3998 = vmatpush.bf16.msra.mxu0 %v3356
        %3999 = vmatpush.bf16.msra.mxu0 %v3355
        %4000 = vmatmul.bf16.gmra.mxu0 %v2121
        %v4001 = vpop.f32.mrf.mxu0
        %v4002 = vadd.f32 %v3989, %v4001
        %v4003 = vpop.f32.mrf.mxu0
        %4004 = vdwg.mxu0
        %4005 = vmatpush.bf16.msra.mxu0 %v3370
        %4006 = vmatpush.bf16.msra.mxu0 %v3369
        %4007 = vmatpush.bf16.msra.mxu0 %v3368
        %4008 = vmatpush.bf16.msra.mxu0 %v3367
        %4009 = vmatpush.bf16.msra.mxu0 %v3366
        %4010 = vmatpush.bf16.msra.mxu0 %v3365
        %4011 = vmatpush.bf16.msra.mxu0 %v3364
        %4012 = vmatpush.bf16.msra.mxu0 %v3363
        %4013 = vmatmul.bf16.gmra.mxu0 %v2122
        %v4014 = vpop.f32.mrf.mxu0
        %v4015 = vadd.f32 %v4002, %v4014
        %v4016 = vpop.f32.mrf.mxu0
        %4017 = vdwg.mxu0
        %4018 = vmatpush.bf16.msra.mxu0 %v3378
        %4019 = vmatpush.bf16.msra.mxu0 %v3377
        %4020 = vmatpush.bf16.msra.mxu0 %v3376
        %4021 = vmatpush.bf16.msra.mxu0 %v3375
        %4022 = vmatpush.bf16.msra.mxu0 %v3374
        %4023 = vmatpush.bf16.msra.mxu0 %v3373
        %4024 = vmatpush.bf16.msra.mxu0 %v3372
        %4025 = vmatpush.bf16.msra.mxu0 %v3371
        %4026 = vmatmul.bf16.gmra.mxu0 %v2123
        %v4027 = vpop.f32.mrf.mxu0
        %v4028 = vadd.f32 %v4015, %v4027
        %v4029 = vpop.f32.mrf.mxu0
        %4030 = vdwg.mxu0
        %4031 = vmatpush.bf16.msra.mxu0 %v3386
        %4032 = vmatpush.bf16.msra.mxu0 %v3385
        %4033 = vmatpush.bf16.msra.mxu0 %v3384
        %4034 = vmatpush.bf16.msra.mxu0 %v3383
        %4035 = vmatpush.bf16.msra.mxu0 %v3382
        %4036 = vmatpush.bf16.msra.mxu0 %v3381
        %4037 = vmatpush.bf16.msra.mxu0 %v3380
        %4038 = vmatpush.bf16.msra.mxu0 %v3379
        %4039 = vmatmul.bf16.gmra.mxu0 %v2124
        %v4040 = vpop.f32.mrf.mxu0
        %v4041 = vadd.f32 %v4028, %v4040
        %v4042 = vpop.f32.mrf.mxu0
        %4043 = vdwg.mxu0
        %4044 = vmatpush.bf16.msra.mxu0 %v3394
        %4045 = vmatpush.bf16.msra.mxu0 %v3393
        %4046 = vmatpush.bf16.msra.mxu0 %v3392
        %4047 = vmatpush.bf16.msra.mxu0 %v3391
        %4048 = vmatpush.bf16.msra.mxu0 %v3390
        %4049 = vmatpush.bf16.msra.mxu0 %v3389
        %4050 = vmatpush.bf16.msra.mxu0 %v3388
        %4051 = vmatpush.bf16.msra.mxu0 %v3387
        %4052 = vmatmul.bf16.gmra.mxu0 %v2125
        %v4053 = vpop.f32.mrf.mxu0
        %v4054 = vadd.f32 %v4041, %v4053
        %v4055 = vpop.f32.mrf.mxu0
        %4056 = vdwg.mxu0
        %4057 = vmatpush.bf16.msra.mxu0 %v3402
        %4058 = vmatpush.bf16.msra.mxu0 %v3401
        %4059 = vmatpush.bf16.msra.mxu0 %v3400
        %4060 = vmatpush.bf16.msra.mxu0 %v3399
        %4061 = vmatpush.bf16.msra.mxu0 %v3398
        %4062 = vmatpush.bf16.msra.mxu0 %v3397
        %4063 = vmatpush.bf16.msra.mxu0 %v3396
        %4064 = vmatpush.bf16.msra.mxu0 %v3395
        %4065 = vmatmul.bf16.gmra.mxu0 %v2126
        %v4066 = vpop.f32.mrf.mxu0
        %v4067 = vadd.f32 %v4054, %v4066
        %v4068 = vpop.f32.mrf.mxu0
        %4069 = vdwg.mxu0
        %4070 = vmatpush.bf16.msra.mxu0 %v3410
        %4071 = vmatpush.bf16.msra.mxu0 %v3409
        %4072 = vmatpush.bf16.msra.mxu0 %v3408
        %4073 = vmatpush.bf16.msra.mxu0 %v3407
        %4074 = vmatpush.bf16.msra.mxu0 %v3406
        %4075 = vmatpush.bf16.msra.mxu0 %v3405
        %4076 = vmatpush.bf16.msra.mxu0 %v3404
        %4077 = vmatpush.bf16.msra.mxu0 %v3403
        %4078 = vmatmul.bf16.gmra.mxu0 %v2127
        %v4079 = vpop.f32.mrf.mxu0
        %v4080 = vadd.f32 %v4067, %v4079
        %v4081 = vpop.f32.mrf.mxu0
        %4082 = vdwg.mxu0
        %4083 = vst [vmem:[%s364] sm:$0xff] %v4080
        %s4084 = sand.u32 %s181, 1
        %s4085 = scalar_lea.sflag [#allocation5], %s4084
        %s4086 = sand.u32 %s181, 1
        %s4087 = smul.addr %s4086, 8
        %s4088 = scalar_lea.vmem [#allocation14], %s4087
        // Predicated region
        $region77: #{tpu_custom_call.1} parent=43 // pred_check
          %p4089 = pneg %p191
        $region78: #{tpu_custom_call.1} parent=43 // pred_check_branch
          %4091 = sbr.rel (%p4089) target = $region80
        $region79: #{tpu_custom_call.1} parent=43 // pred_region
          %4093 = vsyncadd %s4085, 0
          %s4094 = sadd.s32 %s30, %s31
          %s4095 = smul.addr %s4094, 8
          %s4096 = scalar_lea.hbm %s6, %s4095
          %s4098 = sshll.u32 %s4088, 4
          %s4099 = int_to_ptr.vmem [resolvable:$true] %s4098
          %s4100 = sshll.u32 %s4096, 4
          %s4101 = int_to_ptr.hbm [resolvable:$true] %s4100
          %4103 = dma.vmem_to_hbm [thread:$0]  %s4099, 128, %s4101, %s4085
        $region80: #{tpu_custom_call.1} parent=43 // pred_fallthru
          _
      $region44: #{tpu_custom_call.1} parent=5 // pred_fallthru
        _
      %p4104 = scmp.le.s32.totalorder 2, %s21
      // Predicated region
      $region81: #{tpu_custom_call.1} parent=5 // pred_check
        %p4105 = pneg %p4104
      $region82: #{tpu_custom_call.1} parent=5 // pred_check_branch
        %4107 = sbr.rel (%p4105) target = $region84
      $region83: #{tpu_custom_call.1} parent=5 // pred_region
        %s4108 = ssub.s32 %s21, 2
        // Predicated region
        $region85: #{tpu_custom_call.1} parent=83 // pred_check
          %p4109 = pneg %p197
        $region86: #{tpu_custom_call.1} parent=83 // pred_check_branch
          %4111 = sbr.rel (%p4109) target = $region88
        $region87: #{tpu_custom_call.1} parent=83 // pred_region
          %s4112 = sand.u32 %s182, 1
          %s4113 = scalar_lea.sflag [#allocation5], %s4112
          %s4114 = sand.u32 %s182, 1
          %s4115 = smul.addr %s4114, 8
          %s4116 = scalar_lea.vmem [#allocation14], %s4115
          %4118 = dma.done %s4113, 128
        $region88: #{tpu_custom_call.1} parent=83 // pred_fallthru
          _
      $region84: #{tpu_custom_call.1} parent=5 // pred_fallthru
        _
    $region6: #{tpu_custom_call.1} parent=1 // loop_footer
      %s25 = sadd.s32 1, %s21
    $region7: #{tpu_custom_call.1} parent=1 // loop_footer_branch
      %20 = sbr.rel target = $region3
    $region8: #{tpu_custom_call.1} parent=1 // loop_exit
      _
    %4119 = vsyncpa [#allocation4], 1
    %s4120 = scalar_lea.sflag [#allocation4], 1
    %4121 = vsyncpa %s4120, 1
    %4122 = vsyncpa [#allocation7], 1
    %4123 = vsyncpa [#allocation10], 1
    %4124 = vsyncpa [#allocation13], 1
    %4125 = vsyncpa [#allocation5], 1
    %s4126 = scalar_lea.sflag [#allocation5], 1
    %4127 = vsyncpa %s4126, 1

</llo_original>
